<compile_context>
chip_gen: v7x
topology: tpu7x:2x2x1
jax: 0.10.0
libtpu: 0.0.40
codegen_flags: <defaults>
</compile_context>

<pallas_src>
import math
import functools

import jax
import jax.numpy as jnp
from jax.experimental import pallas as pl
from jax.experimental.pallas import tpu as pltpu


# ----------------------------------------------------------------------------
# Tiling helper
# ----------------------------------------------------------------------------
def _tile(dim, target, align):
    """Largest `align`-aligned tile <= target that divides dim, else full dim."""
    if dim <= target:
        return dim
    t = (target // align) * align
    while t >= align:
        if dim % t == 0:
            return t
        t -= align
    return dim


_MATMUL_COMPILER_PARAMS = pltpu.CompilerParams(
    dimension_semantics=("parallel", "parallel", "arbitrary"),
    vmem_limit_bytes=48 * 1024 * 1024,
)


# ----------------------------------------------------------------------------
# Pallas kernels
# ----------------------------------------------------------------------------
def _matmul_kernel(x_ref, w_ref, o_ref, acc_ref):
    @pl.when(pl.program_id(2) == 0)
    def _zero():
        acc_ref[...] = jnp.zeros_like(acc_ref)

    acc_ref[...] += jnp.dot(
        x_ref[...], w_ref[...], preferred_element_type=jnp.float32
    )

    @pl.when(pl.program_id(2) == pl.num_programs(2) - 1)
    def _finalize():
        o_ref[...] = acc_ref[...].astype(o_ref.dtype)


def _matmul_bias_kernel(x_ref, w_ref, b_ref, o_ref, acc_ref, *, relu):
    @pl.when(pl.program_id(2) == 0)
    def _zero():
        acc_ref[...] = jnp.zeros_like(acc_ref)

    acc_ref[...] += jnp.dot(
        x_ref[...], w_ref[...], preferred_element_type=jnp.float32
    )

    @pl.when(pl.program_id(2) == pl.num_programs(2) - 1)
    def _finalize():
        y = acc_ref[...] + b_ref[...]
        if relu:
            y = jnp.maximum(y, 0.0)
        o_ref[...] = y.astype(o_ref.dtype)


def _add_layernorm_kernel(x_ref, r_ref, g_ref, b_ref, o_ref):
    # LayerNorm(x + r) fused: one HBM read of each operand, one write.
    x = x_ref[...] + r_ref[...]
    mu = jnp.mean(x, axis=-1, keepdims=True)
    var = jnp.mean((x - mu) ** 2, axis=-1, keepdims=True)
    y = (x - mu) * jax.lax.rsqrt(var + 1e-5) * g_ref[...] + b_ref[...]
    o_ref[...] = y.astype(o_ref.dtype)


def _attn_kernel(qkv_ref, o_ref, *, head_num, dim, scale):
    # One batch element per grid step.  qkv_ref block is (1, S, 3D); heads are
    # sliced on the feature axis inside the kernel (no JAX-side slice copies
    # or (0,2,1,3) transposes), and the output is one lane-dense (S, D) store.
    qkv = qkv_ref[0]                      # (S, 3D)
    dh = dim // head_num
    outs = []
    for h in range(head_num):
        lo = h * dh
        qh = qkv[:, lo:lo + dh] * scale            # scale Q (cheaper than SxS)
        kh = qkv[:, dim + lo:dim + lo + dh]
        vh = qkv[:, 2 * dim + lo:2 * dim + lo + dh]
        # q @ k^T without materializing a transpose: contract the Dh axis.
        s = jax.lax.dot_general(
            qh, kh, (((1,), (1,)), ((), ())),
            preferred_element_type=jnp.float32,
        )
        s = s - jnp.max(s, axis=-1, keepdims=True)
        p = jnp.exp(s)
        p = p * pl.reciprocal(jnp.sum(p, axis=-1, keepdims=True), approx=True)
        outs.append(jnp.dot(p, vh, preferred_element_type=jnp.float32))
    o_ref[0] = jnp.concatenate(outs, axis=-1).astype(o_ref.dtype)


# ----------------------------------------------------------------------------
# Pallas wrappers
# ----------------------------------------------------------------------------
def linear(x2d, w, b=None, relu=False, tm=256, tn=512, tk=512):
    """x2d: (M, K) f32, w: (K, N) f32 (already (in, out)), b: (N,) or None."""
    M, K = x2d.shape
    N = w.shape[1]
    tm = _tile(M, tm, 8)
    tn = _tile(N, tn, 128)
    tk = _tile(K, tk, 128)
    grid = (M // tm, N // tn, K // tk)

    x_spec = pl.BlockSpec((tm, tk), lambda i, j, k: (i, k))
    w_spec = pl.BlockSpec((tk, tn), lambda i, j, k: (k, j))
    o_spec = pl.BlockSpec((tm, tn), lambda i, j, k: (i, j))
    scratch = [pltpu.VMEM((tm, tn), jnp.float32)]
    out_shape = jax.ShapeDtypeStruct((M, N), jnp.float32)

    if b is None:
        return pl.pallas_call(
            _matmul_kernel,
            out_shape=out_shape,
            grid=grid,
            in_specs=[x_spec, w_spec],
            out_specs=o_spec,
            scratch_shapes=scratch,
            compiler_params=_MATMUL_COMPILER_PARAMS,
        )(x2d, w)

    kern = functools.partial(_matmul_bias_kernel, relu=relu)
    b_spec = pl.BlockSpec((1, tn), lambda i, j, k: (0, j))
    return pl.pallas_call(
        kern,
        out_shape=out_shape,
        grid=grid,
        in_specs=[x_spec, w_spec, b_spec],
        out_specs=o_spec,
        scratch_shapes=scratch,
        compiler_params=_MATMUL_COMPILER_PARAMS,
    )(x2d, w, b.reshape(1, N))


def add_layer_norm(x, r, gamma, beta):
    """LayerNorm(x + r) over the last axis. x, r: (B, S, D)."""
    B, S, D = x.shape
    M = B * S
    tm = _tile(M, 256, 8)
    out = pl.pallas_call(
        _add_layernorm_kernel,
        out_shape=jax.ShapeDtypeStruct((M, D), jnp.float32),
        grid=(M // tm,),
        in_specs=[
            pl.BlockSpec((tm, D), lambda i: (i, 0)),
            pl.BlockSpec((tm, D), lambda i: (i, 0)),
            pl.BlockSpec((1, D), lambda i: (0, 0)),
            pl.BlockSpec((1, D), lambda i: (0, 0)),
        ],
        out_specs=pl.BlockSpec((tm, D), lambda i: (i, 0)),
        compiler_params=pltpu.CompilerParams(dimension_semantics=("parallel",)),
    )(x.reshape(M, D), r.reshape(M, D), gamma.reshape(1, D), beta.reshape(1, D))
    return out.reshape(B, S, D)


def attention(qkv, head_num, dim):
    """qkv: (B, S, 3*dim) f32 (fused projections); returns (B, S, dim)."""
    B, S, D3 = qkv.shape
    scale = 1.0 / math.sqrt(dim // head_num)
    kern = functools.partial(_attn_kernel, head_num=head_num, dim=dim, scale=scale)
    return pl.pallas_call(
        kern,
        out_shape=jax.ShapeDtypeStruct((B, S, dim), jnp.float32),
        grid=(B,),
        in_specs=[pl.BlockSpec((1, S, D3), lambda b: (b, 0, 0))],
        out_specs=pl.BlockSpec((1, S, dim), lambda b: (b, 0, 0)),
        compiler_params=pltpu.CompilerParams(dimension_semantics=("parallel",)),
    )(qkv)


# ----------------------------------------------------------------------------
# EncoderBlock pieces (functional, eval mode: dropout = identity)
# ----------------------------------------------------------------------------
def mha_forward(p, x, head_num):
    B, S, D = x.shape
    # Fused Q/K/V projection: one (D, 3D) bias-free matmul (as in the spec).
    qkv = linear(x.reshape(B * S, D), p["wqkv"]).reshape(B, S, 3 * D)
    o = attention(qkv, head_num, D)                       # (B, S, D)
    o = linear(o.reshape(B * S, D), p["wo"])              # output projection
    return o.reshape(B, S, D)


def ff_forward(p, x):
    B, S, D = x.shape
    # bias + ReLU fused into the matmul epilogue
    h = linear(x.reshape(B * S, D), p["w1"], p["b1"], relu=True)
    o = linear(h, p["w2"], p["b2"])
    return o.reshape(B, S, D)


def encoder_block(p, x, head_num):
    attn = mha_forward(p["mha"], x, head_num)                         # MHA(x,x,x)
    x1 = add_layer_norm(attn, x, p["ln1"]["g"], p["ln1"]["b"])        # LN(attn + x)
    ff = ff_forward(p["ff"], x1)
    x2 = add_layer_norm(ff, x1, p["ln2"]["g"], p["ln2"]["b"])         # LN(ff + x1)
    return x2


# ----------------------------------------------------------------------------
# Pure-JAX reference (for correctness check)
# ----------------------------------------------------------------------------
def _layer_norm_ref(x, g, b):
    mu = jnp.mean(x, axis=-1, keepdims=True)
    var = jnp.mean((x - mu) ** 2, axis=-1, keepdims=True)
    return (x - mu) * jax.lax.rsqrt(var + 1e-5) * g + b


def encoder_block_ref(p, x, head_num):
    B, S, D = x.shape
    Dh = D // head_num
    qkv = x @ p["mha"]["wqkv"]
    q, k, v = qkv[..., :D], qkv[..., D:2 * D], qkv[..., 2 * D:]

    def split(t):
        return t.reshape(B, S, head_num, Dh).transpose(0, 2, 1, 3)

    qh, kh, vh = split(q), split(k), split(v)
    s = jnp.einsum("bhqd,bhkd->bhqk", qh, kh) / math.sqrt(Dh)
    pr = jax.nn.softmax(s, axis=-1)
    o = jnp.einsum("bhqk,bhkd->bhqd", pr, vh)
    o = o.transpose(0, 2, 1, 3).reshape(B, S, D)
    o = o @ p["mha"]["wo"]
    x1 = _layer_norm_ref(o + x, p["ln1"]["g"], p["ln1"]["b"])
    h = jnp.maximum(x1 @ p["ff"]["w1"] + p["ff"]["b1"], 0.0)
    f = h @ p["ff"]["w2"] + p["ff"]["b2"]
    return _layer_norm_ref(f + x1, p["ln2"]["g"], p["ln2"]["b"])


# ----------------------------------------------------------------------------
# Deterministic parameter init
# ----------------------------------------------------------------------------
def init_params(key, dim, head_num, hidden_dim=2048):
    counter = [0]

    def nxt():
        counter[0] += 1
        return jax.random.fold_in(key, counter[0])

    def W(shape, scale=0.02):
        return scale * jax.random.normal(nxt(), shape, jnp.float32)

    return {
        "mha": {"wqkv": W((dim, 3 * dim)), "wo": W((dim, dim))},
        "ln1": {"g": jnp.ones((dim,), jnp.float32),
                "b": jnp.zeros((dim,), jnp.float32)},
        "ff": {"w1": W((dim, hidden_dim)), "b1": W((hidden_dim,)),
               "w2": W((hidden_dim, dim)), "b2": W((dim,))},
        "ln2": {"g": jnp.ones((dim,), jnp.float32),
                "b": jnp.zeros((dim,), jnp.float32)},
    }


# ----------------------------------------------------------------------------
if __name__ == "__main__":
    B, S, DIM, HEAD_NUM, HIDDEN = 2, 8, 32, 4, 2048

    key = jax.random.PRNGKey(0)
    params = init_params(key, DIM, HEAD_NUM, HIDDEN)
    x = jax.random.normal(jax.random.fold_in(key, 12345), (B, S, DIM), jnp.float32)

    fwd = jax.jit(functools.partial(encoder_block, head_num=HEAD_NUM))
    out = jax.block_until_ready(fwd(params, x))

    assert out.shape == (B, S, DIM)
    assert bool(jnp.all(jnp.isfinite(out)))

    ref = encoder_block_ref(params, x, HEAD_NUM)
    max_err = float(jnp.max(jnp.abs(out - ref)))
    assert jnp.allclose(out, ref, rtol=2e-2, atol=2e-2), f"max abs err {max_err}"

    print("KERNEL_OK")
</pallas_src>

<mosaic_0001>
module attributes {stable_mosaic.version = 11 : i64} {
  func.func @_matmul_kernel(%arg0: i32, %arg1: i32, %arg2: i32, %arg3: memref<16x32xf32, #tpu.memory_space<vmem>>, %arg4: memref<32x32xf32, #tpu.memory_space<vmem>>, %arg5: memref<16x32xf32, #tpu.memory_space<vmem>>, %arg6: memref<16x32xf32, #tpu.memory_space<vmem>>) attributes {dimension_semantics = [#tpu.dimension_semantics<parallel>, #tpu.dimension_semantics<parallel>, #tpu.dimension_semantics<arbitrary>], iteration_bounds = array<i64: 1, 1, 1>, scalar_prefetch = 0 : i64, scratch_operands = 1 : i64, tpu.core_type = #tpu.core_type<tc>, window_params = [{transform_indices = @transform_0, window_bounds = array<i64: 16, 32>}, {transform_indices = @transform_1, window_bounds = array<i64: 32, 32>}, {transform_indices = @transform_2, window_bounds = array<i64: 16, 32>}]} {
    %c0_i32 = arith.constant 0 : i32
    %0 = arith.cmpi eq, %arg2, %c0_i32 : i32
    %1 = arith.extui %0 : i1 to i32
    %c0_i32_0 = arith.constant 0 : i32
    %2 = arith.cmpi ne, %1, %c0_i32_0 : i32
    scf.if %2 {
      %cst_10 = arith.constant 0.000000e+00 : f32
      %12 = vector.broadcast %cst_10 : f32 to vector<16x32xf32>
      %c0_11 = arith.constant 0 : index
      %c0_12 = arith.constant 0 : index
      %13 = vector.load %arg6[%c0_11, %c0_12] : memref<16x32xf32, #tpu.memory_space<vmem>>, vector<16x32xf32>
      tpu.vector_store %arg6[%c0_11, %c0_12], %12 {strides = array<i32>} : memref<16x32xf32, #tpu.memory_space<vmem>>, vector<16x32xf32>,
    } else {
    }
    %c0 = arith.constant 0 : index
    %c0_1 = arith.constant 0 : index
    %3 = vector.load %arg6[%c0, %c0_1] : memref<16x32xf32, #tpu.memory_space<vmem>>, vector<16x32xf32>
    %c0_2 = arith.constant 0 : index
    %c0_3 = arith.constant 0 : index
    %4 = vector.load %arg3[%c0_2, %c0_3] : memref<16x32xf32, #tpu.memory_space<vmem>>, vector<16x32xf32>
    %c0_4 = arith.constant 0 : index
    %c0_5 = arith.constant 0 : index
    %5 = vector.load %arg4[%c0_4, %c0_5] : memref<32x32xf32, #tpu.memory_space<vmem>>, vector<32x32xf32>
    %cst = arith.constant dense<0.000000e+00> : vector<16x32xf32>
    %6 = tpu.matmul %4, %5, %cst {dimension_numbers = #tpu.dot_dimension_numbers<[1], [0], [0], [1], [0, 0, 1, 1], [], []>} : vector<16x32xf32>, vector<32x32xf32>, vector<16x32xf32> -> vector<16x32xf32>
    %7 = arith.addf %3, %6 : vector<16x32xf32>
    %c0_6 = arith.constant 0 : index
    %c0_7 = arith.constant 0 : index
    %8 = vector.load %arg6[%c0_6, %c0_7] : memref<16x32xf32, #tpu.memory_space<vmem>>, vector<16x32xf32>
    tpu.vector_store %arg6[%c0_6, %c0_7], %7 {strides = array<i32>} : memref<16x32xf32, #tpu.memory_space<vmem>>, vector<16x32xf32>,
    %c0_i32_8 = arith.constant 0 : i32
    %9 = arith.cmpi eq, %arg2, %c0_i32_8 : i32
    %10 = arith.extui %9 : i1 to i32
    %c0_i32_9 = arith.constant 0 : i32
    %11 = arith.cmpi ne, %10, %c0_i32_9 : i32
    scf.if %11 {
      %c0_10 = arith.constant 0 : index
      %c0_11 = arith.constant 0 : index
      %12 = vector.load %arg6[%c0_10, %c0_11] : memref<16x32xf32, #tpu.memory_space<vmem>>, vector<16x32xf32>
      %c0_12 = arith.constant 0 : index
      %c0_13 = arith.constant 0 : index
      %13 = vector.load %arg5[%c0_12, %c0_13] : memref<16x32xf32, #tpu.memory_space<vmem>>, vector<16x32xf32>
      tpu.vector_store %arg5[%c0_12, %c0_13], %12 {strides = array<i32>} : memref<16x32xf32, #tpu.memory_space<vmem>>, vector<16x32xf32>,
    } else {
    }
    return
  }
  func.func @transform_0(%arg0: i32, %arg1: i32, %arg2: i32) -> (i32, i32) {
    %c0_i32 = arith.constant 0 : i32
    return %arg0, %arg2 : i32, i32
  }
  func.func @transform_1(%arg0: i32, %arg1: i32, %arg2: i32) -> (i32, i32) {
    %c0_i32 = arith.constant 0 : i32
    return %arg2, %arg1 : i32, i32
  }
  func.func @transform_2(%arg0: i32, %arg1: i32, %arg2: i32) -> (i32, i32) {
    %c0_i32 = arith.constant 0 : i32
    return %arg0, %arg1 : i32, i32
  }
}

module attributes {stable_mosaic.version = 11 : i64} {
  func.func @_add_layernorm_kernel(%arg0: i32, %arg1: memref<16x32xf32, #tpu.memory_space<vmem>>, %arg2: memref<16x32xf32, #tpu.memory_space<vmem>>, %arg3: memref<1x32xf32, #tpu.memory_space<vmem>>, %arg4: memref<1x32xf32, #tpu.memory_space<vmem>>, %arg5: memref<16x32xf32, #tpu.memory_space<vmem>>) attributes {dimension_semantics = [#tpu.dimension_semantics<parallel>], iteration_bounds = array<i64: 1>, scalar_prefetch = 0 : i64, scratch_operands = 0 : i64, tpu.core_type = #tpu.core_type<tc>, window_params = [{transform_indices = @transform_0, window_bounds = array<i64: 16, 32>}, {transform_indices = @transform_1, window_bounds = array<i64: 16, 32>}, {pipeline_mode = #tpu.pipeline_mode<synchronous>, transform_indices = @transform_2, window_bounds = array<i64: 1, 32>}, {pipeline_mode = #tpu.pipeline_mode<synchronous>, transform_indices = @transform_3, window_bounds = array<i64: 1, 32>}, {transform_indices = @transform_4, window_bounds = array<i64: 16, 32>}]} {
    %c0 = arith.constant 0 : index
    %c0_0 = arith.constant 0 : index
    %0 = vector.load %arg1[%c0, %c0_0] : memref<16x32xf32, #tpu.memory_space<vmem>>, vector<16x32xf32>
    %c0_1 = arith.constant 0 : index
    %c0_2 = arith.constant 0 : index
    %1 = vector.load %arg2[%c0_1, %c0_2] : memref<16x32xf32, #tpu.memory_space<vmem>>, vector<16x32xf32>
    %2 = arith.addf %0, %1 : vector<16x32xf32>
    %cst = arith.constant dense<0.000000e+00> : vector<16xf32>
    %3 = vector.multi_reduction <add>, %2, %cst [1] : vector<16x32xf32> to vector<16xf32>
    %4 = vector.shape_cast %3 : vector<16xf32> to vector<16x1xf32>
    %cst_3 = arith.constant 3.200000e+01 : f32
    %5 = vector.broadcast %cst_3 : f32 to vector<16x1xf32>
    %6 = arith.divf %4, %5 : vector<16x1xf32>
    %7 = vector.broadcast %6 : vector<16x1xf32> to vector<16x32xf32>
    %8 = arith.subf %2, %7 : vector<16x32xf32>
    %9 = arith.mulf %8, %8 : vector<16x32xf32>
    %cst_4 = arith.constant dense<0.000000e+00> : vector<16xf32>
    %10 = vector.multi_reduction <add>, %9, %cst_4 [1] : vector<16x32xf32> to vector<16xf32>
    %11 = vector.shape_cast %10 : vector<16xf32> to vector<16x1xf32>
    %cst_5 = arith.constant 3.200000e+01 : f32
    %12 = vector.broadcast %cst_5 : f32 to vector<16x1xf32>
    %13 = arith.divf %11, %12 : vector<16x1xf32>
    %14 = vector.broadcast %6 : vector<16x1xf32> to vector<16x32xf32>
    %15 = arith.subf %2, %14 : vector<16x32xf32>
    %cst_6 = arith.constant 9.99999974E-6 : f32
    %16 = vector.broadcast %cst_6 : f32 to vector<16x1xf32>
    %17 = arith.addf %13, %16 : vector<16x1xf32>
    %18 = math.rsqrt %17 : vector<16x1xf32>
    %19 = vector.broadcast %18 : vector<16x1xf32> to vector<16x32xf32>
    %20 = arith.mulf %15, %19 : vector<16x32xf32>
    %c0_7 = arith.constant 0 : index
    %c0_8 = arith.constant 0 : index
    %21 = vector.load %arg3[%c0_7, %c0_8] : memref<1x32xf32, #tpu.memory_space<vmem>>, vector<1x32xf32>
    %22 = vector.broadcast %21 : vector<1x32xf32> to vector<16x32xf32>
    %23 = arith.mulf %20, %22 : vector<16x32xf32>
    %c0_9 = arith.constant 0 : index
    %c0_10 = arith.constant 0 : index
    %24 = vector.load %arg4[%c0_9, %c0_10] : memref<1x32xf32, #tpu.memory_space<vmem>>, vector<1x32xf32>
    %25 = vector.broadcast %24 : vector<1x32xf32> to vector<16x32xf32>
    %26 = arith.addf %23, %25 : vector<16x32xf32>
    %c0_11 = arith.constant 0 : index
    %c0_12 = arith.constant 0 : index
    %27 = vector.load %arg5[%c0_11, %c0_12] : memref<16x32xf32, #tpu.memory_space<vmem>>, vector<16x32xf32>
    tpu.vector_store %arg5[%c0_11, %c0_12], %26 {strides = array<i32>} : memref<16x32xf32, #tpu.memory_space<vmem>>, vector<16x32xf32>,
    return
  }
  func.func @transform_0(%arg0: i32) -> (i32, i32) {
    %c0_i32 = arith.constant 0 : i32
    %c0_i32_0 = arith.constant 0 : i32
    return %arg0, %c0_i32 : i32, i32
  }
  func.func @transform_1(%arg0: i32) -> (i32, i32) {
    %c0_i32 = arith.constant 0 : i32
    %c0_i32_0 = arith.constant 0 : i32
    return %arg0, %c0_i32 : i32, i32
  }
  func.func @transform_2(%arg0: i32) -> (i32, i32) {
    %c0_i32 = arith.constant 0 : i32
    %c0_i32_0 = arith.constant 0 : i32
    %c0_i32_1 = arith.constant 0 : i32
    return %c0_i32, %c0_i32_0 : i32, i32
  }
  func.func @transform_3(%arg0: i32) -> (i32, i32) {
    %c0_i32 = arith.constant 0 : i32
    %c0_i32_0 = arith.constant 0 : i32
    %c0_i32_1 = arith.constant 0 : i32
    return %c0_i32, %c0_i32_0 : i32, i32
  }
  func.func @transform_4(%arg0: i32) -> (i32, i32) {
    %c0_i32 = arith.constant 0 : i32
    %c0_i32_0 = arith.constant 0 : i32
    return %arg0, %c0_i32 : i32, i32
  }
}

module attributes {stable_mosaic.version = 11 : i64} {
  func.func @_attn_kernel(%arg0: i32, %arg1: memref<1x8x96xf32, #tpu.memory_space<vmem>>, %arg2: memref<1x8x32xf32, #tpu.memory_space<vmem>>) attributes {dimension_semantics = [#tpu.dimension_semantics<parallel>], iteration_bounds = array<i64: 2>, scalar_prefetch = 0 : i64, scratch_operands = 0 : i64, tpu.core_type = #tpu.core_type<tc>, window_params = [{transform_indices = @transform_0, window_bounds = array<i64: 1, 8, 96>}, {transform_indices = @transform_1, window_bounds = array<i64: 1, 8, 32>}]} {
    %c0 = arith.constant 0 : index
    %c0_0 = arith.constant 0 : index
    %c0_1 = arith.constant 0 : index
    %0 = vector.load %arg1[%c0, %c0_0, %c0_1] : memref<1x8x96xf32, #tpu.memory_space<vmem>>, vector<1x8x96xf32>
    %1 = vector.shape_cast %0 : vector<1x8x96xf32> to vector<8x96xf32>
    %2 = vector.extract_strided_slice %1 {offsets = [0, 0], sizes = [8, 8], strides = [1, 1]} : vector<8x96xf32> to vector<8x8xf32>
    %cst = arith.constant 0.353553385 : f32
    %3 = vector.broadcast %cst : f32 to vector<8x8xf32>
    %4 = arith.mulf %2, %3 : vector<8x8xf32>
    %5 = vector.extract_strided_slice %1 {offsets = [0, 32], sizes = [8, 8], strides = [1, 1]} : vector<8x96xf32> to vector<8x8xf32>
    %6 = vector.extract_strided_slice %1 {offsets = [0, 64], sizes = [8, 8], strides = [1, 1]} : vector<8x96xf32> to vector<8x8xf32>
    %cst_2 = arith.constant dense<0.000000e+00> : vector<8x8xf32>
    %7 = tpu.matmul %4, %5, %cst_2 {dimension_numbers = #tpu.dot_dimension_numbers<[1], [1], [0], [0], [0, 0, 1, 0], [], []>} : vector<8x8xf32>, vector<8x8xf32>, vector<8x8xf32> -> vector<8x8xf32>
    %cst_3 = arith.constant dense<0xFF800000> : vector<8xf32>
    %8 = vector.multi_reduction <maximumf>, %7, %cst_3 [1] : vector<8x8xf32> to vector<8xf32>
    %9 = vector.shape_cast %8 : vector<8xf32> to vector<8x1xf32>
    %10 = vector.broadcast %9 : vector<8x1xf32> to vector<8x8xf32>
    %11 = arith.subf %7, %10 : vector<8x8xf32>
    %12 = math.exp %11 : vector<8x8xf32>
    %cst_4 = arith.constant dense<0.000000e+00> : vector<8xf32>
    %13 = vector.multi_reduction <add>, %12, %cst_4 [1] : vector<8x8xf32> to vector<8xf32>
    %14 = vector.shape_cast %13 : vector<8xf32> to vector<8x1xf32>
    %15 = tpu.reciprocal %14 {approx = true} : vector<8x1xf32> -> vector<8x1xf32>
    %16 = vector.broadcast %15 : vector<8x1xf32> to vector<8x8xf32>
    %17 = arith.mulf %12, %16 : vector<8x8xf32>
    %cst_5 = arith.constant dense<0.000000e+00> : vector<8x8xf32>
    %18 = tpu.matmul %17, %6, %cst_5 {dimension_numbers = #tpu.dot_dimension_numbers<[1], [0], [0], [1], [0, 0, 1, 1], [], []>} : vector<8x8xf32>, vector<8x8xf32>, vector<8x8xf32> -> vector<8x8xf32>
    %19 = vector.extract_strided_slice %1 {offsets = [0, 8], sizes = [8, 8], strides = [1, 1]} : vector<8x96xf32> to vector<8x8xf32>
    %cst_6 = arith.constant 0.353553385 : f32
    %20 = vector.broadcast %cst_6 : f32 to vector<8x8xf32>
    %21 = arith.mulf %19, %20 : vector<8x8xf32>
    %22 = vector.extract_strided_slice %1 {offsets = [0, 40], sizes = [8, 8], strides = [1, 1]} : vector<8x96xf32> to vector<8x8xf32>
    %23 = vector.extract_strided_slice %1 {offsets = [0, 72], sizes = [8, 8], strides = [1, 1]} : vector<8x96xf32> to vector<8x8xf32>
    %cst_7 = arith.constant dense<0.000000e+00> : vector<8x8xf32>
    %24 = tpu.matmul %21, %22, %cst_7 {dimension_numbers = #tpu.dot_dimension_numbers<[1], [1], [0], [0], [0, 0, 1, 0], [], []>} : vector<8x8xf32>, vector<8x8xf32>, vector<8x8xf32> -> vector<8x8xf32>
    %cst_8 = arith.constant dense<0xFF800000> : vector<8xf32>
    %25 = vector.multi_reduction <maximumf>, %24, %cst_8 [1] : vector<8x8xf32> to vector<8xf32>
    %26 = vector.shape_cast %25 : vector<8xf32> to vector<8x1xf32>
    %27 = vector.broadcast %26 : vector<8x1xf32> to vector<8x8xf32>
    %28 = arith.subf %24, %27 : vector<8x8xf32>
    %29 = math.exp %28 : vector<8x8xf32>
    %cst_9 = arith.constant dense<0.000000e+00> : vector<8xf32>
    %30 = vector.multi_reduction <add>, %29, %cst_9 [1] : vector<8x8xf32> to vector<8xf32>
    %31 = vector.shape_cast %30 : vector<8xf32> to vector<8x1xf32>
    %32 = tpu.reciprocal %31 {approx = true} : vector<8x1xf32> -> vector<8x1xf32>
    %33 = vector.broadcast %32 : vector<8x1xf32> to vector<8x8xf32>
    %34 = arith.mulf %29, %33 : vector<8x8xf32>
    %cst_10 = arith.constant dense<0.000000e+00> : vector<8x8xf32>
    %35 = tpu.matmul %34, %23, %cst_10 {dimension_numbers = #tpu.dot_dimension_numbers<[1], [0], [0], [1], [0, 0, 1, 1], [], []>} : vector<8x8xf32>, vector<8x8xf32>, vector<8x8xf32> -> vector<8x8xf32>
    %36 = vector.extract_strided_slice %1 {offsets = [0, 16], sizes = [8, 8], strides = [1, 1]} : vector<8x96xf32> to vector<8x8xf32>
    %cst_11 = arith.constant 0.353553385 : f32
    %37 = vector.broadcast %cst_11 : f32 to vector<8x8xf32>
    %38 = arith.mulf %36, %37 : vector<8x8xf32>
    %39 = vector.extract_strided_slice %1 {offsets = [0, 48], sizes = [8, 8], strides = [1, 1]} : vector<8x96xf32> to vector<8x8xf32>
    %40 = vector.extract_strided_slice %1 {offsets = [0, 80], sizes = [8, 8], strides = [1, 1]} : vector<8x96xf32> to vector<8x8xf32>
    %cst_12 = arith.constant dense<0.000000e+00> : vector<8x8xf32>
    %41 = tpu.matmul %38, %39, %cst_12 {dimension_numbers = #tpu.dot_dimension_numbers<[1], [1], [0], [0], [0, 0, 1, 0], [], []>} : vector<8x8xf32>, vector<8x8xf32>, vector<8x8xf32> -> vector<8x8xf32>
    %cst_13 = arith.constant dense<0xFF800000> : vector<8xf32>
    %42 = vector.multi_reduction <maximumf>, %41, %cst_13 [1] : vector<8x8xf32> to vector<8xf32>
    %43 = vector.shape_cast %42 : vector<8xf32> to vector<8x1xf32>
    %44 = vector.broadcast %43 : vector<8x1xf32> to vector<8x8xf32>
    %45 = arith.subf %41, %44 : vector<8x8xf32>
    %46 = math.exp %45 : vector<8x8xf32>
    %cst_14 = arith.constant dense<0.000000e+00> : vector<8xf32>
    %47 = vector.multi_reduction <add>, %46, %cst_14 [1] : vector<8x8xf32> to vector<8xf32>
    %48 = vector.shape_cast %47 : vector<8xf32> to vector<8x1xf32>
    %49 = tpu.reciprocal %48 {approx = true} : vector<8x1xf32> -> vector<8x1xf32>
    %50 = vector.broadcast %49 : vector<8x1xf32> to vector<8x8xf32>
    %51 = arith.mulf %46, %50 : vector<8x8xf32>
    %cst_15 = arith.constant dense<0.000000e+00> : vector<8x8xf32>
    %52 = tpu.matmul %51, %40, %cst_15 {dimension_numbers = #tpu.dot_dimension_numbers<[1], [0], [0], [1], [0, 0, 1, 1], [], []>} : vector<8x8xf32>, vector<8x8xf32>, vector<8x8xf32> -> vector<8x8xf32>
    %53 = vector.extract_strided_slice %1 {offsets = [0, 24], sizes = [8, 8], strides = [1, 1]} : vector<8x96xf32> to vector<8x8xf32>
    %cst_16 = arith.constant 0.353553385 : f32
    %54 = vector.broadcast %cst_16 : f32 to vector<8x8xf32>
    %55 = arith.mulf %53, %54 : vector<8x8xf32>
    %56 = vector.extract_strided_slice %1 {offsets = [0, 56], sizes = [8, 8], strides = [1, 1]} : vector<8x96xf32> to vector<8x8xf32>
    %57 = vector.extract_strided_slice %1 {offsets = [0, 88], sizes = [8, 8], strides = [1, 1]} : vector<8x96xf32> to vector<8x8xf32>
    %cst_17 = arith.constant dense<0.000000e+00> : vector<8x8xf32>
    %58 = tpu.matmul %55, %56, %cst_17 {dimension_numbers = #tpu.dot_dimension_numbers<[1], [1], [0], [0], [0, 0, 1, 0], [], []>} : vector<8x8xf32>, vector<8x8xf32>, vector<8x8xf32> -> vector<8x8xf32>
    %cst_18 = arith.constant dense<0xFF800000> : vector<8xf32>
    %59 = vector.multi_reduction <maximumf>, %58, %cst_18 [1] : vector<8x8xf32> to vector<8xf32>
    %60 = vector.shape_cast %59 : vector<8xf32> to vector<8x1xf32>
    %61 = vector.broadcast %60 : vector<8x1xf32> to vector<8x8xf32>
    %62 = arith.subf %58, %61 : vector<8x8xf32>
    %63 = math.exp %62 : vector<8x8xf32>
    %cst_19 = arith.constant dense<0.000000e+00> : vector<8xf32>
    %64 = vector.multi_reduction <add>, %63, %cst_19 [1] : vector<8x8xf32> to vector<8xf32>
    %65 = vector.shape_cast %64 : vector<8xf32> to vector<8x1xf32>
    %66 = tpu.reciprocal %65 {approx = true} : vector<8x1xf32> -> vector<8x1xf32>
    %67 = vector.broadcast %66 : vector<8x1xf32> to vector<8x8xf32>
    %68 = arith.mulf %63, %67 : vector<8x8xf32>
    %cst_20 = arith.constant dense<0.000000e+00> : vector<8x8xf32>
    %69 = tpu.matmul %68, %57, %cst_20 {dimension_numbers = #tpu.dot_dimension_numbers<[1], [0], [0], [1], [0, 0, 1, 1], [], []>} : vector<8x8xf32>, vector<8x8xf32>, vector<8x8xf32> -> vector<8x8xf32>
    %70 = tpu.concatenate %18, %35, %52, %69 in 1 : vector<8x8xf32>, vector<8x8xf32>, vector<8x8xf32>, vector<8x8xf32> -> vector<8x32xf32>
    %c0_21 = arith.constant 0 : index
    %c0_22 = arith.constant 0 : index
    %c0_23 = arith.constant 0 : index
    %71 = vector.load %arg2[%c0_21, %c0_22, %c0_23] : memref<1x8x32xf32, #tpu.memory_space<vmem>>, vector<1x8x32xf32>
    %72 = vector.shape_cast %71 : vector<1x8x32xf32> to vector<8x32xf32>
    %73 = vector.shape_cast %70 : vector<8x32xf32> to vector<1x8x32xf32>
    tpu.vector_store %arg2[%c0_21, %c0_22, %c0_23], %73 {strides = array<i32>} : memref<1x8x32xf32, #tpu.memory_space<vmem>>, vector<1x8x32xf32>,
    return
  }
  func.func @transform_0(%arg0: i32) -> (i32, i32, i32) {
    %c0_i32 = arith.constant 0 : i32
    %c0_i32_0 = arith.constant 0 : i32
    %c0_i32_1 = arith.constant 0 : i32
    return %arg0, %c0_i32, %c0_i32_0 : i32, i32, i32
  }
  func.func @transform_1(%arg0: i32) -> (i32, i32, i32) {
    %c0_i32 = arith.constant 0 : i32
    %c0_i32_0 = arith.constant 0 : i32
    %c0_i32_1 = arith.constant 0 : i32
    return %arg0, %c0_i32, %c0_i32_0 : i32, i32, i32
  }
}

module attributes {stable_mosaic.version = 11 : i64} {
  func.func @_matmul_kernel(%arg0: i32, %arg1: i32, %arg2: i32, %arg3: memref<16x32xf32, #tpu.memory_space<vmem>>, %arg4: memref<32x96xf32, #tpu.memory_space<vmem>>, %arg5: memref<16x96xf32, #tpu.memory_space<vmem>>, %arg6: memref<16x96xf32, #tpu.memory_space<vmem>>) attributes {dimension_semantics = [#tpu.dimension_semantics<parallel>, #tpu.dimension_semantics<parallel>, #tpu.dimension_semantics<arbitrary>], iteration_bounds = array<i64: 1, 1, 1>, scalar_prefetch = 0 : i64, scratch_operands = 1 : i64, tpu.core_type = #tpu.core_type<tc>, window_params = [{transform_indices = @transform_0, window_bounds = array<i64: 16, 32>}, {transform_indices = @transform_1, window_bounds = array<i64: 32, 96>}, {transform_indices = @transform_2, window_bounds = array<i64: 16, 96>}]} {
    %c0_i32 = arith.constant 0 : i32
    %0 = arith.cmpi eq, %arg2, %c0_i32 : i32
    %1 = arith.extui %0 : i1 to i32
    %c0_i32_0 = arith.constant 0 : i32
    %2 = arith.cmpi ne, %1, %c0_i32_0 : i32
    scf.if %2 {
      %cst_10 = arith.constant 0.000000e+00 : f32
      %12 = vector.broadcast %cst_10 : f32 to vector<16x96xf32>
      %c0_11 = arith.constant 0 : index
      %c0_12 = arith.constant 0 : index
      %13 = vector.load %arg6[%c0_11, %c0_12] : memref<16x96xf32, #tpu.memory_space<vmem>>, vector<16x96xf32>
      tpu.vector_store %arg6[%c0_11, %c0_12], %12 {strides = array<i32>} : memref<16x96xf32, #tpu.memory_space<vmem>>, vector<16x96xf32>,
    } else {
    }
    %c0 = arith.constant 0 : index
    %c0_1 = arith.constant 0 : index
    %3 = vector.load %arg6[%c0, %c0_1] : memref<16x96xf32, #tpu.memory_space<vmem>>, vector<16x96xf32>
    %c0_2 = arith.constant 0 : index
    %c0_3 = arith.constant 0 : index
    %4 = vector.load %arg3[%c0_2, %c0_3] : memref<16x32xf32, #tpu.memory_space<vmem>>, vector<16x32xf32>
    %c0_4 = arith.constant 0 : index
    %c0_5 = arith.constant 0 : index
    %5 = vector.load %arg4[%c0_4, %c0_5] : memref<32x96xf32, #tpu.memory_space<vmem>>, vector<32x96xf32>
    %cst = arith.constant dense<0.000000e+00> : vector<16x96xf32>
    %6 = tpu.matmul %4, %5, %cst {dimension_numbers = #tpu.dot_dimension_numbers<[1], [0], [0], [1], [0, 0, 1, 1], [], []>} : vector<16x32xf32>, vector<32x96xf32>, vector<16x96xf32> -> vector<16x96xf32>
    %7 = arith.addf %3, %6 : vector<16x96xf32>
    %c0_6 = arith.constant 0 : index
    %c0_7 = arith.constant 0 : index
    %8 = vector.load %arg6[%c0_6, %c0_7] : memref<16x96xf32, #tpu.memory_space<vmem>>, vector<16x96xf32>
    tpu.vector_store %arg6[%c0_6, %c0_7], %7 {strides = array<i32>} : memref<16x96xf32, #tpu.memory_space<vmem>>, vector<16x96xf32>,
    %c0_i32_8 = arith.constant 0 : i32
    %9 = arith.cmpi eq, %arg2, %c0_i32_8 : i32
    %10 = arith.extui %9 : i1 to i32
    %c0_i32_9 = arith.constant 0 : i32
    %11 = arith.cmpi ne, %10, %c0_i32_9 : i32
    scf.if %11 {
      %c0_10 = arith.constant 0 : index
      %c0_11 = arith.constant 0 : index
      %12 = vector.load %arg6[%c0_10, %c0_11] : memref<16x96xf32, #tpu.memory_space<vmem>>, vector<16x96xf32>
      %c0_12 = arith.constant 0 : index
      %c0_13 = arith.constant 0 : index
      %13 = vector.load %arg5[%c0_12, %c0_13] : memref<16x96xf32, #tpu.memory_space<vmem>>, vector<16x96xf32>
      tpu.vector_store %arg5[%c0_12, %c0_13], %12 {strides = array<i32>} : memref<16x96xf32, #tpu.memory_space<vmem>>, vector<16x96xf32>,
    } else {
    }
    return
  }
  func.func @transform_0(%arg0: i32, %arg1: i32, %arg2: i32) -> (i32, i32) {
    %c0_i32 = arith.constant 0 : i32
    return %arg0, %arg2 : i32, i32
  }
  func.func @transform_1(%arg0: i32, %arg1: i32, %arg2: i32) -> (i32, i32) {
    %c0_i32 = arith.constant 0 : i32
    return %arg2, %arg1 : i32, i32
  }
  func.func @transform_2(%arg0: i32, %arg1: i32, %arg2: i32) -> (i32, i32) {
    %c0_i32 = arith.constant 0 : i32
    return %arg0, %arg1 : i32, i32
  }
}

module attributes {stable_mosaic.version = 11 : i64} {
  func.func @_matmul_bias_kernel(%arg0: i32, %arg1: i32, %arg2: i32, %arg3: memref<16x32xf32, #tpu.memory_space<vmem>>, %arg4: memref<32x512xf32, #tpu.memory_space<vmem>>, %arg5: memref<1x512xf32, #tpu.memory_space<vmem>>, %arg6: memref<16x512xf32, #tpu.memory_space<vmem>>, %arg7: memref<16x512xf32, #tpu.memory_space<vmem>>) attributes {dimension_semantics = [#tpu.dimension_semantics<parallel>, #tpu.dimension_semantics<parallel>, #tpu.dimension_semantics<arbitrary>], iteration_bounds = array<i64: 1, 4, 1>, scalar_prefetch = 0 : i64, scratch_operands = 1 : i64, tpu.core_type = #tpu.core_type<tc>, window_params = [{transform_indices = @transform_0, window_bounds = array<i64: 16, 32>}, {transform_indices = @transform_1, window_bounds = array<i64: 32, 512>}, {transform_indices = @transform_2, window_bounds = array<i64: 1, 512>}, {transform_indices = @transform_3, window_bounds = array<i64: 16, 512>}]} {
    %c0_i32 = arith.constant 0 : i32
    %0 = arith.cmpi eq, %arg2, %c0_i32 : i32
    %1 = arith.extui %0 : i1 to i32
    %c0_i32_0 = arith.constant 0 : i32
    %2 = arith.cmpi ne, %1, %c0_i32_0 : i32
    scf.if %2 {
      %cst_10 = arith.constant 0.000000e+00 : f32
      %12 = vector.broadcast %cst_10 : f32 to vector<16x512xf32>
      %c0_11 = arith.constant 0 : index
      %c0_12 = arith.constant 0 : index
      %13 = vector.load %arg7[%c0_11, %c0_12] : memref<16x512xf32, #tpu.memory_space<vmem>>, vector<16x512xf32>
      tpu.vector_store %arg7[%c0_11, %c0_12], %12 {strides = array<i32>} : memref<16x512xf32, #tpu.memory_space<vmem>>, vector<16x512xf32>,
    } else {
    }
    %c0 = arith.constant 0 : index
    %c0_1 = arith.constant 0 : index
    %3 = vector.load %arg7[%c0, %c0_1] : memref<16x512xf32, #tpu.memory_space<vmem>>, vector<16x512xf32>
    %c0_2 = arith.constant 0 : index
    %c0_3 = arith.constant 0 : index
    %4 = vector.load %arg3[%c0_2, %c0_3] : memref<16x32xf32, #tpu.memory_space<vmem>>, vector<16x32xf32>
    %c0_4 = arith.constant 0 : index
    %c0_5 = arith.constant 0 : index
    %5 = vector.load %arg4[%c0_4, %c0_5] : memref<32x512xf32, #tpu.memory_space<vmem>>, vector<32x512xf32>
    %cst = arith.constant dense<0.000000e+00> : vector<16x512xf32>
    %6 = tpu.matmul %4, %5, %cst {dimension_numbers = #tpu.dot_dimension_numbers<[1], [0], [0], [1], [0, 0, 1, 1], [], []>} : vector<16x32xf32>, vector<32x512xf32>, vector<16x512xf32> -> vector<16x512xf32>
    %7 = arith.addf %3, %6 : vector<16x512xf32>
    %c0_6 = arith.constant 0 : index
    %c0_7 = arith.constant 0 : index
    %8 = vector.load %arg7[%c0_6, %c0_7] : memref<16x512xf32, #tpu.memory_space<vmem>>, vector<16x512xf32>
    tpu.vector_store %arg7[%c0_6, %c0_7], %7 {strides = array<i32>} : memref<16x512xf32, #tpu.memory_space<vmem>>, vector<16x512xf32>,
    %c0_i32_8 = arith.constant 0 : i32
    %9 = arith.cmpi eq, %arg2, %c0_i32_8 : i32
    %10 = arith.extui %9 : i1 to i32
    %c0_i32_9 = arith.constant 0 : i32
    %11 = arith.cmpi ne, %10, %c0_i32_9 : i32
    scf.if %11 {
      %c0_10 = arith.constant 0 : index
      %c0_11 = arith.constant 0 : index
      %12 = vector.load %arg7[%c0_10, %c0_11] : memref<16x512xf32, #tpu.memory_space<vmem>>, vector<16x512xf32>
      %c0_12 = arith.constant 0 : index
      %c0_13 = arith.constant 0 : index
      %13 = vector.load %arg5[%c0_12, %c0_13] : memref<1x512xf32, #tpu.memory_space<vmem>>, vector<1x512xf32>
      %14 = vector.broadcast %13 : vector<1x512xf32> to vector<16x512xf32>
      %15 = arith.addf %12, %14 : vector<16x512xf32>
      %cst_14 = arith.constant 0.000000e+00 : f32
      %16 = vector.broadcast %cst_14 : f32 to vector<16x512xf32>
      %17 = arith.maximumf %15, %16 : vector<16x512xf32>
      %c0_15 = arith.constant 0 : index
      %c0_16 = arith.constant 0 : index
      %18 = vector.load %arg6[%c0_15, %c0_16] : memref<16x512xf32, #tpu.memory_space<vmem>>, vector<16x512xf32>
      tpu.vector_store %arg6[%c0_15, %c0_16], %17 {strides = array<i32>} : memref<16x512xf32, #tpu.memory_space<vmem>>, vector<16x512xf32>,
    } else {
    }
    return
  }
  func.func @transform_0(%arg0: i32, %arg1: i32, %arg2: i32) -> (i32, i32) {
    %c0_i32 = arith.constant 0 : i32
    return %arg0, %arg2 : i32, i32
  }
  func.func @transform_1(%arg0: i32, %arg1: i32, %arg2: i32) -> (i32, i32) {
    %c0_i32 = arith.constant 0 : i32
    return %arg2, %arg1 : i32, i32
  }
  func.func @transform_2(%arg0: i32, %arg1: i32, %arg2: i32) -> (i32, i32) {
    %c0_i32 = arith.constant 0 : i32
    %c0_i32_0 = arith.constant 0 : i32
    return %c0_i32, %arg1 : i32, i32
  }
  func.func @transform_3(%arg0: i32, %arg1: i32, %arg2: i32) -> (i32, i32) {
    %c0_i32 = arith.constant 0 : i32
    return %arg0, %arg1 : i32, i32
  }
}

module attributes {stable_mosaic.version = 11 : i64} {
  func.func @_matmul_bias_kernel(%arg0: i32, %arg1: i32, %arg2: i32, %arg3: memref<16x512xf32, #tpu.memory_space<vmem>>, %arg4: memref<512x32xf32, #tpu.memory_space<vmem>>, %arg5: memref<1x32xf32, #tpu.memory_space<vmem>>, %arg6: memref<16x32xf32, #tpu.memory_space<vmem>>, %arg7: memref<16x32xf32, #tpu.memory_space<vmem>>) attributes {dimension_semantics = [#tpu.dimension_semantics<parallel>, #tpu.dimension_semantics<parallel>, #tpu.dimension_semantics<arbitrary>], iteration_bounds = array<i64: 1, 1, 4>, scalar_prefetch = 0 : i64, scratch_operands = 1 : i64, tpu.core_type = #tpu.core_type<tc>, window_params = [{transform_indices = @transform_0, window_bounds = array<i64: 16, 512>}, {transform_indices = @transform_1, window_bounds = array<i64: 512, 32>}, {transform_indices = @transform_2, window_bounds = array<i64: 1, 32>}, {transform_indices = @transform_3, window_bounds = array<i64: 16, 32>}]} {
    %c0_i32 = arith.constant 0 : i32
    %0 = arith.cmpi eq, %arg2, %c0_i32 : i32
    %1 = arith.extui %0 : i1 to i32
    %c0_i32_0 = arith.constant 0 : i32
    %2 = arith.cmpi ne, %1, %c0_i32_0 : i32
    scf.if %2 {
      %cst_9 = arith.constant 0.000000e+00 : f32
      %12 = vector.broadcast %cst_9 : f32 to vector<16x32xf32>
      %c0_10 = arith.constant 0 : index
      %c0_11 = arith.constant 0 : index
      %13 = vector.load %arg7[%c0_10, %c0_11] : memref<16x32xf32, #tpu.memory_space<vmem>>, vector<16x32xf32>
      tpu.vector_store %arg7[%c0_10, %c0_11], %12 {strides = array<i32>} : memref<16x32xf32, #tpu.memory_space<vmem>>, vector<16x32xf32>,
    } else {
    }
    %c0 = arith.constant 0 : index
    %c0_1 = arith.constant 0 : index
    %3 = vector.load %arg7[%c0, %c0_1] : memref<16x32xf32, #tpu.memory_space<vmem>>, vector<16x32xf32>
    %c0_2 = arith.constant 0 : index
    %c0_3 = arith.constant 0 : index
    %4 = vector.load %arg3[%c0_2, %c0_3] : memref<16x512xf32, #tpu.memory_space<vmem>>, vector<16x512xf32>
    %c0_4 = arith.constant 0 : index
    %c0_5 = arith.constant 0 : index
    %5 = vector.load %arg4[%c0_4, %c0_5] : memref<512x32xf32, #tpu.memory_space<vmem>>, vector<512x32xf32>
    %cst = arith.constant dense<0.000000e+00> : vector<16x32xf32>
    %6 = tpu.matmul %4, %5, %cst {dimension_numbers = #tpu.dot_dimension_numbers<[1], [0], [0], [1], [0, 0, 1, 1], [], []>} : vector<16x512xf32>, vector<512x32xf32>, vector<16x32xf32> -> vector<16x32xf32>
    %7 = arith.addf %3, %6 : vector<16x32xf32>
    %c0_6 = arith.constant 0 : index
    %c0_7 = arith.constant 0 : index
    %8 = vector.load %arg7[%c0_6, %c0_7] : memref<16x32xf32, #tpu.memory_space<vmem>>, vector<16x32xf32>
    tpu.vector_store %arg7[%c0_6, %c0_7], %7 {strides = array<i32>} : memref<16x32xf32, #tpu.memory_space<vmem>>, vector<16x32xf32>,
    %c3_i32 = arith.constant 3 : i32
    %9 = arith.cmpi eq, %arg2, %c3_i32 : i32
    %10 = arith.extui %9 : i1 to i32
    %c0_i32_8 = arith.constant 0 : i32
    %11 = arith.cmpi ne, %10, %c0_i32_8 : i32
    scf.if %11 {
      %c0_9 = arith.constant 0 : index
      %c0_10 = arith.constant 0 : index
      %12 = vector.load %arg7[%c0_9, %c0_10] : memref<16x32xf32, #tpu.memory_space<vmem>>, vector<16x32xf32>
      %c0_11 = arith.constant 0 : index
      %c0_12 = arith.constant 0 : index
      %13 = vector.load %arg5[%c0_11, %c0_12] : memref<1x32xf32, #tpu.memory_space<vmem>>, vector<1x32xf32>
      %14 = vector.broadcast %13 : vector<1x32xf32> to vector<16x32xf32>
      %15 = arith.addf %12, %14 : vector<16x32xf32>
      %c0_13 = arith.constant 0 : index
      %c0_14 = arith.constant 0 : index
      %16 = vector.load %arg6[%c0_13, %c0_14] : memref<16x32xf32, #tpu.memory_space<vmem>>, vector<16x32xf32>
      tpu.vector_store %arg6[%c0_13, %c0_14], %15 {strides = array<i32>} : memref<16x32xf32, #tpu.memory_space<vmem>>, vector<16x32xf32>,
    } else {
    }
    return
  }
  func.func @transform_0(%arg0: i32, %arg1: i32, %arg2: i32) -> (i32, i32) {
    %c0_i32 = arith.constant 0 : i32
    return %arg0, %arg2 : i32, i32
  }
  func.func @transform_1(%arg0: i32, %arg1: i32, %arg2: i32) -> (i32, i32) {
    %c0_i32 = arith.constant 0 : i32
    return %arg2, %arg1 : i32, i32
  }
  func.func @transform_2(%arg0: i32, %arg1: i32, %arg2: i32) -> (i32, i32) {
    %c0_i32 = arith.constant 0 : i32
    %c0_i32_0 = arith.constant 0 : i32
    return %c0_i32, %arg1 : i32, i32
  }
  func.func @transform_3(%arg0: i32, %arg1: i32, %arg2: i32) -> (i32, i32) {
    %c0_i32 = arith.constant 0 : i32
    return %arg0, %arg1 : i32, i32
  }
}

module attributes {stable_mosaic.version = 11 : i64} {
  func.func @_add_layernorm_kernel(%arg0: i32, %arg1: memref<16x32xf32, #tpu.memory_space<vmem>>, %arg2: memref<16x32xf32, #tpu.memory_space<vmem>>, %arg3: memref<1x32xf32, #tpu.memory_space<vmem>>, %arg4: memref<1x32xf32, #tpu.memory_space<vmem>>, %arg5: memref<16x32xf32, #tpu.memory_space<vmem>>) attributes {dimension_semantics = [#tpu.dimension_semantics<parallel>], iteration_bounds = array<i64: 1>, scalar_prefetch = 0 : i64, scratch_operands = 0 : i64, tpu.core_type = #tpu.core_type<tc>, window_params = [{transform_indices = @transform_0, window_bounds = array<i64: 16, 32>}, {transform_indices = @transform_1, window_bounds = array<i64: 16, 32>}, {pipeline_mode = #tpu.pipeline_mode<synchronous>, transform_indices = @transform_2, window_bounds = array<i64: 1, 32>}, {pipeline_mode = #tpu.pipeline_mode<synchronous>, transform_indices = @transform_3, window_bounds = array<i64: 1, 32>}, {transform_indices = @transform_4, window_bounds = array<i64: 16, 32>}]} {
    %c0 = arith.constant 0 : index
    %c0_0 = arith.constant 0 : index
    %0 = vector.load %arg1[%c0, %c0_0] : memref<16x32xf32, #tpu.memory_space<vmem>>, vector<16x32xf32>
    %c0_1 = arith.constant 0 : index
    %c0_2 = arith.constant 0 : index
    %1 = vector.load %arg2[%c0_1, %c0_2] : memref<16x32xf32, #tpu.memory_space<vmem>>, vector<16x32xf32>
    %2 = arith.addf %0, %1 : vector<16x32xf32>
    %cst = arith.constant dense<0.000000e+00> : vector<16xf32>
    %3 = vector.multi_reduction <add>, %2, %cst [1] : vector<16x32xf32> to vector<16xf32>
    %4 = vector.shape_cast %3 : vector<16xf32> to vector<16x1xf32>
    %cst_3 = arith.constant 3.200000e+01 : f32
    %5 = vector.broadcast %cst_3 : f32 to vector<16x1xf32>
    %6 = arith.divf %4, %5 : vector<16x1xf32>
    %7 = vector.broadcast %6 : vector<16x1xf32> to vector<16x32xf32>
    %8 = arith.subf %2, %7 : vector<16x32xf32>
    %9 = arith.mulf %8, %8 : vector<16x32xf32>
    %cst_4 = arith.constant dense<0.000000e+00> : vector<16xf32>
    %10 = vector.multi_reduction <add>, %9, %cst_4 [1] : vector<16x32xf32> to vector<16xf32>
    %11 = vector.shape_cast %10 : vector<16xf32> to vector<16x1xf32>
    %cst_5 = arith.constant 3.200000e+01 : f32
    %12 = vector.broadcast %cst_5 : f32 to vector<16x1xf32>
    %13 = arith.divf %11, %12 : vector<16x1xf32>
    %14 = vector.broadcast %6 : vector<16x1xf32> to vector<16x32xf32>
    %15 = arith.subf %2, %14 : vector<16x32xf32>
    %cst_6 = arith.constant 9.99999974E-6 : f32
    %16 = vector.broadcast %cst_6 : f32 to vector<16x1xf32>
    %17 = arith.addf %13, %16 : vector<16x1xf32>
    %18 = math.rsqrt %17 : vector<16x1xf32>
    %19 = vector.broadcast %18 : vector<16x1xf32> to vector<16x32xf32>
    %20 = arith.mulf %15, %19 : vector<16x32xf32>
    %c0_7 = arith.constant 0 : index
    %c0_8 = arith.constant 0 : index
    %21 = vector.load %arg3[%c0_7, %c0_8] : memref<1x32xf32, #tpu.memory_space<vmem>>, vector<1x32xf32>
    %22 = vector.broadcast %21 : vector<1x32xf32> to vector<16x32xf32>
    %23 = arith.mulf %20, %22 : vector<16x32xf32>
    %c0_9 = arith.constant 0 : index
    %c0_10 = arith.constant 0 : index
    %24 = vector.load %arg4[%c0_9, %c0_10] : memref<1x32xf32, #tpu.memory_space<vmem>>, vector<1x32xf32>
    %25 = vector.broadcast %24 : vector<1x32xf32> to vector<16x32xf32>
    %26 = arith.addf %23, %25 : vector<16x32xf32>
    %c0_11 = arith.constant 0 : index
    %c0_12 = arith.constant 0 : index
    %27 = vector.load %arg5[%c0_11, %c0_12] : memref<16x32xf32, #tpu.memory_space<vmem>>, vector<16x32xf32>
    tpu.vector_store %arg5[%c0_11, %c0_12], %26 {strides = array<i32>} : memref<16x32xf32, #tpu.memory_space<vmem>>, vector<16x32xf32>,
    return
  }
  func.func @transform_0(%arg0: i32) -> (i32, i32) {
    %c0_i32 = arith.constant 0 : i32
    %c0_i32_0 = arith.constant 0 : i32
    return %arg0, %c0_i32 : i32, i32
  }
  func.func @transform_1(%arg0: i32) -> (i32, i32) {
    %c0_i32 = arith.constant 0 : i32
    %c0_i32_0 = arith.constant 0 : i32
    return %arg0, %c0_i32 : i32, i32
  }
  func.func @transform_2(%arg0: i32) -> (i32, i32) {
    %c0_i32 = arith.constant 0 : i32
    %c0_i32_0 = arith.constant 0 : i32
    %c0_i32_1 = arith.constant 0 : i32
    return %c0_i32, %c0_i32_0 : i32, i32
  }
  func.func @transform_3(%arg0: i32) -> (i32, i32) {
    %c0_i32 = arith.constant 0 : i32
    %c0_i32_0 = arith.constant 0 : i32
    %c0_i32_1 = arith.constant 0 : i32
    return %c0_i32, %c0_i32_0 : i32, i32
  }
  func.func @transform_4(%arg0: i32) -> (i32, i32) {
    %c0_i32 = arith.constant 0 : i32
    %c0_i32_0 = arith.constant 0 : i32
    return %arg0, %c0_i32 : i32, i32
  }
}

</mosaic_0001>

<llo_original>
// kernel: encoder_block.9
$region0: #{encoder_block.9}
  #allocation0 [shape = 'u32[]', space=smem, size = 0x4, offset = 0x4, fixed_abs, tag = 'smem constant byte address 0x4 - core index']
  #allocation1 [shape = 'u32[144,128]{1,0:T(1,128)}', space=vmem, size = 0x12000, scoped, tag = 'internal scratch']
  #allocation2 [shape = 'f32[16,32]{1,0:T(8,128)}', space=vmem, size = 0x2000, scoped, tag = 'scratch operand']
  %s0 = inlined_call_operand.vmem [shape: f32[16,32], index: 0, kind: input, shape index: {}]
  %s1 = inlined_call_operand.vmem [shape: f32[32,32], index: 1, kind: input, shape index: {}]
  %s2 = inlined_call_operand.vmem [shape: f32[16,32], index: 2, kind: output, shape index: {}]
  %s3 = sld [smem:[#allocation0]]
  $region26: #{encoder_block.9} parent=0
    _
  %s5 = ssub.s32 1, %s3
  %s6 = scalar_select 0, %s5, %s3
  // Predicated region
  $region2: #{encoder_block.9} parent=0 // pred_check
    _
  $region3: #{encoder_block.9} parent=0 // pred_check_branch
    %8 = sbr.rel (0) target = $region5
  $region4: #{encoder_block.9} parent=0 // pred_region
    _
  $region5: #{encoder_block.9} parent=0 // pred_fallthru
    _
  // Predicated region
  $region6: #{encoder_block.9} parent=0 // pred_check
    _
  $region7: #{encoder_block.9} parent=0 // pred_check_branch
    %10 = sbr.rel (0) target = $region9
  $region8: #{encoder_block.9} parent=0 // pred_region
    _
  $region9: #{encoder_block.9} parent=0 // pred_fallthru
    _
  %p11 = scmp.eq.s32.totalorder 0, 0
  // Predicated region
  $region10: #{encoder_block.9} parent=0 // pred_check
    %p12 = pneg %p11
  $region11: #{encoder_block.9} parent=0 // pred_check_branch
    %14 = sbr.rel (%p12) target = $region13
  $region12: #{encoder_block.9} parent=0 // pred_region
    %vm15 = vcmask 261120
    %16 = vst.msk [vmem:[#allocation2] sm:$0xff] %vm15, 0.0
    %17 = vst.msk [vmem:[#allocation2 + $0x8] sm:$0xff] %vm15, 0.0
  $region13: #{encoder_block.9} parent=0 // pred_fallthru
    _
  %v18 = vld [vmem:[#allocation2] sm:$0xff]
  %v19 = vld [vmem:[#allocation2 + $0x8] sm:$0xff]
  %v20 = vld [vmem:[%s0] sm:$0xff]
  %v21 = vld [vmem:[%s0 + $0x8] sm:$0xff]
  %v22 = vld [vmem:[%s1] sm:$0xff]
  %v23 = vld [vmem:[%s1 + $0x8] sm:$0xff]
  %v24 = vld [vmem:[%s1 + $0x10] sm:$0xff]
  %v25 = vld [vmem:[%s1 + $0x18] sm:$0xff]
  %vm26 = vcmask 261120
  %v28 = vsel %vm26, %v20, 0
  %v31 = vsel %vm26, %v21, 0
  %33 = vmatprep.subr.mxu0 0.0
  %34 = vmatpush1.msra.mxu0 %v22
  %35 = vmatprep.subr.mxu0 0.0
  %36 = vmatpush1.msra.mxu0 %v23
  %37 = vmatprep.subr.mxu0 0.0
  %38 = vmatpush1.msra.mxu0 %v24
  %39 = vmatprep.subr.mxu0 0.0
  %40 = vmatpush1.msra.mxu0 %v25
  %41 = vmatprep.subr.mxu0 0.0
  %42 = vmatpush1.msra.mxu0 0.0
  %43 = vmatprep.subr.mxu0 0.0
  %44 = vmatpush1.msra.mxu0 0.0
  %45 = vmatprep.subr.mxu0 0.0
  %46 = vmatpush1.msra.mxu0 0.0
  %47 = vmatprep.subr.mxu0 0.0
  %48 = vmatpush1.msra.mxu0 0.0
  %49 = vmatprep.subr.mxu0 0.0
  %50 = vmatpush1.msra.mxu0 0.0
  %51 = vmatprep.subr.mxu0 0.0
  %52 = vmatpush1.msra.mxu0 0.0
  %53 = vmatprep.subr.mxu0 0.0
  %54 = vmatpush1.msra.mxu0 0.0
  %55 = vmatprep.subr.mxu0 0.0
  %56 = vmatpush1.msra.mxu0 0.0
  %57 = vmatprep.subr.mxu0 0.0
  %58 = vmatpush1.msra.mxu0 0.0
  %59 = vmatprep.subr.mxu0 0.0
  %60 = vmatpush1.msra.mxu0 0.0
  %61 = vmatprep.subr.mxu0 0.0
  %62 = vmatpush1.msra.mxu0 0.0
  %63 = vmatprep.subr.mxu0 0.0
  %64 = vmatpush1.msra.mxu0 0.0
  %65 = vmatprep.subr.mxu0 0.0
  %66 = vmatpush1.msra.mxu0 0.0
  %67 = vmatprep.subr.mxu0 0.0
  %68 = vmatpush1.msra.mxu0 0.0
  %69 = vmatprep.subr.mxu0 0.0
  %70 = vmatpush1.msra.mxu0 0.0
  %71 = vmatprep.subr.mxu0 0.0
  %72 = vmatpush1.msra.mxu0 0.0
  %73 = vmatprep.subr.mxu0 0.0
  %74 = vmatpush1.msra.mxu0 0.0
  %75 = vmatprep.subr.mxu0 0.0
  %76 = vmatpush1.msra.mxu0 0.0
  %77 = vmatprep.subr.mxu0 0.0
  %78 = vmatpush1.msra.mxu0 0.0
  %79 = vmatprep.subr.mxu0 0.0
  %80 = vmatpush1.msra.mxu0 0.0
  %81 = vmatprep.subr.mxu0 0.0
  %82 = vmatpush1.msra.mxu0 0.0
  %83 = vmatprep.subr.mxu0 0.0
  %84 = vmatpush1.msra.mxu0 0.0
  %85 = vmatprep.subr.mxu0 0.0
  %86 = vmatpush1.msra.mxu0 0.0
  %87 = vmatprep.subr.mxu0 0.0
  %88 = vmatpush1.msra.mxu0 0.0
  %89 = vmatprep.subr.mxu0 0.0
  %90 = vmatpush1.msra.mxu0 0.0
  %91 = vmatprep.subr.mxu0 0.0
  %92 = vmatpush1.msra.mxu0 0.0
  %93 = vmatprep.subr.mxu0 0.0
  %94 = vmatpush1.msra.mxu0 0.0
  %95 = vmatprep.subr.mxu0 0.0
  %96 = vmatpush1.msra.mxu0 0.0
  %97 = vmatprep.mubr.f32.mxu0 0.0
  %98 = vmatmul.mubr.f32.gmra.mrb[0].mxu0 %v28
  %v99 = vpop.f32.mrb[0].mxu0
  %v100 = vadd.f32 0.0, %v99
  %v101 = vpop.f32.mrb[0].mxu0
  %102 = vmatprep.mubr.f32.mxu0 0.0
  %103 = vmatmul.mubr.f32.gmra.mrb[0].mxu0 %v31
  %v104 = vpop.f32.mrb[0].mxu0
  %v105 = vadd.f32 0.0, %v104
  %v106 = vpop.f32.mrb[0].mxu0
  %107 = vdwg.mxu0
  %v108 = vadd.f32 %v18, %v100
  %v109 = vadd.f32 %v19, %v105
  %110 = vst.msk [vmem:[#allocation2] sm:$0xff] %vm26, %v108
  %111 = vst.msk [vmem:[#allocation2 + $0x8] sm:$0xff] %vm26, %v109
  // Predicated region
  $region14: #{encoder_block.9} parent=0 // pred_check
    %p112 = pneg %p11
  $region15: #{encoder_block.9} parent=0 // pred_check_branch
    %114 = sbr.rel (%p112) target = $region17
  $region16: #{encoder_block.9} parent=0 // pred_region
    %v115 = vld [vmem:[#allocation2] sm:$0xff]
    %v116 = vld [vmem:[#allocation2 + $0x8] sm:$0xff]
    %117 = vst.msk [vmem:[%s2] sm:$0xff] %vm26, %v115
    %118 = vst.msk [vmem:[%s2 + $0x8] sm:$0xff] %vm26, %v116
  $region17: #{encoder_block.9} parent=0 // pred_fallthru
    _
  // Predicated region
  $region18: #{encoder_block.9} parent=0 // pred_check
    _
  $region19: #{encoder_block.9} parent=0 // pred_check_branch
    %120 = sbr.rel (0) target = $region21
  $region20: #{encoder_block.9} parent=0 // pred_region
    _
  $region21: #{encoder_block.9} parent=0 // pred_fallthru
    _
  // Predicated region
  $region22: #{encoder_block.9} parent=0 // pred_check
    _
  $region23: #{encoder_block.9} parent=0 // pred_check_branch
    %122 = sbr.rel (0) target = $region25
  $region24: #{encoder_block.9} parent=0 // pred_region
    _
  $region25: #{encoder_block.9} parent=0 // pred_fallthru
    _

// kernel: encoder_block.7
$region0: #{encoder_block.7}
  #allocation0 [shape = 'u32[]', space=smem, size = 0x4, offset = 0x4, fixed_abs, tag = 'smem constant byte address 0x4 - core index']
  #allocation1 [shape = 'u32[144,128]{1,0:T(1,128)}', space=vmem, size = 0x12000, scoped, tag = 'internal scratch']
  #allocation2 [shape = 'f32[16,96]{1,0:T(8,128)}', space=vmem, size = 0x2000, scoped, tag = 'scratch operand']
  %s0 = inlined_call_operand.vmem [shape: f32[16,32], index: 0, kind: input, shape index: {}]
  %s1 = inlined_call_operand.vmem [shape: f32[32,96], index: 1, kind: input, shape index: {}]
  %s2 = inlined_call_operand.vmem [shape: f32[16,96], index: 2, kind: output, shape index: {}]
  %s3 = sld [smem:[#allocation0]]
  $region26: #{encoder_block.7} parent=0
    _
  %s5 = ssub.s32 1, %s3
  %s6 = scalar_select 0, %s5, %s3
  // Predicated region
  $region2: #{encoder_block.7} parent=0 // pred_check
    _
  $region3: #{encoder_block.7} parent=0 // pred_check_branch
    %8 = sbr.rel (0) target = $region5
  $region4: #{encoder_block.7} parent=0 // pred_region
    _
  $region5: #{encoder_block.7} parent=0 // pred_fallthru
    _
  // Predicated region
  $region6: #{encoder_block.7} parent=0 // pred_check
    _
  $region7: #{encoder_block.7} parent=0 // pred_check_branch
    %10 = sbr.rel (0) target = $region9
  $region8: #{encoder_block.7} parent=0 // pred_region
    _
  $region9: #{encoder_block.7} parent=0 // pred_fallthru
    _
  %p11 = scmp.eq.s32.totalorder 0, 0
  // Predicated region
  $region10: #{encoder_block.7} parent=0 // pred_check
    %p12 = pneg %p11
  $region11: #{encoder_block.7} parent=0 // pred_check_branch
    %14 = sbr.rel (%p12) target = $region13
  $region12: #{encoder_block.7} parent=0 // pred_region
    %vm15 = vcmask 785408
    %16 = vst.msk [vmem:[#allocation2] sm:$0xff] %vm15, 0.0
    %17 = vst.msk [vmem:[#allocation2 + $0x8] sm:$0xff] %vm15, 0.0
  $region13: #{encoder_block.7} parent=0 // pred_fallthru
    _
  %v18 = vld [vmem:[#allocation2] sm:$0xff]
  %v19 = vld [vmem:[#allocation2 + $0x8] sm:$0xff]
  %v20 = vld [vmem:[%s0] sm:$0xff]
  %v21 = vld [vmem:[%s0 + $0x8] sm:$0xff]
  %v22 = vld [vmem:[%s1] sm:$0xff]
  %v23 = vld [vmem:[%s1 + $0x8] sm:$0xff]
  %v24 = vld [vmem:[%s1 + $0x10] sm:$0xff]
  %v25 = vld [vmem:[%s1 + $0x18] sm:$0xff]
  %vm26 = vcmask 261120
  %v28 = vsel %vm26, %v20, 0
  %v31 = vsel %vm26, %v21, 0
  %33 = vmatprep.subr.mxu0 0.0
  %34 = vmatpush1.msra.mxu0 %v22
  %35 = vmatprep.subr.mxu0 0.0
  %36 = vmatpush1.msra.mxu0 %v23
  %37 = vmatprep.subr.mxu0 0.0
  %38 = vmatpush1.msra.mxu0 %v24
  %39 = vmatprep.subr.mxu0 0.0
  %40 = vmatpush1.msra.mxu0 %v25
  %41 = vmatprep.subr.mxu0 0.0
  %42 = vmatpush1.msra.mxu0 0.0
  %43 = vmatprep.subr.mxu0 0.0
  %44 = vmatpush1.msra.mxu0 0.0
  %45 = vmatprep.subr.mxu0 0.0
  %46 = vmatpush1.msra.mxu0 0.0
  %47 = vmatprep.subr.mxu0 0.0
  %48 = vmatpush1.msra.mxu0 0.0
  %49 = vmatprep.subr.mxu0 0.0
  %50 = vmatpush1.msra.mxu0 0.0
  %51 = vmatprep.subr.mxu0 0.0
  %52 = vmatpush1.msra.mxu0 0.0
  %53 = vmatprep.subr.mxu0 0.0
  %54 = vmatpush1.msra.mxu0 0.0
  %55 = vmatprep.subr.mxu0 0.0
  %56 = vmatpush1.msra.mxu0 0.0
  %57 = vmatprep.subr.mxu0 0.0
  %58 = vmatpush1.msra.mxu0 0.0
  %59 = vmatprep.subr.mxu0 0.0
  %60 = vmatpush1.msra.mxu0 0.0
  %61 = vmatprep.subr.mxu0 0.0
  %62 = vmatpush1.msra.mxu0 0.0
  %63 = vmatprep.subr.mxu0 0.0
  %64 = vmatpush1.msra.mxu0 0.0
  %65 = vmatprep.subr.mxu0 0.0
  %66 = vmatpush1.msra.mxu0 0.0
  %67 = vmatprep.subr.mxu0 0.0
  %68 = vmatpush1.msra.mxu0 0.0
  %69 = vmatprep.subr.mxu0 0.0
  %70 = vmatpush1.msra.mxu0 0.0
  %71 = vmatprep.subr.mxu0 0.0
  %72 = vmatpush1.msra.mxu0 0.0
  %73 = vmatprep.subr.mxu0 0.0
  %74 = vmatpush1.msra.mxu0 0.0
  %75 = vmatprep.subr.mxu0 0.0
  %76 = vmatpush1.msra.mxu0 0.0
  %77 = vmatprep.subr.mxu0 0.0
  %78 = vmatpush1.msra.mxu0 0.0
  %79 = vmatprep.subr.mxu0 0.0
  %80 = vmatpush1.msra.mxu0 0.0
  %81 = vmatprep.subr.mxu0 0.0
  %82 = vmatpush1.msra.mxu0 0.0
  %83 = vmatprep.subr.mxu0 0.0
  %84 = vmatpush1.msra.mxu0 0.0
  %85 = vmatprep.subr.mxu0 0.0
  %86 = vmatpush1.msra.mxu0 0.0
  %87 = vmatprep.subr.mxu0 0.0
  %88 = vmatpush1.msra.mxu0 0.0
  %89 = vmatprep.subr.mxu0 0.0
  %90 = vmatpush1.msra.mxu0 0.0
  %91 = vmatprep.subr.mxu0 0.0
  %92 = vmatpush1.msra.mxu0 0.0
  %93 = vmatprep.subr.mxu0 0.0
  %94 = vmatpush1.msra.mxu0 0.0
  %95 = vmatprep.subr.mxu0 0.0
  %96 = vmatpush1.msra.mxu0 0.0
  %97 = vmatprep.mubr.f32.mxu0 0.0
  %98 = vmatmul.mubr.f32.gmra.mrb[0].mxu0 %v28
  %v99 = vpop.f32.mrb[0].mxu0
  %v100 = vadd.f32 0.0, %v99
  %v101 = vpop.f32.mrb[0].mxu0
  %102 = vmatprep.mubr.f32.mxu0 0.0
  %103 = vmatmul.mubr.f32.gmra.mrb[0].mxu0 %v31
  %v104 = vpop.f32.mrb[0].mxu0
  %v105 = vadd.f32 0.0, %v104
  %v106 = vpop.f32.mrb[0].mxu0
  %107 = vdwg.mxu0
  %v108 = vadd.f32 %v18, %v100
  %v109 = vadd.f32 %v19, %v105
  %vm110 = vcmask 785408
  %111 = vst.msk [vmem:[#allocation2] sm:$0xff] %vm110, %v108
  %112 = vst.msk [vmem:[#allocation2 + $0x8] sm:$0xff] %vm110, %v109
  // Predicated region
  $region14: #{encoder_block.7} parent=0 // pred_check
    %p113 = pneg %p11
  $region15: #{encoder_block.7} parent=0 // pred_check_branch
    %115 = sbr.rel (%p113) target = $region17
  $region16: #{encoder_block.7} parent=0 // pred_region
    %v116 = vld [vmem:[#allocation2] sm:$0xff]
    %v117 = vld [vmem:[#allocation2 + $0x8] sm:$0xff]
    %118 = vst.msk [vmem:[%s2] sm:$0xff] %vm110, %v116
    %119 = vst.msk [vmem:[%s2 + $0x8] sm:$0xff] %vm110, %v117
  $region17: #{encoder_block.7} parent=0 // pred_fallthru
    _
  // Predicated region
  $region18: #{encoder_block.7} parent=0 // pred_check
    _
  $region19: #{encoder_block.7} parent=0 // pred_check_branch
    %121 = sbr.rel (0) target = $region21
  $region20: #{encoder_block.7} parent=0 // pred_region
    _
  $region21: #{encoder_block.7} parent=0 // pred_fallthru
    _
  // Predicated region
  $region22: #{encoder_block.7} parent=0 // pred_check
    _
  $region23: #{encoder_block.7} parent=0 // pred_check_branch
    %123 = sbr.rel (0) target = $region25
  $region24: #{encoder_block.7} parent=0 // pred_region
    _
  $region25: #{encoder_block.7} parent=0 // pred_fallthru
    _

// kernel: encoder_block.10
$region0: #{encoder_block.10}
  #allocation0 [shape = 'u32[]', space=smem, size = 0x4, offset = 0x4, fixed_abs, tag = 'smem constant byte address 0x4 - core index']
  #allocation1 [shape = 'u32[144,128]{1,0:T(1,128)}', space=vmem, size = 0x12000, scoped, tag = 'internal scratch']
  %s0 = inlined_call_operand.vmem [shape: f32[16,32], index: 0, kind: input, shape index: {}]
  %s1 = inlined_call_operand.vmem [shape: f32[16,32], index: 1, kind: input, shape index: {}]
  %s2 = inlined_call_operand.vmem [shape: f32[1,32], index: 2, kind: input, shape index: {}]
  %s3 = inlined_call_operand.vmem [shape: f32[1,32], index: 3, kind: input, shape index: {}]
  %s4 = inlined_call_operand.vmem [shape: f32[16,32], index: 4, kind: output, shape index: {}]
  %s5 = sld [smem:[#allocation0]]
  $region26: #{encoder_block.10} parent=0
    _
  %s7 = ssub.s32 1, %s5
  %s8 = scalar_select 0, %s7, %s5
  // Predicated region
  $region2: #{encoder_block.10} parent=0 // pred_check
    _
  $region3: #{encoder_block.10} parent=0 // pred_check_branch
    %10 = sbr.rel (0) target = $region5
  $region4: #{encoder_block.10} parent=0 // pred_region
    _
  $region5: #{encoder_block.10} parent=0 // pred_fallthru
    _
  // Predicated region
  $region6: #{encoder_block.10} parent=0 // pred_check
    _
  $region7: #{encoder_block.10} parent=0 // pred_check_branch
    %12 = sbr.rel (0) target = $region9
  $region8: #{encoder_block.10} parent=0 // pred_region
    _
  $region9: #{encoder_block.10} parent=0 // pred_fallthru
    _
  // Predicated region
  $region10: #{encoder_block.10} parent=0 // pred_check
    _
  $region11: #{encoder_block.10} parent=0 // pred_check_branch
    %14 = sbr.rel (0) target = $region13
  $region12: #{encoder_block.10} parent=0 // pred_region
    _
  $region13: #{encoder_block.10} parent=0 // pred_fallthru
    _
  // Predicated region
  $region14: #{encoder_block.10} parent=0 // pred_check
    _
  $region15: #{encoder_block.10} parent=0 // pred_check_branch
    %16 = sbr.rel (0) target = $region17
  $region16: #{encoder_block.10} parent=0 // pred_region
    _
  $region17: #{encoder_block.10} parent=0 // pred_fallthru
    _
  %v17 = vld [vmem:[%s0] sm:$0xff]
  %v18 = vld [vmem:[%s0 + $0x8] sm:$0xff]
  %v19 = vld [vmem:[%s1] sm:$0xff]
  %v20 = vld [vmem:[%s1 + $0x8] sm:$0xff]
  %v21 = vadd.f32 %v17, %v19
  %v22 = vadd.f32 %v18, %v20
  %vm23 = vcmask 261120
  %v24 = vsel %vm23, %v21, 0.0
  %25 = vadd.xlane.f32.xlu0 %v24
  %v26 = vpop.xlane.xlu0 %25
  %v27 = vsel %vm23, %v22, 0.0
  %28 = vadd.xlane.f32.xlu0 %v27
  %v29 = vpop.xlane.xlu0 %28
  %v30 = vrcp.pop 32.0
  %v31 = vmul.f32 %v26, %v30
  %v32 = vmul.f32 %v29, %v30
  %v33 = vsub.f32 %v21, %v31
  %v34 = vsub.f32 %v22, %v32
  %v35 = vmul.f32 %v33, %v33
  %v36 = vmul.f32 %v34, %v34
  %v37 = vsel %vm23, %v35, 0.0
  %38 = vadd.xlane.f32.xlu0 %v37
  %v39 = vpop.xlane.xlu0 %38
  %v40 = vsel %vm23, %v36, 0.0
  %41 = vadd.xlane.f32.xlu0 %v40
  %v42 = vpop.xlane.xlu0 %41
  %v43 = vmul.f32 %v39, %v30
  %v44 = vmul.f32 %v42, %v30
  %v45 = vadd.f32 %v43, 1e-05
  %v46 = vadd.f32 %v44, 1e-05
  %v47 = vrsqrt.pop %v45
  %v48 = vrsqrt.pop %v46
  %v49 = vmul.f32 %v33, %v47
  %v50 = vmul.f32 %v34, %v48
  %v51 = vld [vmem:[%s2] sm:$0x1]
  %v53 = vlaneseq
  %v54 = vshrl.u32 %v53, 7
  %v55 = vsub.s32 0, %v54
  %v56 = vrot.slane %v51, %v55
  %v58 = vmul.f32 %v49, %v56
  %v59 = vmul.f32 %v50, %v56
  %v60 = vld [vmem:[%s3] sm:$0x1]
  %v62 = vlaneseq
  %v63 = vshrl.u32 %v62, 7
  %v64 = vsub.s32 0, %v63
  %v65 = vrot.slane %v60, %v64
  %v67 = vadd.f32 %v58, %v65
  %v68 = vadd.f32 %v59, %v65
  %69 = vst.msk [vmem:[%s4] sm:$0xff] %vm23, %v67
  %70 = vst.msk [vmem:[%s4 + $0x8] sm:$0xff] %vm23, %v68
  // Predicated region
  $region18: #{encoder_block.10} parent=0 // pred_check
    _
  $region19: #{encoder_block.10} parent=0 // pred_check_branch
    %72 = sbr.rel (0) target = $region21
  $region20: #{encoder_block.10} parent=0 // pred_region
    _
  $region21: #{encoder_block.10} parent=0 // pred_fallthru
    _
  // Predicated region
  $region22: #{encoder_block.10} parent=0 // pred_check
    _
  $region23: #{encoder_block.10} parent=0 // pred_check_branch
    %74 = sbr.rel (0) target = $region25
  $region24: #{encoder_block.10} parent=0 // pred_region
    _
  $region25: #{encoder_block.10} parent=0 // pred_fallthru
    _

// kernel: encoder_block.8
$region0: #{encoder_block.8}
  #allocation0 [shape = 'u32[]', space=smem, size = 0x4, offset = 0x4, fixed_abs, tag = 'smem constant byte address 0x4 - core index']
  #allocation1 [shape = 'u32[144,128]{1,0:T(1,128)}', space=vmem, size = 0x12000, scoped, tag = 'internal scratch']
  %s0 = inlined_call_operand.vmem [shape: f32[2,8,96], index: 0, kind: input, shape index: {}]
  %s1 = inlined_call_operand.vmem [shape: f32[2,8,32], index: 1, kind: output, shape index: {}]
  %s2 = sld [smem:[#allocation0]]
  $region37: #{encoder_block.8} parent=0
    _
  %s4 = ssub.s32 1, %s2
  %s5 = scalar_select 0, %s4, %s2
  loop: start=0, step=1, limit=4
  $region2: #{encoder_block.8} parent=0 // loop_pre_header
    _
  $region3: #{encoder_block.8} parent=0 // loop_header
    %s7 = sphi 0, %s11
    %p8 = scmp.ge.s32.totalorder %s7, 4
    %s17 = sphi 0, %s19
    %s20 = sphi 0, %s17
    %s21 = sphi 0, %s20
    %s37 = sphi 0, %s21
    %s43 = sphi 0, %s45
    %s46 = sphi 0, %s43
    %s47 = sphi 0, %s46
    %s63 = sphi 0, %s47
  $region4: #{encoder_block.8} parent=0 // loop_header_branch
    %10 = sbr.rel (%p8) target = $region8
  $region5: #{encoder_block.8} parent=0 // loop_body
    %s12 = ssub.s32 %s7, 1
    %s13 = ssub.s32 %s7, 2
    %s14 = sadd.s32 %s7, 1
    %s15 = ssub.s32 %s7, %s14
    %p16 = scmp.eq.s32.totalorder %s15, 0
    %s18 = sadd.s32 %s17, 1
    %s19 = scalar_select %p16, %s17, %s18
    %p22 = pneg %p16
    %p23 = scmp.eq.s32.totalorder %s7, 1
    %p24 = por %p22, %p23
    %p25 = scmp.ne.s32.totalorder %s17, %s20
    %p26 = scmp.eq.s32.totalorder %s7, 0
    %p27 = por %p25, %p26
    %p28 = scmp.ne.s32.totalorder %s17, %s20
    %p29 = scmp.eq.s32.totalorder %s12, 1
    %p30 = por %p28, %p29
    %p31 = scmp.ne.s32.totalorder %s20, %s21
    %p32 = scmp.eq.s32.totalorder %s12, 0
    %p33 = por %p31, %p32
    %p34 = scmp.ne.s32.totalorder %s20, %s21
    %p35 = scmp.eq.s32.totalorder %s13, 1
    %p36 = por %p34, %p35
    %p38 = scmp.ne.s32.totalorder %s21, %s37
    %p39 = scmp.eq.s32.totalorder %s13, 0
    %p40 = por %p38, %p39
    %s41 = ssub.s32 %s7, %s14
    %p42 = scmp.eq.s32.totalorder %s41, 0
    %s44 = sadd.s32 %s43, 1
    %s45 = scalar_select %p42, %s43, %s44
    %p48 = pneg %p42
    %p49 = scmp.eq.s32.totalorder %s7, 1
    %p50 = por %p48, %p49
    %p51 = scmp.ne.s32.totalorder %s43, %s46
    %p52 = scmp.eq.s32.totalorder %s7, 0
    %p53 = por %p51, %p52
    %p54 = scmp.ne.s32.totalorder %s43, %s46
    %p55 = scmp.eq.s32.totalorder %s12, 1
    %p56 = por %p54, %p55
    %p57 = scmp.ne.s32.totalorder %s46, %s47
    %p58 = scmp.eq.s32.totalorder %s12, 0
    %p59 = por %p57, %p58
    %p60 = scmp.ne.s32.totalorder %s46, %s47
    %p61 = scmp.eq.s32.totalorder %s13, 1
    %p62 = por %p60, %p61
    %p64 = scmp.ne.s32.totalorder %s47, %s63
    %p65 = scmp.eq.s32.totalorder %s13, 0
    %p66 = por %p64, %p65
    %p67 = scmp.le.s32.totalorder 1, %s7
    %p68 = scmp.lt.s32.totalorder %s7, 3
    %p69 = pnand %p67, %p68
    %p70 = pneg %p69
    // Predicated region
    $region9: #{encoder_block.8} parent=5 // pred_check
      _
    $region10: #{encoder_block.8} parent=5 // pred_check_branch
      %72 = sbr.rel (%p69) target = $region12
    $region11: #{encoder_block.8} parent=5 // pred_region
      %s73 = ssub.s32 %s7, 1
    $region12: #{encoder_block.8} parent=5 // pred_fallthru
      _
    %p74 = scmp.lt.s32.totalorder %s7, 2
    // Predicated region
    $region13: #{encoder_block.8} parent=5 // pred_check
      %p75 = pneg %p74
    $region14: #{encoder_block.8} parent=5 // pred_check_branch
      %77 = sbr.rel (%p75) target = $region16
    $region15: #{encoder_block.8} parent=5 // pred_region
      // Predicated region
      $region17: #{encoder_block.8} parent=15 // pred_check
        %p78 = pneg %p27
      $region18: #{encoder_block.8} parent=15 // pred_check_branch
        %80 = sbr.rel (%p78) target = $region20
      $region19: #{encoder_block.8} parent=15 // pred_region
        %p81 = scmp.lt.s32.totalorder %s7, 1
        %s82 = scalar_select %p81, %s7, 1
        %s83 = smul.addr %s82, 8
        %s84 = scalar_lea.vmem %s0, %s83
      $region20: #{encoder_block.8} parent=15 // pred_fallthru
        _
    $region16: #{encoder_block.8} parent=5 // pred_fallthru
      _
    %p85 = scmp.le.s32.totalorder 1, %s7
    %p86 = scmp.lt.s32.totalorder %s7, 3
    %p87 = pnand %p85, %p86
    %p88 = pneg %p87
    // Predicated region
    $region21: #{encoder_block.8} parent=5 // pred_check
      _
    $region22: #{encoder_block.8} parent=5 // pred_check_branch
      %90 = sbr.rel (%p87) target = $region24
    $region23: #{encoder_block.8} parent=5 // pred_region
      %s91 = ssub.s32 %s7, 1
      %p92 = scmp.lt.s32.totalorder %s12, 1
      %s93 = scalar_select %p92, %s12, 1
      %s94 = smul.addr %s93, 8
      %s95 = scalar_lea.vmem %s0, %s94
      %p96 = pneg %p33
      %p97 = pneg %p30
      %p98 = pneg %p59
      %p99 = pneg %p56
      %p100 = scmp.lt.s32.totalorder %s12, 1
      %s101 = scalar_select %p100, %s12, 1
      %s102 = smul.addr %s101, 8
      %s103 = scalar_lea.vmem %s1, %s102
      %p104 = scmp.lt.s32.totalorder %s12, 1
      %s105 = scalar_select %p104, %s12, 1
      %s106 = smul.addr %s105, 8
      %s107 = scalar_lea.vmem %s0, %s106
      %p108 = scmp.lt.s32.totalorder %s12, 1
      %s109 = scalar_select %p108, %s12, 1
      %s110 = smul.addr %s109, 8
      %s111 = scalar_lea.vmem %s1, %s110
      %v112 = vld [vmem:[%s107] sm:$0xff]
      %v113 = vmul.f32 %v112, 0.35355338
      %115 = vrot.lane.b32.xlu0 %v112, 96
      %v116 = vpop.permute.xlu0 %115
      %vm117 = vcmask 64512
      %v119 = vsel %vm117, %v113, 0
      %v121 = vsel %vm117, %v116, 0
      %123 = vmatprep.subr.mxu0 0.0
      %124 = vmatpush1.xpose.msra.mxu0 %v121
      %125 = vmatprep.subr.mxu0 0.0
      %126 = vmatpush1.xpose.msra.mxu0 0.0
      %127 = vmatprep.subr.mxu0 0.0
      %128 = vmatpush1.xpose.msra.mxu0 0.0
      %129 = vmatprep.subr.mxu0 0.0
      %130 = vmatpush1.xpose.msra.mxu0 0.0
      %131 = vmatprep.subr.mxu0 0.0
      %132 = vmatpush1.xpose.msra.mxu0 0.0
      %133 = vmatprep.subr.mxu0 0.0
      %134 = vmatpush1.xpose.msra.mxu0 0.0
      %135 = vmatprep.subr.mxu0 0.0
      %136 = vmatpush1.xpose.msra.mxu0 0.0
      %137 = vmatprep.subr.mxu0 0.0
      %138 = vmatpush1.xpose.msra.mxu0 0.0
      %139 = vmatprep.subr.mxu0 0.0
      %140 = vmatpush1.xpose.msra.mxu0 0.0
      %141 = vmatprep.subr.mxu0 0.0
      %142 = vmatpush1.xpose.msra.mxu0 0.0
      %143 = vmatprep.subr.mxu0 0.0
      %144 = vmatpush1.xpose.msra.mxu0 0.0
      %145 = vmatprep.subr.mxu0 0.0
      %146 = vmatpush1.xpose.msra.mxu0 0.0
      %147 = vmatprep.subr.mxu0 0.0
      %148 = vmatpush1.xpose.msra.mxu0 0.0
      %149 = vmatprep.subr.mxu0 0.0
      %150 = vmatpush1.xpose.msra.mxu0 0.0
      %151 = vmatprep.subr.mxu0 0.0
      %152 = vmatpush1.xpose.msra.mxu0 0.0
      %153 = vmatprep.subr.mxu0 0.0
      %154 = vmatpush1.xpose.msra.mxu0 0.0
      %155 = vmatprep.subr.mxu0 0.0
      %156 = vmatpush1.xpose.msra.mxu0 0.0
      %157 = vmatprep.subr.mxu0 0.0
      %158 = vmatpush1.xpose.msra.mxu0 0.0
      %159 = vmatprep.subr.mxu0 0.0
      %160 = vmatpush1.xpose.msra.mxu0 0.0
      %161 = vmatprep.subr.mxu0 0.0
      %162 = vmatpush1.xpose.msra.mxu0 0.0
      %163 = vmatprep.subr.mxu0 0.0
      %164 = vmatpush1.xpose.msra.mxu0 0.0
      %165 = vmatprep.subr.mxu0 0.0
      %166 = vmatpush1.xpose.msra.mxu0 0.0
      %167 = vmatprep.subr.mxu0 0.0
      %168 = vmatpush1.xpose.msra.mxu0 0.0
      %169 = vmatprep.subr.mxu0 0.0
      %170 = vmatpush1.xpose.msra.mxu0 0.0
      %171 = vmatprep.subr.mxu0 0.0
      %172 = vmatpush1.xpose.msra.mxu0 0.0
      %173 = vmatprep.subr.mxu0 0.0
      %174 = vmatpush1.xpose.msra.mxu0 0.0
      %175 = vmatprep.subr.mxu0 0.0
      %176 = vmatpush1.xpose.msra.mxu0 0.0
      %177 = vmatprep.subr.mxu0 0.0
      %178 = vmatpush1.xpose.msra.mxu0 0.0
      %179 = vmatprep.subr.mxu0 0.0
      %180 = vmatpush1.xpose.msra.mxu0 0.0
      %181 = vmatprep.subr.mxu0 0.0
      %182 = vmatpush1.xpose.msra.mxu0 0.0
      %183 = vmatprep.subr.mxu0 0.0
      %184 = vmatpush1.xpose.msra.mxu0 0.0
      %185 = vmatprep.subr.mxu0 0.0
      %186 = vmatpush1.xpose.msra.mxu0 0.0
      %187 = vmatprep.mubr.f32.mxu0 0.0
      %188 = vmatmul.mubr.f32.gmra.mrb[0].mxu0 %v119
      %v189 = vpop.f32.mrb[0].mxu0
      %v190 = vadd.f32 0.0, %v189
      %v191 = vpop.f32.mrb[0].mxu0
      %192 = vdwg.mxu0
      %v193 = vsel %vm117, %v190, -inf
      %194 = vmax.xlane.f32.xlu0 %v193
      %v195 = vpop.xlane.xlu0 %194
      %v196 = vsub.f32 %v190, %v195
      %v197 = vmul.f32 %v196, 1.442695
      %v198 = vpow.pop %v197
      %v199 = vsel %vm117, %v198, 0.0
      %200 = vadd.xlane.f32.xlu0 %v199
      %v201 = vpop.xlane.xlu0 %200
      %v202 = vrcp.pop %v201
      %v203 = vmul.f32 %v198, %v202
      %204 = vrot.lane.b32.xlu0 %v112, 64
      %v205 = vpop.permute.xlu0 %204
      %v208 = vsel %vm117, %v203, 0
      %210 = vmatprep.subr.mxu0 0.0
      %211 = vmatpush1.msra.mxu0 %v205
      %212 = vmatprep.subr.mxu0 0.0
      %213 = vmatpush1.msra.mxu0 0.0
      %214 = vmatprep.subr.mxu0 0.0
      %215 = vmatpush1.msra.mxu0 0.0
      %216 = vmatprep.subr.mxu0 0.0
      %217 = vmatpush1.msra.mxu0 0.0
      %218 = vmatprep.subr.mxu0 0.0
      %219 = vmatpush1.msra.mxu0 0.0
      %220 = vmatprep.subr.mxu0 0.0
      %221 = vmatpush1.msra.mxu0 0.0
      %222 = vmatprep.subr.mxu0 0.0
      %223 = vmatpush1.msra.mxu0 0.0
      %224 = vmatprep.subr.mxu0 0.0
      %225 = vmatpush1.msra.mxu0 0.0
      %226 = vmatprep.subr.mxu0 0.0
      %227 = vmatpush1.msra.mxu0 0.0
      %228 = vmatprep.subr.mxu0 0.0
      %229 = vmatpush1.msra.mxu0 0.0
      %230 = vmatprep.subr.mxu0 0.0
      %231 = vmatpush1.msra.mxu0 0.0
      %232 = vmatprep.subr.mxu0 0.0
      %233 = vmatpush1.msra.mxu0 0.0
      %234 = vmatprep.subr.mxu0 0.0
      %235 = vmatpush1.msra.mxu0 0.0
      %236 = vmatprep.subr.mxu0 0.0
      %237 = vmatpush1.msra.mxu0 0.0
      %238 = vmatprep.subr.mxu0 0.0
      %239 = vmatpush1.msra.mxu0 0.0
      %240 = vmatprep.subr.mxu0 0.0
      %241 = vmatpush1.msra.mxu0 0.0
      %242 = vmatprep.subr.mxu0 0.0
      %243 = vmatpush1.msra.mxu0 0.0
      %244 = vmatprep.subr.mxu0 0.0
      %245 = vmatpush1.msra.mxu0 0.0
      %246 = vmatprep.subr.mxu0 0.0
      %247 = vmatpush1.msra.mxu0 0.0
      %248 = vmatprep.subr.mxu0 0.0
      %249 = vmatpush1.msra.mxu0 0.0
      %250 = vmatprep.subr.mxu0 0.0
      %251 = vmatpush1.msra.mxu0 0.0
      %252 = vmatprep.subr.mxu0 0.0
      %253 = vmatpush1.msra.mxu0 0.0
      %254 = vmatprep.subr.mxu0 0.0
      %255 = vmatpush1.msra.mxu0 0.0
      %256 = vmatprep.subr.mxu0 0.0
      %257 = vmatpush1.msra.mxu0 0.0
      %258 = vmatprep.subr.mxu0 0.0
      %259 = vmatpush1.msra.mxu0 0.0
      %260 = vmatprep.subr.mxu0 0.0
      %261 = vmatpush1.msra.mxu0 0.0
      %262 = vmatprep.subr.mxu0 0.0
      %263 = vmatpush1.msra.mxu0 0.0
      %264 = vmatprep.subr.mxu0 0.0
      %265 = vmatpush1.msra.mxu0 0.0
      %266 = vmatprep.subr.mxu0 0.0
      %267 = vmatpush1.msra.mxu0 0.0
      %268 = vmatprep.subr.mxu0 0.0
      %269 = vmatpush1.msra.mxu0 0.0
      %270 = vmatprep.subr.mxu0 0.0
      %271 = vmatpush1.msra.mxu0 0.0
      %272 = vmatprep.subr.mxu0 0.0
      %273 = vmatpush1.msra.mxu0 0.0
      %274 = vmatprep.mubr.f32.mxu0 0.0
      %275 = vmatmul.mubr.f32.gmra.mrb[0].mxu0 %v208
      %v276 = vpop.f32.mrb[0].mxu0
      %v277 = vadd.f32 0.0, %v276
      %v278 = vpop.f32.mrb[0].mxu0
      %279 = vdwg.mxu0
      %280 = vrot.lane.b32.xlu0 %v113, 120
      %v281 = vpop.permute.xlu0 %280
      %282 = vrot.lane.b32.xlu0 %v112, 88
      %v283 = vpop.permute.xlu0 %282
      %v284 = vsel %vm117, %v281, 0
      %v286 = vsel %vm117, %v283, 0
      %288 = vmatprep.subr.mxu0 0.0
      %289 = vmatpush1.xpose.msra.mxu0 %v286
      %290 = vmatprep.subr.mxu0 0.0
      %291 = vmatpush1.xpose.msra.mxu0 0.0
      %292 = vmatprep.subr.mxu0 0.0
      %293 = vmatpush1.xpose.msra.mxu0 0.0
      %294 = vmatprep.subr.mxu0 0.0
      %295 = vmatpush1.xpose.msra.mxu0 0.0
      %296 = vmatprep.subr.mxu0 0.0
      %297 = vmatpush1.xpose.msra.mxu0 0.0
      %298 = vmatprep.subr.mxu0 0.0
      %299 = vmatpush1.xpose.msra.mxu0 0.0
      %300 = vmatprep.subr.mxu0 0.0
      %301 = vmatpush1.xpose.msra.mxu0 0.0
      %302 = vmatprep.subr.mxu0 0.0
      %303 = vmatpush1.xpose.msra.mxu0 0.0
      %304 = vmatprep.subr.mxu0 0.0
      %305 = vmatpush1.xpose.msra.mxu0 0.0
      %306 = vmatprep.subr.mxu0 0.0
      %307 = vmatpush1.xpose.msra.mxu0 0.0
      %308 = vmatprep.subr.mxu0 0.0
      %309 = vmatpush1.xpose.msra.mxu0 0.0
      %310 = vmatprep.subr.mxu0 0.0
      %311 = vmatpush1.xpose.msra.mxu0 0.0
      %312 = vmatprep.subr.mxu0 0.0
      %313 = vmatpush1.xpose.msra.mxu0 0.0
      %314 = vmatprep.subr.mxu0 0.0
      %315 = vmatpush1.xpose.msra.mxu0 0.0
      %316 = vmatprep.subr.mxu0 0.0
      %317 = vmatpush1.xpose.msra.mxu0 0.0
      %318 = vmatprep.subr.mxu0 0.0
      %319 = vmatpush1.xpose.msra.mxu0 0.0
      %320 = vmatprep.subr.mxu0 0.0
      %321 = vmatpush1.xpose.msra.mxu0 0.0
      %322 = vmatprep.subr.mxu0 0.0
      %323 = vmatpush1.xpose.msra.mxu0 0.0
      %324 = vmatprep.subr.mxu0 0.0
      %325 = vmatpush1.xpose.msra.mxu0 0.0
      %326 = vmatprep.subr.mxu0 0.0
      %327 = vmatpush1.xpose.msra.mxu0 0.0
      %328 = vmatprep.subr.mxu0 0.0
      %329 = vmatpush1.xpose.msra.mxu0 0.0
      %330 = vmatprep.subr.mxu0 0.0
      %331 = vmatpush1.xpose.msra.mxu0 0.0
      %332 = vmatprep.subr.mxu0 0.0
      %333 = vmatpush1.xpose.msra.mxu0 0.0
      %334 = vmatprep.subr.mxu0 0.0
      %335 = vmatpush1.xpose.msra.mxu0 0.0
      %336 = vmatprep.subr.mxu0 0.0
      %337 = vmatpush1.xpose.msra.mxu0 0.0
      %338 = vmatprep.subr.mxu0 0.0
      %339 = vmatpush1.xpose.msra.mxu0 0.0
      %340 = vmatprep.subr.mxu0 0.0
      %341 = vmatpush1.xpose.msra.mxu0 0.0
      %342 = vmatprep.subr.mxu0 0.0
      %343 = vmatpush1.xpose.msra.mxu0 0.0
      %344 = vmatprep.subr.mxu0 0.0
      %345 = vmatpush1.xpose.msra.mxu0 0.0
      %346 = vmatprep.subr.mxu0 0.0
      %347 = vmatpush1.xpose.msra.mxu0 0.0
      %348 = vmatprep.subr.mxu0 0.0
      %349 = vmatpush1.xpose.msra.mxu0 0.0
      %350 = vmatprep.subr.mxu0 0.0
      %351 = vmatpush1.xpose.msra.mxu0 0.0
      %352 = vmatprep.mubr.f32.mxu0 0.0
      %353 = vmatmul.mubr.f32.gmra.mrb[0].mxu0 %v284
      %v354 = vpop.f32.mrb[0].mxu0
      %v355 = vadd.f32 0.0, %v354
      %v356 = vpop.f32.mrb[0].mxu0
      %357 = vdwg.mxu0
      %v358 = vsel %vm117, %v355, -inf
      %359 = vmax.xlane.f32.xlu0 %v358
      %v360 = vpop.xlane.xlu0 %359
      %v361 = vsub.f32 %v355, %v360
      %v362 = vmul.f32 %v361, 1.442695
      %v363 = vpow.pop %v362
      %v364 = vsel %vm117, %v363, 0.0
      %365 = vadd.xlane.f32.xlu0 %v364
      %v366 = vpop.xlane.xlu0 %365
      %v367 = vrcp.pop %v366
      %v368 = vmul.f32 %v363, %v367
      %369 = vrot.lane.b32.xlu0 %v112, 56
      %v370 = vpop.permute.xlu0 %369
      %v373 = vsel %vm117, %v368, 0
      %375 = vmatprep.subr.mxu0 0.0
      %376 = vmatpush1.msra.mxu0 %v370
      %377 = vmatprep.subr.mxu0 0.0
      %378 = vmatpush1.msra.mxu0 0.0
      %379 = vmatprep.subr.mxu0 0.0
      %380 = vmatpush1.msra.mxu0 0.0
      %381 = vmatprep.subr.mxu0 0.0
      %382 = vmatpush1.msra.mxu0 0.0
      %383 = vmatprep.subr.mxu0 0.0
      %384 = vmatpush1.msra.mxu0 0.0
      %385 = vmatprep.subr.mxu0 0.0
      %386 = vmatpush1.msra.mxu0 0.0
      %387 = vmatprep.subr.mxu0 0.0
      %388 = vmatpush1.msra.mxu0 0.0
      %389 = vmatprep.subr.mxu0 0.0
      %390 = vmatpush1.msra.mxu0 0.0
      %391 = vmatprep.subr.mxu0 0.0
      %392 = vmatpush1.msra.mxu0 0.0
      %393 = vmatprep.subr.mxu0 0.0
      %394 = vmatpush1.msra.mxu0 0.0
      %395 = vmatprep.subr.mxu0 0.0
      %396 = vmatpush1.msra.mxu0 0.0
      %397 = vmatprep.subr.mxu0 0.0
      %398 = vmatpush1.msra.mxu0 0.0
      %399 = vmatprep.subr.mxu0 0.0
      %400 = vmatpush1.msra.mxu0 0.0
      %401 = vmatprep.subr.mxu0 0.0
      %402 = vmatpush1.msra.mxu0 0.0
      %403 = vmatprep.subr.mxu0 0.0
      %404 = vmatpush1.msra.mxu0 0.0
      %405 = vmatprep.subr.mxu0 0.0
      %406 = vmatpush1.msra.mxu0 0.0
      %407 = vmatprep.subr.mxu0 0.0
      %408 = vmatpush1.msra.mxu0 0.0
      %409 = vmatprep.subr.mxu0 0.0
      %410 = vmatpush1.msra.mxu0 0.0
      %411 = vmatprep.subr.mxu0 0.0
      %412 = vmatpush1.msra.mxu0 0.0
      %413 = vmatprep.subr.mxu0 0.0
      %414 = vmatpush1.msra.mxu0 0.0
      %415 = vmatprep.subr.mxu0 0.0
      %416 = vmatpush1.msra.mxu0 0.0
      %417 = vmatprep.subr.mxu0 0.0
      %418 = vmatpush1.msra.mxu0 0.0
      %419 = vmatprep.subr.mxu0 0.0
      %420 = vmatpush1.msra.mxu0 0.0
      %421 = vmatprep.subr.mxu0 0.0
      %422 = vmatpush1.msra.mxu0 0.0
      %423 = vmatprep.subr.mxu0 0.0
      %424 = vmatpush1.msra.mxu0 0.0
      %425 = vmatprep.subr.mxu0 0.0
      %426 = vmatpush1.msra.mxu0 0.0
      %427 = vmatprep.subr.mxu0 0.0
      %428 = vmatpush1.msra.mxu0 0.0
      %429 = vmatprep.subr.mxu0 0.0
      %430 = vmatpush1.msra.mxu0 0.0
      %431 = vmatprep.subr.mxu0 0.0
      %432 = vmatpush1.msra.mxu0 0.0
      %433 = vmatprep.subr.mxu0 0.0
      %434 = vmatpush1.msra.mxu0 0.0
      %435 = vmatprep.subr.mxu0 0.0
      %436 = vmatpush1.msra.mxu0 0.0
      %437 = vmatprep.subr.mxu0 0.0
      %438 = vmatpush1.msra.mxu0 0.0
      %439 = vmatprep.mubr.f32.mxu0 0.0
      %440 = vmatmul.mubr.f32.gmra.mrb[0].mxu0 %v373
      %v441 = vpop.f32.mrb[0].mxu0
      %v442 = vadd.f32 0.0, %v441
      %v443 = vpop.f32.mrb[0].mxu0
      %444 = vdwg.mxu0
      %445 = vrot.lane.b32.xlu0 %v113, 112
      %v446 = vpop.permute.xlu0 %445
      %447 = vrot.lane.b32.xlu0 %v112, 80
      %v448 = vpop.permute.xlu0 %447
      %v449 = vsel %vm117, %v446, 0
      %v451 = vsel %vm117, %v448, 0
      %453 = vmatprep.subr.mxu0 0.0
      %454 = vmatpush1.xpose.msra.mxu0 %v451
      %455 = vmatprep.subr.mxu0 0.0
      %456 = vmatpush1.xpose.msra.mxu0 0.0
      %457 = vmatprep.subr.mxu0 0.0
      %458 = vmatpush1.xpose.msra.mxu0 0.0
      %459 = vmatprep.subr.mxu0 0.0
      %460 = vmatpush1.xpose.msra.mxu0 0.0
      %461 = vmatprep.subr.mxu0 0.0
      %462 = vmatpush1.xpose.msra.mxu0 0.0
      %463 = vmatprep.subr.mxu0 0.0
      %464 = vmatpush1.xpose.msra.mxu0 0.0
      %465 = vmatprep.subr.mxu0 0.0
      %466 = vmatpush1.xpose.msra.mxu0 0.0
      %467 = vmatprep.subr.mxu0 0.0
      %468 = vmatpush1.xpose.msra.mxu0 0.0
      %469 = vmatprep.subr.mxu0 0.0
      %470 = vmatpush1.xpose.msra.mxu0 0.0
      %471 = vmatprep.subr.mxu0 0.0
      %472 = vmatpush1.xpose.msra.mxu0 0.0
      %473 = vmatprep.subr.mxu0 0.0
      %474 = vmatpush1.xpose.msra.mxu0 0.0
      %475 = vmatprep.subr.mxu0 0.0
      %476 = vmatpush1.xpose.msra.mxu0 0.0
      %477 = vmatprep.subr.mxu0 0.0
      %478 = vmatpush1.xpose.msra.mxu0 0.0
      %479 = vmatprep.subr.mxu0 0.0
      %480 = vmatpush1.xpose.msra.mxu0 0.0
      %481 = vmatprep.subr.mxu0 0.0
      %482 = vmatpush1.xpose.msra.mxu0 0.0
      %483 = vmatprep.subr.mxu0 0.0
      %484 = vmatpush1.xpose.msra.mxu0 0.0
      %485 = vmatprep.subr.mxu0 0.0
      %486 = vmatpush1.xpose.msra.mxu0 0.0
      %487 = vmatprep.subr.mxu0 0.0
      %488 = vmatpush1.xpose.msra.mxu0 0.0
      %489 = vmatprep.subr.mxu0 0.0
      %490 = vmatpush1.xpose.msra.mxu0 0.0
      %491 = vmatprep.subr.mxu0 0.0
      %492 = vmatpush1.xpose.msra.mxu0 0.0
      %493 = vmatprep.subr.mxu0 0.0
      %494 = vmatpush1.xpose.msra.mxu0 0.0
      %495 = vmatprep.subr.mxu0 0.0
      %496 = vmatpush1.xpose.msra.mxu0 0.0
      %497 = vmatprep.subr.mxu0 0.0
      %498 = vmatpush1.xpose.msra.mxu0 0.0
      %499 = vmatprep.subr.mxu0 0.0
      %500 = vmatpush1.xpose.msra.mxu0 0.0
      %501 = vmatprep.subr.mxu0 0.0
      %502 = vmatpush1.xpose.msra.mxu0 0.0
      %503 = vmatprep.subr.mxu0 0.0
      %504 = vmatpush1.xpose.msra.mxu0 0.0
      %505 = vmatprep.subr.mxu0 0.0
      %506 = vmatpush1.xpose.msra.mxu0 0.0
      %507 = vmatprep.subr.mxu0 0.0
      %508 = vmatpush1.xpose.msra.mxu0 0.0
      %509 = vmatprep.subr.mxu0 0.0
      %510 = vmatpush1.xpose.msra.mxu0 0.0
      %511 = vmatprep.subr.mxu0 0.0
      %512 = vmatpush1.xpose.msra.mxu0 0.0
      %513 = vmatprep.subr.mxu0 0.0
      %514 = vmatpush1.xpose.msra.mxu0 0.0
      %515 = vmatprep.subr.mxu0 0.0
      %516 = vmatpush1.xpose.msra.mxu0 0.0
      %517 = vmatprep.mubr.f32.mxu0 0.0
      %518 = vmatmul.mubr.f32.gmra.mrb[0].mxu0 %v449
      %v519 = vpop.f32.mrb[0].mxu0
      %v520 = vadd.f32 0.0, %v519
      %v521 = vpop.f32.mrb[0].mxu0
      %522 = vdwg.mxu0
      %v523 = vsel %vm117, %v520, -inf
      %524 = vmax.xlane.f32.xlu0 %v523
      %v525 = vpop.xlane.xlu0 %524
      %v526 = vsub.f32 %v520, %v525
      %v527 = vmul.f32 %v526, 1.442695
      %v528 = vpow.pop %v527
      %v529 = vsel %vm117, %v528, 0.0
      %530 = vadd.xlane.f32.xlu0 %v529
      %v531 = vpop.xlane.xlu0 %530
      %v532 = vrcp.pop %v531
      %v533 = vmul.f32 %v528, %v532
      %534 = vrot.lane.b32.xlu0 %v112, 48
      %v535 = vpop.permute.xlu0 %534
      %v538 = vsel %vm117, %v533, 0
      %540 = vmatprep.subr.mxu0 0.0
      %541 = vmatpush1.msra.mxu0 %v535
      %542 = vmatprep.subr.mxu0 0.0
      %543 = vmatpush1.msra.mxu0 0.0
      %544 = vmatprep.subr.mxu0 0.0
      %545 = vmatpush1.msra.mxu0 0.0
      %546 = vmatprep.subr.mxu0 0.0
      %547 = vmatpush1.msra.mxu0 0.0
      %548 = vmatprep.subr.mxu0 0.0
      %549 = vmatpush1.msra.mxu0 0.0
      %550 = vmatprep.subr.mxu0 0.0
      %551 = vmatpush1.msra.mxu0 0.0
      %552 = vmatprep.subr.mxu0 0.0
      %553 = vmatpush1.msra.mxu0 0.0
      %554 = vmatprep.subr.mxu0 0.0
      %555 = vmatpush1.msra.mxu0 0.0
      %556 = vmatprep.subr.mxu0 0.0
      %557 = vmatpush1.msra.mxu0 0.0
      %558 = vmatprep.subr.mxu0 0.0
      %559 = vmatpush1.msra.mxu0 0.0
      %560 = vmatprep.subr.mxu0 0.0
      %561 = vmatpush1.msra.mxu0 0.0
      %562 = vmatprep.subr.mxu0 0.0
      %563 = vmatpush1.msra.mxu0 0.0
      %564 = vmatprep.subr.mxu0 0.0
      %565 = vmatpush1.msra.mxu0 0.0
      %566 = vmatprep.subr.mxu0 0.0
      %567 = vmatpush1.msra.mxu0 0.0
      %568 = vmatprep.subr.mxu0 0.0
      %569 = vmatpush1.msra.mxu0 0.0
      %570 = vmatprep.subr.mxu0 0.0
      %571 = vmatpush1.msra.mxu0 0.0
      %572 = vmatprep.subr.mxu0 0.0
      %573 = vmatpush1.msra.mxu0 0.0
      %574 = vmatprep.subr.mxu0 0.0
      %575 = vmatpush1.msra.mxu0 0.0
      %576 = vmatprep.subr.mxu0 0.0
      %577 = vmatpush1.msra.mxu0 0.0
      %578 = vmatprep.subr.mxu0 0.0
      %579 = vmatpush1.msra.mxu0 0.0
      %580 = vmatprep.subr.mxu0 0.0
      %581 = vmatpush1.msra.mxu0 0.0
      %582 = vmatprep.subr.mxu0 0.0
      %583 = vmatpush1.msra.mxu0 0.0
      %584 = vmatprep.subr.mxu0 0.0
      %585 = vmatpush1.msra.mxu0 0.0
      %586 = vmatprep.subr.mxu0 0.0
      %587 = vmatpush1.msra.mxu0 0.0
      %588 = vmatprep.subr.mxu0 0.0
      %589 = vmatpush1.msra.mxu0 0.0
      %590 = vmatprep.subr.mxu0 0.0
      %591 = vmatpush1.msra.mxu0 0.0
      %592 = vmatprep.subr.mxu0 0.0
      %593 = vmatpush1.msra.mxu0 0.0
      %594 = vmatprep.subr.mxu0 0.0
      %595 = vmatpush1.msra.mxu0 0.0
      %596 = vmatprep.subr.mxu0 0.0
      %597 = vmatpush1.msra.mxu0 0.0
      %598 = vmatprep.subr.mxu0 0.0
      %599 = vmatpush1.msra.mxu0 0.0
      %600 = vmatprep.subr.mxu0 0.0
      %601 = vmatpush1.msra.mxu0 0.0
      %602 = vmatprep.subr.mxu0 0.0
      %603 = vmatpush1.msra.mxu0 0.0
      %604 = vmatprep.mubr.f32.mxu0 0.0
      %605 = vmatmul.mubr.f32.gmra.mrb[0].mxu0 %v538
      %v606 = vpop.f32.mrb[0].mxu0
      %v607 = vadd.f32 0.0, %v606
      %v608 = vpop.f32.mrb[0].mxu0
      %609 = vdwg.mxu0
      %610 = vrot.lane.b32.xlu0 %v113, 104
      %v611 = vpop.permute.xlu0 %610
      %612 = vrot.lane.b32.xlu0 %v112, 72
      %v613 = vpop.permute.xlu0 %612
      %v614 = vsel %vm117, %v611, 0
      %v616 = vsel %vm117, %v613, 0
      %618 = vmatprep.subr.mxu0 0.0
      %619 = vmatpush1.xpose.msra.mxu0 %v616
      %620 = vmatprep.subr.mxu0 0.0
      %621 = vmatpush1.xpose.msra.mxu0 0.0
      %622 = vmatprep.subr.mxu0 0.0
      %623 = vmatpush1.xpose.msra.mxu0 0.0
      %624 = vmatprep.subr.mxu0 0.0
      %625 = vmatpush1.xpose.msra.mxu0 0.0
      %626 = vmatprep.subr.mxu0 0.0
      %627 = vmatpush1.xpose.msra.mxu0 0.0
      %628 = vmatprep.subr.mxu0 0.0
      %629 = vmatpush1.xpose.msra.mxu0 0.0
      %630 = vmatprep.subr.mxu0 0.0
      %631 = vmatpush1.xpose.msra.mxu0 0.0
      %632 = vmatprep.subr.mxu0 0.0
      %633 = vmatpush1.xpose.msra.mxu0 0.0
      %634 = vmatprep.subr.mxu0 0.0
      %635 = vmatpush1.xpose.msra.mxu0 0.0
      %636 = vmatprep.subr.mxu0 0.0
      %637 = vmatpush1.xpose.msra.mxu0 0.0
      %638 = vmatprep.subr.mxu0 0.0
      %639 = vmatpush1.xpose.msra.mxu0 0.0
      %640 = vmatprep.subr.mxu0 0.0
      %641 = vmatpush1.xpose.msra.mxu0 0.0
      %642 = vmatprep.subr.mxu0 0.0
      %643 = vmatpush1.xpose.msra.mxu0 0.0
      %644 = vmatprep.subr.mxu0 0.0
      %645 = vmatpush1.xpose.msra.mxu0 0.0
      %646 = vmatprep.subr.mxu0 0.0
      %647 = vmatpush1.xpose.msra.mxu0 0.0
      %648 = vmatprep.subr.mxu0 0.0
      %649 = vmatpush1.xpose.msra.mxu0 0.0
      %650 = vmatprep.subr.mxu0 0.0
      %651 = vmatpush1.xpose.msra.mxu0 0.0
      %652 = vmatprep.subr.mxu0 0.0
      %653 = vmatpush1.xpose.msra.mxu0 0.0
      %654 = vmatprep.subr.mxu0 0.0
      %655 = vmatpush1.xpose.msra.mxu0 0.0
      %656 = vmatprep.subr.mxu0 0.0
      %657 = vmatpush1.xpose.msra.mxu0 0.0
      %658 = vmatprep.subr.mxu0 0.0
      %659 = vmatpush1.xpose.msra.mxu0 0.0
      %660 = vmatprep.subr.mxu0 0.0
      %661 = vmatpush1.xpose.msra.mxu0 0.0
      %662 = vmatprep.subr.mxu0 0.0
      %663 = vmatpush1.xpose.msra.mxu0 0.0
      %664 = vmatprep.subr.mxu0 0.0
      %665 = vmatpush1.xpose.msra.mxu0 0.0
      %666 = vmatprep.subr.mxu0 0.0
      %667 = vmatpush1.xpose.msra.mxu0 0.0
      %668 = vmatprep.subr.mxu0 0.0
      %669 = vmatpush1.xpose.msra.mxu0 0.0
      %670 = vmatprep.subr.mxu0 0.0
      %671 = vmatpush1.xpose.msra.mxu0 0.0
      %672 = vmatprep.subr.mxu0 0.0
      %673 = vmatpush1.xpose.msra.mxu0 0.0
      %674 = vmatprep.subr.mxu0 0.0
      %675 = vmatpush1.xpose.msra.mxu0 0.0
      %676 = vmatprep.subr.mxu0 0.0
      %677 = vmatpush1.xpose.msra.mxu0 0.0
      %678 = vmatprep.subr.mxu0 0.0
      %679 = vmatpush1.xpose.msra.mxu0 0.0
      %680 = vmatprep.subr.mxu0 0.0
      %681 = vmatpush1.xpose.msra.mxu0 0.0
      %682 = vmatprep.mubr.f32.mxu0 0.0
      %683 = vmatmul.mubr.f32.gmra.mrb[0].mxu0 %v614
      %v684 = vpop.f32.mrb[0].mxu0
      %v685 = vadd.f32 0.0, %v684
      %v686 = vpop.f32.mrb[0].mxu0
      %687 = vdwg.mxu0
      %v688 = vsel %vm117, %v685, -inf
      %689 = vmax.xlane.f32.xlu0 %v688
      %v690 = vpop.xlane.xlu0 %689
      %v691 = vsub.f32 %v685, %v690
      %v692 = vmul.f32 %v691, 1.442695
      %v693 = vpow.pop %v692
      %v694 = vsel %vm117, %v693, 0.0
      %695 = vadd.xlane.f32.xlu0 %v694
      %v696 = vpop.xlane.xlu0 %695
      %v697 = vrcp.pop %v696
      %v698 = vmul.f32 %v693, %v697
      %699 = vrot.lane.b32.xlu0 %v112, 40
      %v700 = vpop.permute.xlu0 %699
      %v703 = vsel %vm117, %v698, 0
      %705 = vmatprep.subr.mxu0 0.0
      %706 = vmatpush1.msra.mxu0 %v700
      %707 = vmatprep.subr.mxu0 0.0
      %708 = vmatpush1.msra.mxu0 0.0
      %709 = vmatprep.subr.mxu0 0.0
      %710 = vmatpush1.msra.mxu0 0.0
      %711 = vmatprep.subr.mxu0 0.0
      %712 = vmatpush1.msra.mxu0 0.0
      %713 = vmatprep.subr.mxu0 0.0
      %714 = vmatpush1.msra.mxu0 0.0
      %715 = vmatprep.subr.mxu0 0.0
      %716 = vmatpush1.msra.mxu0 0.0
      %717 = vmatprep.subr.mxu0 0.0
      %718 = vmatpush1.msra.mxu0 0.0
      %719 = vmatprep.subr.mxu0 0.0
      %720 = vmatpush1.msra.mxu0 0.0
      %721 = vmatprep.subr.mxu0 0.0
      %722 = vmatpush1.msra.mxu0 0.0
      %723 = vmatprep.subr.mxu0 0.0
      %724 = vmatpush1.msra.mxu0 0.0
      %725 = vmatprep.subr.mxu0 0.0
      %726 = vmatpush1.msra.mxu0 0.0
      %727 = vmatprep.subr.mxu0 0.0
      %728 = vmatpush1.msra.mxu0 0.0
      %729 = vmatprep.subr.mxu0 0.0
      %730 = vmatpush1.msra.mxu0 0.0
      %731 = vmatprep.subr.mxu0 0.0
      %732 = vmatpush1.msra.mxu0 0.0
      %733 = vmatprep.subr.mxu0 0.0
      %734 = vmatpush1.msra.mxu0 0.0
      %735 = vmatprep.subr.mxu0 0.0
      %736 = vmatpush1.msra.mxu0 0.0
      %737 = vmatprep.subr.mxu0 0.0
      %738 = vmatpush1.msra.mxu0 0.0
      %739 = vmatprep.subr.mxu0 0.0
      %740 = vmatpush1.msra.mxu0 0.0
      %741 = vmatprep.subr.mxu0 0.0
      %742 = vmatpush1.msra.mxu0 0.0
      %743 = vmatprep.subr.mxu0 0.0
      %744 = vmatpush1.msra.mxu0 0.0
      %745 = vmatprep.subr.mxu0 0.0
      %746 = vmatpush1.msra.mxu0 0.0
      %747 = vmatprep.subr.mxu0 0.0
      %748 = vmatpush1.msra.mxu0 0.0
      %749 = vmatprep.subr.mxu0 0.0
      %750 = vmatpush1.msra.mxu0 0.0
      %751 = vmatprep.subr.mxu0 0.0
      %752 = vmatpush1.msra.mxu0 0.0
      %753 = vmatprep.subr.mxu0 0.0
      %754 = vmatpush1.msra.mxu0 0.0
      %755 = vmatprep.subr.mxu0 0.0
      %756 = vmatpush1.msra.mxu0 0.0
      %757 = vmatprep.subr.mxu0 0.0
      %758 = vmatpush1.msra.mxu0 0.0
      %759 = vmatprep.subr.mxu0 0.0
      %760 = vmatpush1.msra.mxu0 0.0
      %761 = vmatprep.subr.mxu0 0.0
      %762 = vmatpush1.msra.mxu0 0.0
      %763 = vmatprep.subr.mxu0 0.0
      %764 = vmatpush1.msra.mxu0 0.0
      %765 = vmatprep.subr.mxu0 0.0
      %766 = vmatpush1.msra.mxu0 0.0
      %767 = vmatprep.subr.mxu0 0.0
      %768 = vmatpush1.msra.mxu0 0.0
      %769 = vmatprep.mubr.f32.mxu0 0.0
      %770 = vmatmul.mubr.f32.gmra.mrb[0].mxu0 %v703
      %v771 = vpop.f32.mrb[0].mxu0
      %v772 = vadd.f32 0.0, %v771
      %v773 = vpop.f32.mrb[0].mxu0
      %774 = vdwg.mxu0
      %776 = vrot.lane.b32.xlu0 %v442, 8
      %v777 = vpop.permute.xlu0 %776
      %780 = vrot.lane.b32.xlu0 %v607, 16
      %v781 = vpop.permute.xlu0 %780
      %784 = vrot.lane.b32.xlu0 %v772, 24
      %v785 = vpop.permute.xlu0 %784
      %v787 = vsel %vm117, %v277, %v777
      %vm788 = vcmask 130048
      %v789 = vsel %vm788, %v787, %v781
      %vm790 = vcmask 195584
      %v791 = vsel %vm790, %v789, %v785
      %vm792 = vcmask 261120
      %793 = vst.msk [vmem:[%s111] sm:$0xff] %vm792, %v791
      %p794 = scmp.lt.s32.totalorder %s12, 1
      %s795 = scalar_select %p794, %s12, 1
      %s796 = smul.addr %s795, 8
      %s797 = scalar_lea.vmem %s1, %s796
      // Predicated region
      $region25: #{encoder_block.8} parent=23 // pred_check
        %p798 = pneg %p56
      $region26: #{encoder_block.8} parent=23 // pred_check_branch
        %800 = sbr.rel (%p798) target = $region28
      $region27: #{encoder_block.8} parent=23 // pred_region
        _
      $region28: #{encoder_block.8} parent=23 // pred_fallthru
        _
    $region24: #{encoder_block.8} parent=5 // pred_fallthru
      _
    %p801 = scmp.le.s32.totalorder 2, %s7
    // Predicated region
    $region29: #{encoder_block.8} parent=5 // pred_check
      %p802 = pneg %p801
    $region30: #{encoder_block.8} parent=5 // pred_check_branch
      %804 = sbr.rel (%p802) target = $region32
    $region31: #{encoder_block.8} parent=5 // pred_region
      %s805 = ssub.s32 %s7, 2
      // Predicated region
      $region33: #{encoder_block.8} parent=31 // pred_check
        %p806 = pneg %p62
      $region34: #{encoder_block.8} parent=31 // pred_check_branch
        %808 = sbr.rel (%p806) target = $region36
      $region35: #{encoder_block.8} parent=31 // pred_region
        %p809 = scmp.lt.s32.totalorder %s13, 1
        %s810 = scalar_select %p809, %s13, 1
        %s811 = smul.addr %s810, 8
        %s812 = scalar_lea.vmem %s1, %s811
      $region36: #{encoder_block.8} parent=31 // pred_fallthru
        _
    $region32: #{encoder_block.8} parent=5 // pred_fallthru
      _
  $region6: #{encoder_block.8} parent=0 // loop_footer
    %s11 = sadd.s32 1, %s7
  $region7: #{encoder_block.8} parent=0 // loop_footer_branch
    %6 = sbr.rel target = $region3
  $region8: #{encoder_block.8} parent=0 // loop_exit
    _

// kernel: encoder_block.13
$region0: #{encoder_block.13}
  #allocation0 [shape = 'u32[]', space=smem, size = 0x4, offset = 0x4, fixed_abs, tag = 'smem constant byte address 0x4 - core index']
  #allocation1 [shape = 'u32[144,128]{1,0:T(1,128)}', space=vmem, size = 0x12000, scoped, tag = 'internal scratch']
  %s0 = inlined_call_operand.vmem [shape: f32[16,32], index: 0, kind: input, shape index: {}]
  %s1 = inlined_call_operand.vmem [shape: f32[16,32], index: 1, kind: input, shape index: {}]
  %s2 = inlined_call_operand.vmem [shape: f32[1,32], index: 2, kind: input, shape index: {}]
  %s3 = inlined_call_operand.vmem [shape: f32[1,32], index: 3, kind: input, shape index: {}]
  %s4 = inlined_call_operand.hbm [shape: f32[16,32], index: 4, kind: output, shape index: {}]
  %s5 = sld [smem:[#allocation0]]
  $region26: #{encoder_block.13} parent=0
    _
  %s7 = ssub.s32 1, %s5
  %s8 = scalar_select 0, %s7, %s5
  $region1: #{encoder_block.13} parent=0
    #allocation2 [shape = 'u8[8192]{0}', space=vmem, size = 0x2000, scoped, tag = 'output window, operand 0, single buffered']
    #allocation3 [shape = 's32[1]{0}', space=sflag, size = 0x4, scoped, tag = 'scoped memory for encoder_block.13']
    %9 = vsyncpa [#allocation3], 0
    // Predicated region
    $region2: #{encoder_block.13} parent=1 // pred_check
      _
    $region3: #{encoder_block.13} parent=1 // pred_check_branch
      %11 = sbr.rel (0) target = $region5
    $region4: #{encoder_block.13} parent=1 // pred_region
      _
    $region5: #{encoder_block.13} parent=1 // pred_fallthru
      _
    // Predicated region
    $region6: #{encoder_block.13} parent=1 // pred_check
      _
    $region7: #{encoder_block.13} parent=1 // pred_check_branch
      %13 = sbr.rel (0) target = $region9
    $region8: #{encoder_block.13} parent=1 // pred_region
      _
    $region9: #{encoder_block.13} parent=1 // pred_fallthru
      _
    // Predicated region
    $region10: #{encoder_block.13} parent=1 // pred_check
      _
    $region11: #{encoder_block.13} parent=1 // pred_check_branch
      %15 = sbr.rel (0) target = $region13
    $region12: #{encoder_block.13} parent=1 // pred_region
      _
    $region13: #{encoder_block.13} parent=1 // pred_fallthru
      _
    // Predicated region
    $region14: #{encoder_block.13} parent=1 // pred_check
      _
    $region15: #{encoder_block.13} parent=1 // pred_check_branch
      %17 = sbr.rel (0) target = $region17
    $region16: #{encoder_block.13} parent=1 // pred_region
      _
    $region17: #{encoder_block.13} parent=1 // pred_fallthru
      _
    %v18 = vld [vmem:[%s0] sm:$0xff]
    %v19 = vld [vmem:[%s0 + $0x8] sm:$0xff]
    %v20 = vld [vmem:[%s1] sm:$0xff]
    %v21 = vld [vmem:[%s1 + $0x8] sm:$0xff]
    %v22 = vadd.f32 %v18, %v20
    %v23 = vadd.f32 %v19, %v21
    %vm24 = vcmask 261120
    %v25 = vsel %vm24, %v22, 0.0
    %26 = vadd.xlane.f32.xlu0 %v25
    %v27 = vpop.xlane.xlu0 %26
    %v28 = vsel %vm24, %v23, 0.0
    %29 = vadd.xlane.f32.xlu0 %v28
    %v30 = vpop.xlane.xlu0 %29
    %v31 = vrcp.pop 32.0
    %v32 = vmul.f32 %v27, %v31
    %v33 = vmul.f32 %v30, %v31
    %v34 = vsub.f32 %v22, %v32
    %v35 = vsub.f32 %v23, %v33
    %v36 = vmul.f32 %v34, %v34
    %v37 = vmul.f32 %v35, %v35
    %v38 = vsel %vm24, %v36, 0.0
    %39 = vadd.xlane.f32.xlu0 %v38
    %v40 = vpop.xlane.xlu0 %39
    %v41 = vsel %vm24, %v37, 0.0
    %42 = vadd.xlane.f32.xlu0 %v41
    %v43 = vpop.xlane.xlu0 %42
    %v44 = vmul.f32 %v40, %v31
    %v45 = vmul.f32 %v43, %v31
    %v46 = vadd.f32 %v44, 1e-05
    %v47 = vadd.f32 %v45, 1e-05
    %v48 = vrsqrt.pop %v46
    %v49 = vrsqrt.pop %v47
    %v50 = vmul.f32 %v34, %v48
    %v51 = vmul.f32 %v35, %v49
    %v52 = vld [vmem:[%s2] sm:$0x1]
    %v54 = vlaneseq
    %v55 = vshrl.u32 %v54, 7
    %v56 = vsub.s32 0, %v55
    %v57 = vrot.slane %v52, %v56
    %v59 = vmul.f32 %v50, %v57
    %v60 = vmul.f32 %v51, %v57
    %v61 = vld [vmem:[%s3] sm:$0x1]
    %v63 = vlaneseq
    %v64 = vshrl.u32 %v63, 7
    %v65 = vsub.s32 0, %v64
    %v66 = vrot.slane %v61, %v65
    %v68 = vadd.f32 %v59, %v66
    %v69 = vadd.f32 %v60, %v66
    %70 = vst.msk [vmem:[#allocation2] sm:$0xff] %vm24, %v68
    %71 = vst.msk [vmem:[#allocation2 + $0x8] sm:$0xff] %vm24, %v69
    // Predicated region
    $region18: #{encoder_block.13} parent=1 // pred_check
      _
    $region19: #{encoder_block.13} parent=1 // pred_check_branch
      %73 = sbr.rel (0) target = $region21
    $region20: #{encoder_block.13} parent=1 // pred_region
      %s75 = ssub.s32 256, 256
      %76 = vsyncadd [#allocation3], %s75
      %s77 = sshll.u32 [#allocation2], 4
      %s78 = int_to_ptr.vmem [resolvable:$true] %s77
      %83 = dma.vmem_to_hbm [thread:$0]  %s78, 256, %s4, [#allocation3], 128, 128, 8
    $region21: #{encoder_block.13} parent=1 // pred_fallthru
      _
    // Predicated region
    $region22: #{encoder_block.13} parent=1 // pred_check
      _
    $region23: #{encoder_block.13} parent=1 // pred_check_branch
      %85 = sbr.rel (0) target = $region25
    $region24: #{encoder_block.13} parent=1 // pred_region
      %86 = dma.done [#allocation3], 256
    $region25: #{encoder_block.13} parent=1 // pred_fallthru
      _
    %87 = vsyncpa [#allocation3], 1

// kernel: encoder_block.11
$region0: #{encoder_block.11}
  #allocation0 [shape = 'u32[]', space=smem, size = 0x4, offset = 0x4, fixed_abs, tag = 'smem constant byte address 0x4 - core index']
  #allocation1 [shape = 'u32[144,128]{1,0:T(1,128)}', space=vmem, size = 0x12000, scoped, tag = 'internal scratch']
  #allocation2 [shape = 'f32[16,512]{1,0:T(8,128)}', space=vmem, size = 0x8000, scoped, tag = 'scratch operand']
  %s0 = inlined_call_operand.vmem [shape: f32[16,32], index: 0, kind: input, shape index: {}]
  %s1 = inlined_call_operand.hbm [shape: f32[32,2048], index: 1, kind: input, shape index: {}]
  %s2 = inlined_call_operand.vmem [shape: f32[1,2048], index: 2, kind: input, shape index: {}]
  %s3 = inlined_call_operand.vmem [shape: f32[16,2048], index: 3, kind: output, shape index: {}]
  %s4 = sld [smem:[#allocation0]]
  $region76: #{encoder_block.11} parent=0
    _
  %s6 = ssub.s32 1, %s4
  %s7 = scalar_select 0, %s6, %s4
  $region1: #{encoder_block.11} parent=0
    #allocation3 [shape = 'u8[131072]{0}', space=vmem, size = 0x20000, scoped, tag = 'input window, operand 1']
    #allocation4 [shape = 's32[2]{0}', space=sflag, size = 0x8, scoped, tag = 'scoped memory for encoder_block.11']
    #allocation5 [shape = 'u8[65536]{0}', space=vmem, size = 0x10000, scoped, tag = 'output window, operand 0']
    %8 = vsyncpa [#allocation4], 0
    %s9 = scalar_lea.sflag [#allocation4], 1
    %10 = vsyncpa %s9, 0
    loop: start=0, step=1, limit=6
    $region2: #{encoder_block.11} parent=1 // loop_pre_header
      _
    $region3: #{encoder_block.11} parent=1 // loop_header
      %s12 = sphi 0, %s16
      %p13 = scmp.ge.s32.totalorder %s12, 6
      %s19 = sphi 0, %s38
      %s20 = sphi 0, %s34
      %s21 = sphi 0, %s30
      %s22 = sphi 0, %s19
      %s23 = sphi 0, %s20
      %s24 = sphi 0, %s21
      %s25 = sphi 0, %s22
      %s26 = sphi 0, %s23
      %s27 = sphi 0, %s24
      %s43 = sphi 0, %s45
      %s46 = sphi 0, %s43
      %s47 = sphi 0, %s46
      %s63 = sphi 0, %s47
      %s71 = sphi 0, %s73
      %s74 = sphi 0, %s71
      %s75 = sphi 0, %s74
      %s91 = sphi 0, %s75
      %s97 = sphi 0, %s99
      %s100 = sphi 0, %s97
      %s101 = sphi 0, %s100
      %s117 = sphi 0, %s101
      %s125 = sphi 0, %s127
      %s128 = sphi 0, %s125
      %s129 = sphi 0, %s128
      %s145 = sphi 0, %s129
    $region4: #{encoder_block.11} parent=1 // loop_header_branch
      %15 = sbr.rel (%p13) target = $region8
    $region5: #{encoder_block.11} parent=1 // loop_body
      %s17 = ssub.s32 %s12, 1
      %s18 = ssub.s32 %s12, 2
      %s28 = sadd.s32 1, %s21
      %p29 = scmp.ge.s32.totalorder %s28, 1
      %s30 = scalar_select %p29, 0, %s28
      %s31 = sadd.s32 1, %s20
      %s32 = scalar_select %p29, %s31, %s20
      %p33 = scmp.ge.s32.totalorder %s32, 4
      %s34 = scalar_select %p33, 0, %s32
      %s35 = sadd.s32 1, %s19
      %s36 = scalar_select %p33, %s35, %s19
      %p37 = scmp.ge.s32.totalorder %s36, 1
      %s38 = scalar_select %p37, 0, %s36
      %s39 = ssub.s32 %s19, %s38
      %s40 = ssub.s32 %s21, %s30
      %s41 = sor.u32 %s39, %s40
      %p42 = scmp.eq.s32.totalorder %s41, 0
      %s44 = sadd.s32 %s43, 1
      %s45 = scalar_select %p42, %s43, %s44
      %p48 = pneg %p42
      %p49 = scmp.eq.s32.totalorder %s12, 3
      %p50 = por %p48, %p49
      %p51 = scmp.ne.s32.totalorder %s43, %s46
      %p52 = scmp.eq.s32.totalorder %s12, 0
      %p53 = por %p51, %p52
      %p54 = scmp.ne.s32.totalorder %s43, %s46
      %p55 = scmp.eq.s32.totalorder %s17, 3
      %p56 = por %p54, %p55
      %p57 = scmp.ne.s32.totalorder %s46, %s47
      %p58 = scmp.eq.s32.totalorder %s17, 0
      %p59 = por %p57, %p58
      %p60 = scmp.ne.s32.totalorder %s46, %s47
      %p61 = scmp.eq.s32.totalorder %s18, 3
      %p62 = por %p60, %p61
      %p64 = scmp.ne.s32.totalorder %s47, %s63
      %p65 = scmp.eq.s32.totalorder %s18, 0
      %p66 = por %p64, %p65
      %s67 = ssub.s32 %s21, %s30
      %s68 = ssub.s32 %s20, %s34
      %s69 = sor.u32 %s67, %s68
      %p70 = scmp.eq.s32.totalorder %s69, 0
      %s72 = sadd.s32 %s71, 1
      %s73 = scalar_select %p70, %s71, %s72
      %p76 = pneg %p70
      %p77 = scmp.eq.s32.totalorder %s12, 3
      %p78 = por %p76, %p77
      %p79 = scmp.ne.s32.totalorder %s71, %s74
      %p80 = scmp.eq.s32.totalorder %s12, 0
      %p81 = por %p79, %p80
      %p82 = scmp.ne.s32.totalorder %s71, %s74
      %p83 = scmp.eq.s32.totalorder %s17, 3
      %p84 = por %p82, %p83
      %p85 = scmp.ne.s32.totalorder %s74, %s75
      %p86 = scmp.eq.s32.totalorder %s17, 0
      %p87 = por %p85, %p86
      %p88 = scmp.ne.s32.totalorder %s74, %s75
      %p89 = scmp.eq.s32.totalorder %s18, 3
      %p90 = por %p88, %p89
      %p92 = scmp.ne.s32.totalorder %s75, %s91
      %p93 = scmp.eq.s32.totalorder %s18, 0
      %p94 = por %p92, %p93
      %s95 = ssub.s32 %s20, %s34
      %p96 = scmp.eq.s32.totalorder %s95, 0
      %s98 = sadd.s32 %s97, 1
      %s99 = scalar_select %p96, %s97, %s98
      %p102 = pneg %p96
      %p103 = scmp.eq.s32.totalorder %s12, 3
      %p104 = por %p102, %p103
      %p105 = scmp.ne.s32.totalorder %s97, %s100
      %p106 = scmp.eq.s32.totalorder %s12, 0
      %p107 = por %p105, %p106
      %p108 = scmp.ne.s32.totalorder %s97, %s100
      %p109 = scmp.eq.s32.totalorder %s17, 3
      %p110 = por %p108, %p109
      %p111 = scmp.ne.s32.totalorder %s100, %s101
      %p112 = scmp.eq.s32.totalorder %s17, 0
      %p113 = por %p111, %p112
      %p114 = scmp.ne.s32.totalorder %s100, %s101
      %p115 = scmp.eq.s32.totalorder %s18, 3
      %p116 = por %p114, %p115
      %p118 = scmp.ne.s32.totalorder %s101, %s117
      %p119 = scmp.eq.s32.totalorder %s18, 0
      %p120 = por %p118, %p119
      %s121 = ssub.s32 %s19, %s38
      %s122 = ssub.s32 %s20, %s34
      %s123 = sor.u32 %s121, %s122
      %p124 = scmp.eq.s32.totalorder %s123, 0
      %s126 = sadd.s32 %s125, 1
      %s127 = scalar_select %p124, %s125, %s126
      %p130 = pneg %p124
      %p131 = scmp.eq.s32.totalorder %s12, 3
      %p132 = por %p130, %p131
      %p133 = scmp.ne.s32.totalorder %s125, %s128
      %p134 = scmp.eq.s32.totalorder %s12, 0
      %p135 = por %p133, %p134
      %p136 = scmp.ne.s32.totalorder %s125, %s128
      %p137 = scmp.eq.s32.totalorder %s17, 3
      %p138 = por %p136, %p137
      %p139 = scmp.ne.s32.totalorder %s128, %s129
      %p140 = scmp.eq.s32.totalorder %s17, 0
      %p141 = por %p139, %p140
      %p142 = scmp.ne.s32.totalorder %s128, %s129
      %p143 = scmp.eq.s32.totalorder %s18, 3
      %p144 = por %p142, %p143
      %p146 = scmp.ne.s32.totalorder %s129, %s145
      %p147 = scmp.eq.s32.totalorder %s18, 0
      %p148 = por %p146, %p147
      %p149 = scmp.le.s32.totalorder 1, %s12
      %p150 = scmp.lt.s32.totalorder %s12, 5
      %p151 = pnand %p149, %p150
      %p152 = pneg %p151
      // Predicated region
      $region9: #{encoder_block.11} parent=5 // pred_check
        _
      $region10: #{encoder_block.11} parent=5 // pred_check_branch
        %154 = sbr.rel (%p151) target = $region12
      $region11: #{encoder_block.11} parent=5 // pred_region
        %s155 = ssub.s32 %s12, 1
        // Predicated region
        $region13: #{encoder_block.11} parent=11 // pred_check
          %p156 = pneg %p59
        $region14: #{encoder_block.11} parent=11 // pred_check_branch
          %158 = sbr.rel (%p156) target = $region16
        $region15: #{encoder_block.11} parent=11 // pred_region
          %s159 = smul.u32 2, %s22
          %p160 = scmp.lt.s32.totalorder %s159, 1
          %s161 = scalar_select %p160, %s159, 1
          %p162 = scmp.lt.s32.totalorder %s24, 0
          %s163 = scalar_select %p162, %s24, 0
          %s164 = sadd.s32 %s163, %s161
          %s165 = smul.addr %s164, 8
          %s166 = scalar_lea.vmem %s0, %s165
          %s167 = smul.u32 2, %s22
        $region16: #{encoder_block.11} parent=11 // pred_fallthru
          _
      $region12: #{encoder_block.11} parent=5 // pred_fallthru
        _
      %p168 = scmp.lt.s32.totalorder %s12, 4
      // Predicated region
      $region17: #{encoder_block.11} parent=5 // pred_check
        %p169 = pneg %p168
      $region18: #{encoder_block.11} parent=5 // pred_check_branch
        %171 = sbr.rel (%p169) target = $region20
      $region19: #{encoder_block.11} parent=5 // pred_region
        // Predicated region
        $region21: #{encoder_block.11} parent=19 // pred_check
          %p172 = pneg %p81
        $region22: #{encoder_block.11} parent=19 // pred_check_branch
          %174 = sbr.rel (%p172) target = $region24
        $region23: #{encoder_block.11} parent=19 // pred_region
          %s175 = sand.u32 %s71, 1
          %s176 = scalar_lea.sflag [#allocation4], %s175
          %s177 = sand.u32 %s71, 1
          %s178 = smul.addr %s177, 128
          %s179 = scalar_lea.vmem [#allocation3], %s178
          %s180 = smul.u32 4, %s21
          %s181 = smul.u32 4, %s20
          %s183 = ssub.s32 2048, 2048
          %184 = vsyncadd %s176, %s183
          %s185 = smul.addr %s180, 16
          %s186 = sadd.s32 %s181, %s185
          %s187 = smul.addr %s186, 128
          %s188 = scalar_lea.hbm %s1, %s187
          %s189 = sshll.u32 %s179, 4
          %s190 = int_to_ptr.vmem [resolvable:$true] %s189
          %195 = dma.hbm_to_vmem [thread:$0]  %s188, 2048, %s190, %s176, 2048, 512, 32
        $region24: #{encoder_block.11} parent=19 // pred_fallthru
          _
        // Predicated region
        $region25: #{encoder_block.11} parent=19 // pred_check
          %p196 = pneg %p107
        $region26: #{encoder_block.11} parent=19 // pred_check_branch
          %198 = sbr.rel (%p196) target = $region28
        $region27: #{encoder_block.11} parent=19 // pred_region
          %s199 = smul.u32 4, %s20
          %p200 = scmp.lt.s32.totalorder %s199, 15
          %s201 = scalar_select %p200, %s199, 15
          %s202 = scalar_lea.vmem %s2, %s201
          %s203 = smul.u32 4, %s20
        $region28: #{encoder_block.11} parent=19 // pred_fallthru
          _
      $region20: #{encoder_block.11} parent=5 // pred_fallthru
        _
      %p204 = scmp.le.s32.totalorder 1, %s12
      %p205 = scmp.lt.s32.totalorder %s12, 5
      %p206 = pnand %p204, %p205
      %p207 = pneg %p206
      // Predicated region
      $region29: #{encoder_block.11} parent=5 // pred_check
        _
      $region30: #{encoder_block.11} parent=5 // pred_check_branch
        %209 = sbr.rel (%p206) target = $region32
      $region31: #{encoder_block.11} parent=5 // pred_region
        %s210 = ssub.s32 %s12, 1
        %s211 = sand.u32 %s74, 1
        %s212 = scalar_lea.sflag [#allocation4], %s211
        %s213 = sand.u32 %s74, 1
        %s214 = smul.addr %s213, 128
        %s215 = scalar_lea.vmem [#allocation3], %s214
        // Predicated region
        $region33: #{encoder_block.11} parent=31 // pred_check
          %p216 = pneg %p87
        $region34: #{encoder_block.11} parent=31 // pred_check_branch
          %218 = sbr.rel (%p216) target = $region36
        $region35: #{encoder_block.11} parent=31 // pred_region
          %219 = dma.done %s212, 2048
        $region36: #{encoder_block.11} parent=31 // pred_fallthru
          _
        %s220 = smul.u32 2, %s22
        %p221 = scmp.lt.s32.totalorder %s220, 1
        %s222 = scalar_select %p221, %s220, 1
        %p223 = scmp.lt.s32.totalorder %s24, 0
        %s224 = scalar_select %p223, %s24, 0
        %s225 = sadd.s32 %s224, %s222
        %s226 = smul.addr %s225, 8
        %s227 = scalar_lea.vmem %s0, %s226
        %p228 = pneg %p59
        %p229 = pneg %p56
        %s230 = sand.u32 %s74, 1
        %s231 = scalar_lea.sflag [#allocation4], %s230
        %s232 = sand.u32 %s74, 1
        %s233 = smul.addr %s232, 128
        %s234 = scalar_lea.vmem [#allocation3], %s233
        %p235 = pneg %p87
        %p236 = pneg %p84
        %s237 = smul.u32 4, %s23
        %p238 = scmp.lt.s32.totalorder %s237, 15
        %s239 = scalar_select %p238, %s237, 15
        %s240 = scalar_lea.vmem %s2, %s239
        %p241 = pneg %p113
        %p242 = pneg %p110
        %p243 = pneg %p141
        %p244 = pneg %p138
        %s245 = sand.u32 %s128, 1
        %s246 = sand.u32 %s128, 1
        %s247 = smul.addr %s246, 64
        %s248 = scalar_lea.vmem [#allocation5], %s247
        %s249 = smul.u32 2, %s22
        %p250 = scmp.lt.s32.totalorder %s249, 1
        %s251 = scalar_select %p250, %s249, 1
        %p252 = scmp.lt.s32.totalorder %s24, 0
        %s253 = scalar_select %p252, %s24, 0
        %s254 = sadd.s32 %s253, %s251
        %s255 = smul.addr %s254, 8
        %s256 = scalar_lea.vmem %s0, %s255
        %s257 = smul.u32 2, %s22
        %s258 = smul.u32 4, %s24
        %s259 = smul.u32 4, %s23
        %s260 = smul.u32 4, %s23
        %p261 = scmp.lt.s32.totalorder %s260, 15
        %s262 = scalar_select %p261, %s260, 15
        %s263 = scalar_lea.vmem %s2, %s262
        %s264 = smul.u32 4, %s23
        %s265 = smul.u32 2, %s22
        %s266 = smul.u32 4, %s23
        %p267 = scmp.eq.s32.totalorder %s24, 0
        // Predicated region
        $region37: #{encoder_block.11} parent=31 // pred_check
          %p268 = pneg %p267
        $region38: #{encoder_block.11} parent=31 // pred_check_branch
          %270 = sbr.rel (%p268) target = $region40
        $region39: #{encoder_block.11} parent=31 // pred_region
          %271 = vst [vmem:[#allocation2] sm:$0xff] 0.0
          %272 = vst [vmem:[#allocation2 + $0x8] sm:$0xff] 0.0
          %273 = vst [vmem:[#allocation2 + $0x10] sm:$0xff] 0.0
          %274 = vst [vmem:[#allocation2 + $0x18] sm:$0xff] 0.0
          %275 = vst [vmem:[#allocation2 + $0x20] sm:$0xff] 0.0
          %276 = vst [vmem:[#allocation2 + $0x28] sm:$0xff] 0.0
          %277 = vst [vmem:[#allocation2 + $0x30] sm:$0xff] 0.0
          %278 = vst [vmem:[#allocation2 + $0x38] sm:$0xff] 0.0
        $region40: #{encoder_block.11} parent=31 // pred_fallthru
          _
        %v279 = vld [vmem:[#allocation2] sm:$0xff]
        %v280 = vld [vmem:[#allocation2 + $0x8] sm:$0xff]
        %v281 = vld [vmem:[#allocation2 + $0x10] sm:$0xff]
        %v282 = vld [vmem:[#allocation2 + $0x18] sm:$0xff]
        %v283 = vld [vmem:[#allocation2 + $0x20] sm:$0xff]
        %v284 = vld [vmem:[#allocation2 + $0x28] sm:$0xff]
        %v285 = vld [vmem:[#allocation2 + $0x30] sm:$0xff]
        %v286 = vld [vmem:[#allocation2 + $0x38] sm:$0xff]
        %v287 = vld [vmem:[%s256] sm:$0xff]
        %v288 = vld [vmem:[%s256 + $0x8] sm:$0xff]
        %v289 = vld [vmem:[%s215] sm:$0xff]
        %v290 = vld [vmem:[%s215 + $0x8] sm:$0xff]
        %v291 = vld [vmem:[%s215 + $0x10] sm:$0xff]
        %v292 = vld [vmem:[%s215 + $0x18] sm:$0xff]
        %v293 = vld [vmem:[%s215 + $0x20] sm:$0xff]
        %v294 = vld [vmem:[%s215 + $0x28] sm:$0xff]
        %v295 = vld [vmem:[%s215 + $0x30] sm:$0xff]
        %v296 = vld [vmem:[%s215 + $0x38] sm:$0xff]
        %v297 = vld [vmem:[%s215 + $0x40] sm:$0xff]
        %v298 = vld [vmem:[%s215 + $0x48] sm:$0xff]
        %v299 = vld [vmem:[%s215 + $0x50] sm:$0xff]
        %v300 = vld [vmem:[%s215 + $0x58] sm:$0xff]
        %v301 = vld [vmem:[%s215 + $0x60] sm:$0xff]
        %v302 = vld [vmem:[%s215 + $0x68] sm:$0xff]
        %v303 = vld [vmem:[%s215 + $0x70] sm:$0xff]
        %v304 = vld [vmem:[%s215 + $0x78] sm:$0xff]
        %vm305 = vcmask 261120
        %v307 = vsel %vm305, %v287, 0
        %v310 = vsel %vm305, %v288, 0
        %312 = vmatprep.subr.mxu0 %v290
        %313 = vmatpush1.msra.mxu0 %v289
        %314 = vmatprep.subr.mxu0 %v294
        %315 = vmatpush1.msra.mxu0 %v293
        %316 = vmatprep.subr.mxu0 %v298
        %317 = vmatpush1.msra.mxu0 %v297
        %318 = vmatprep.subr.mxu0 %v302
        %319 = vmatpush1.msra.mxu0 %v301
        %320 = vmatprep.subr.mxu0 0.0
        %321 = vmatpush1.msra.mxu0 0.0
        %322 = vmatprep.subr.mxu0 0.0
        %323 = vmatpush1.msra.mxu0 0.0
        %324 = vmatprep.subr.mxu0 0.0
        %325 = vmatpush1.msra.mxu0 0.0
        %326 = vmatprep.subr.mxu0 0.0
        %327 = vmatpush1.msra.mxu0 0.0
        %328 = vmatprep.subr.mxu0 0.0
        %329 = vmatpush1.msra.mxu0 0.0
        %330 = vmatprep.subr.mxu0 0.0
        %331 = vmatpush1.msra.mxu0 0.0
        %332 = vmatprep.subr.mxu0 0.0
        %333 = vmatpush1.msra.mxu0 0.0
        %334 = vmatprep.subr.mxu0 0.0
        %335 = vmatpush1.msra.mxu0 0.0
        %336 = vmatprep.subr.mxu0 0.0
        %337 = vmatpush1.msra.mxu0 0.0
        %338 = vmatprep.subr.mxu0 0.0
        %339 = vmatpush1.msra.mxu0 0.0
        %340 = vmatprep.subr.mxu0 0.0
        %341 = vmatpush1.msra.mxu0 0.0
        %342 = vmatprep.subr.mxu0 0.0
        %343 = vmatpush1.msra.mxu0 0.0
        %344 = vmatprep.subr.mxu0 0.0
        %345 = vmatpush1.msra.mxu0 0.0
        %346 = vmatprep.subr.mxu0 0.0
        %347 = vmatpush1.msra.mxu0 0.0
        %348 = vmatprep.subr.mxu0 0.0
        %349 = vmatpush1.msra.mxu0 0.0
        %350 = vmatprep.subr.mxu0 0.0
        %351 = vmatpush1.msra.mxu0 0.0
        %352 = vmatprep.subr.mxu0 0.0
        %353 = vmatpush1.msra.mxu0 0.0
        %354 = vmatprep.subr.mxu0 0.0
        %355 = vmatpush1.msra.mxu0 0.0
        %356 = vmatprep.subr.mxu0 0.0
        %357 = vmatpush1.msra.mxu0 0.0
        %358 = vmatprep.subr.mxu0 0.0
        %359 = vmatpush1.msra.mxu0 0.0
        %360 = vmatprep.subr.mxu0 0.0
        %361 = vmatpush1.msra.mxu0 0.0
        %362 = vmatprep.subr.mxu0 0.0
        %363 = vmatpush1.msra.mxu0 0.0
        %364 = vmatprep.subr.mxu0 0.0
        %365 = vmatpush1.msra.mxu0 0.0
        %366 = vmatprep.subr.mxu0 0.0
        %367 = vmatpush1.msra.mxu0 0.0
        %368 = vmatprep.subr.mxu0 0.0
        %369 = vmatpush1.msra.mxu0 0.0
        %370 = vmatprep.subr.mxu0 0.0
        %371 = vmatpush1.msra.mxu0 0.0
        %372 = vmatprep.subr.mxu0 0.0
        %373 = vmatpush1.msra.mxu0 0.0
        %374 = vmatprep.subr.mxu0 0.0
        %375 = vmatpush1.msra.mxu0 0.0
        %376 = vmatprep.mubr.f32.mxu0 0.0
        %377 = vmatmul.mubr.f32.gmra.mrb[0].mxu0 %v307
        %v378 = vpop.f32.mrb[0].mxu0
        %v379 = vadd.f32 0.0, %v378
        %v380 = vpop.f32.mrb[0].mxu0
        %v381 = vadd.f32 0.0, %v380
        %382 = vmatprep.mubr.f32.mxu0 0.0
        %383 = vmatmul.mubr.f32.gmra.mrb[0].mxu0 %v310
        %v384 = vpop.f32.mrb[0].mxu0
        %v385 = vadd.f32 0.0, %v384
        %v386 = vpop.f32.mrb[0].mxu0
        %v387 = vadd.f32 0.0, %v386
        %388 = vdwg.mxu0
        %389 = vmatprep.subr.mxu0 %v292
        %390 = vmatpush1.msra.mxu0 %v291
        %391 = vmatprep.subr.mxu0 %v296
        %392 = vmatpush1.msra.mxu0 %v295
        %393 = vmatprep.subr.mxu0 %v300
        %394 = vmatpush1.msra.mxu0 %v299
        %395 = vmatprep.subr.mxu0 %v304
        %396 = vmatpush1.msra.mxu0 %v303
        %397 = vmatprep.subr.mxu0 0.0
        %398 = vmatpush1.msra.mxu0 0.0
        %399 = vmatprep.subr.mxu0 0.0
        %400 = vmatpush1.msra.mxu0 0.0
        %401 = vmatprep.subr.mxu0 0.0
        %402 = vmatpush1.msra.mxu0 0.0
        %403 = vmatprep.subr.mxu0 0.0
        %404 = vmatpush1.msra.mxu0 0.0
        %405 = vmatprep.subr.mxu0 0.0
        %406 = vmatpush1.msra.mxu0 0.0
        %407 = vmatprep.subr.mxu0 0.0
        %408 = vmatpush1.msra.mxu0 0.0
        %409 = vmatprep.subr.mxu0 0.0
        %410 = vmatpush1.msra.mxu0 0.0
        %411 = vmatprep.subr.mxu0 0.0
        %412 = vmatpush1.msra.mxu0 0.0
        %413 = vmatprep.subr.mxu0 0.0
        %414 = vmatpush1.msra.mxu0 0.0
        %415 = vmatprep.subr.mxu0 0.0
        %416 = vmatpush1.msra.mxu0 0.0
        %417 = vmatprep.subr.mxu0 0.0
        %418 = vmatpush1.msra.mxu0 0.0
        %419 = vmatprep.subr.mxu0 0.0
        %420 = vmatpush1.msra.mxu0 0.0
        %421 = vmatprep.subr.mxu0 0.0
        %422 = vmatpush1.msra.mxu0 0.0
        %423 = vmatprep.subr.mxu0 0.0
        %424 = vmatpush1.msra.mxu0 0.0
        %425 = vmatprep.subr.mxu0 0.0
        %426 = vmatpush1.msra.mxu0 0.0
        %427 = vmatprep.subr.mxu0 0.0
        %428 = vmatpush1.msra.mxu0 0.0
        %429 = vmatprep.subr.mxu0 0.0
        %430 = vmatpush1.msra.mxu0 0.0
        %431 = vmatprep.subr.mxu0 0.0
        %432 = vmatpush1.msra.mxu0 0.0
        %433 = vmatprep.subr.mxu0 0.0
        %434 = vmatpush1.msra.mxu0 0.0
        %435 = vmatprep.subr.mxu0 0.0
        %436 = vmatpush1.msra.mxu0 0.0
        %437 = vmatprep.subr.mxu0 0.0
        %438 = vmatpush1.msra.mxu0 0.0
        %439 = vmatprep.subr.mxu0 0.0
        %440 = vmatpush1.msra.mxu0 0.0
        %441 = vmatprep.subr.mxu0 0.0
        %442 = vmatpush1.msra.mxu0 0.0
        %443 = vmatprep.subr.mxu0 0.0
        %444 = vmatpush1.msra.mxu0 0.0
        %445 = vmatprep.subr.mxu0 0.0
        %446 = vmatpush1.msra.mxu0 0.0
        %447 = vmatprep.subr.mxu0 0.0
        %448 = vmatpush1.msra.mxu0 0.0
        %449 = vmatprep.subr.mxu0 0.0
        %450 = vmatpush1.msra.mxu0 0.0
        %451 = vmatprep.subr.mxu0 0.0
        %452 = vmatpush1.msra.mxu0 0.0
        %453 = vmatprep.mubr.f32.mxu0 0.0
        %454 = vmatmul.mubr.f32.gmra.mrb[0].mxu0 %v307
        %v455 = vpop.f32.mrb[0].mxu0
        %v456 = vadd.f32 0.0, %v455
        %v457 = vpop.f32.mrb[0].mxu0
        %v458 = vadd.f32 0.0, %v457
        %459 = vmatprep.mubr.f32.mxu0 0.0
        %460 = vmatmul.mubr.f32.gmra.mrb[0].mxu0 %v310
        %v461 = vpop.f32.mrb[0].mxu0
        %v462 = vadd.f32 0.0, %v461
        %v463 = vpop.f32.mrb[0].mxu0
        %v464 = vadd.f32 0.0, %v463
        %465 = vdwg.mxu0
        %v466 = vadd.f32 %v279, %v379
        %v467 = vadd.f32 %v280, %v381
        %v468 = vadd.f32 %v281, %v456
        %v469 = vadd.f32 %v282, %v458
        %v470 = vadd.f32 %v283, %v385
        %v471 = vadd.f32 %v284, %v387
        %v472 = vadd.f32 %v285, %v462
        %v473 = vadd.f32 %v286, %v464
        %474 = vst [vmem:[#allocation2] sm:$0xff] %v466
        %475 = vst [vmem:[#allocation2 + $0x8] sm:$0xff] %v467
        %476 = vst [vmem:[#allocation2 + $0x10] sm:$0xff] %v468
        %477 = vst [vmem:[#allocation2 + $0x18] sm:$0xff] %v469
        %478 = vst [vmem:[#allocation2 + $0x20] sm:$0xff] %v470
        %479 = vst [vmem:[#allocation2 + $0x28] sm:$0xff] %v471
        %480 = vst [vmem:[#allocation2 + $0x30] sm:$0xff] %v472
        %481 = vst [vmem:[#allocation2 + $0x38] sm:$0xff] %v473
        // Predicated region
        $region41: #{encoder_block.11} parent=31 // pred_check
          %p482 = pneg %p267
        $region42: #{encoder_block.11} parent=31 // pred_check_branch
          %484 = sbr.rel (%p482) target = $region44
        $region43: #{encoder_block.11} parent=31 // pred_region
          %v485 = vld [vmem:[#allocation2] sm:$0xff]
          %v486 = vld [vmem:[#allocation2 + $0x8] sm:$0xff]
          %v487 = vld [vmem:[#allocation2 + $0x10] sm:$0xff]
          %v488 = vld [vmem:[#allocation2 + $0x18] sm:$0xff]
          %v489 = vld [vmem:[#allocation2 + $0x20] sm:$0xff]
          %v490 = vld [vmem:[#allocation2 + $0x28] sm:$0xff]
          %v491 = vld [vmem:[#allocation2 + $0x30] sm:$0xff]
          %v492 = vld [vmem:[#allocation2 + $0x38] sm:$0xff]
          %v493 = vld [vmem:[%s263] sm:$0xf]
          %v495 = vlaneseq
          %v496 = vshrl.u32 %v495, 7
          %v497 = vsub.s32 0, %v496
          %v498 = vrot.slane %v493, %v497
          %v499 = vlaneseq
          %v500 = vshrl.u32 %v499, 7
          %v501 = vsub.s32 1, %v500
          %v502 = vrot.slane %v493, %v501
          %v503 = vlaneseq
          %v504 = vshrl.u32 %v503, 7
          %v505 = vsub.s32 2, %v504
          %v506 = vrot.slane %v493, %v505
          %v507 = vlaneseq
          %v508 = vshrl.u32 %v507, 7
          %v509 = vsub.s32 3, %v508
          %v510 = vrot.slane %v493, %v509
          %v515 = vadd.f32 %v485, %v498
          %v516 = vadd.f32 %v486, %v502
          %v517 = vadd.f32 %v487, %v506
          %v518 = vadd.f32 %v488, %v510
          %v519 = vadd.f32 %v489, %v498
          %v520 = vadd.f32 %v490, %v502
          %v521 = vadd.f32 %v491, %v506
          %v522 = vadd.f32 %v492, %v510
          %v523 = vmax.f32 %v515, 0.0
          %v524 = vmax.f32 %v516, 0.0
          %v525 = vmax.f32 %v517, 0.0
          %v526 = vmax.f32 %v518, 0.0
          %v527 = vmax.f32 %v519, 0.0
          %v528 = vmax.f32 %v520, 0.0
          %v529 = vmax.f32 %v521, 0.0
          %v530 = vmax.f32 %v522, 0.0
          %531 = vst [vmem:[%s248] sm:$0xff] %v523
          %532 = vst [vmem:[%s248 + $0x8] sm:$0xff] %v524
          %533 = vst [vmem:[%s248 + $0x10] sm:$0xff] %v525
          %534 = vst [vmem:[%s248 + $0x18] sm:$0xff] %v526
          %535 = vst [vmem:[%s248 + $0x20] sm:$0xff] %v527
          %536 = vst [vmem:[%s248 + $0x28] sm:$0xff] %v528
          %537 = vst [vmem:[%s248 + $0x30] sm:$0xff] %v529
          %538 = vst [vmem:[%s248 + $0x38] sm:$0xff] %v530
        $region44: #{encoder_block.11} parent=31 // pred_fallthru
          _
        %s539 = sand.u32 %s128, 1
        %s540 = sand.u32 %s128, 1
        %s541 = smul.addr %s540, 64
        %s542 = scalar_lea.vmem [#allocation5], %s541
        // Predicated region
        $region45: #{encoder_block.11} parent=31 // pred_check
          %p543 = pneg %p138
        $region46: #{encoder_block.11} parent=31 // pred_check_branch
          %545 = sbr.rel (%p543) target = $region48
        $region47: #{encoder_block.11} parent=31 // pred_region
          %s546 = smul.u32 2, %s22
          %s547 = smul.u32 4, %s23
          %s548 = smul.addr %s546, 16
          %s549 = sadd.s32 %s547, %s548
          %s550 = smul.addr %s549, 8
          %s551 = scalar_lea.vmem %s3, %s550
          // Predicated region
          $region49: #{encoder_block.11} parent=47 // pred_check
            _
          $region50: #{encoder_block.11} parent=47 // pred_check_branch
            %553 = sbr.rel (0) target = $region52
          $region51: #{encoder_block.11} parent=47 // pred_region
            // Predicated region
            $region53: #{encoder_block.11} parent=51 // pred_check
              _
            $region54: #{encoder_block.11} parent=51 // pred_check_branch
              %555 = sbr.rel (0) target = $region56
            $region55: #{encoder_block.11} parent=51 // pred_region
              loop: start=0, step=1, limit=1
              $region57: #{encoder_block.11} parent=55 // loop_pre_header
                _
              $region58: #{encoder_block.11} parent=55 // loop_header
                %s557 = sphi 0, %s561
                %p558 = scmp.ge.s32.totalorder %s557, 1
                %s562 = sphi %s542, %s542
                %s563 = sphi %s551, %s551
              $region59: #{encoder_block.11} parent=55 // loop_header_branch
                %560 = sbr.rel (%p558) target = $region63
              $region60: #{encoder_block.11} parent=55 // loop_body
                %v564 = vld [vmem:[%s562] sm:$0xff]
                %565 = vst [vmem:[%s563] sm:$0xff] %v564
                %v566 = vld [vmem:[%s562 + $0x8] sm:$0xff]
                %567 = vst [vmem:[%s563 + $0x8] sm:$0xff] %v566
                %v568 = vld [vmem:[%s562 + $0x10] sm:$0xff]
                %569 = vst [vmem:[%s563 + $0x10] sm:$0xff] %v568
                %v570 = vld [vmem:[%s562 + $0x18] sm:$0xff]
                %571 = vst [vmem:[%s563 + $0x18] sm:$0xff] %v570
                %v572 = vld [vmem:[%s562 + $0x20] sm:$0xff]
                %573 = vst [vmem:[%s563 + $0x80] sm:$0xff] %v572
                %v574 = vld [vmem:[%s562 + $0x28] sm:$0xff]
                %575 = vst [vmem:[%s563 + $0x88] sm:$0xff] %v574
                %v576 = vld [vmem:[%s562 + $0x30] sm:$0xff]
                %577 = vst [vmem:[%s563 + $0x90] sm:$0xff] %v576
                %v578 = vld [vmem:[%s562 + $0x38] sm:$0xff]
                %579 = vst [vmem:[%s563 + $0x98] sm:$0xff] %v578
              $region61: #{encoder_block.11} parent=55 // loop_footer
                %s561 = sadd.s32 1, %s557
              $region62: #{encoder_block.11} parent=55 // loop_footer_branch
                %556 = sbr.rel target = $region58
              $region63: #{encoder_block.11} parent=55 // loop_exit
                _
            $region56: #{encoder_block.11} parent=51 // pred_fallthru
              _
            // Predicated region
            $region64: #{encoder_block.11} parent=51 // pred_check
              _
            $region65: #{encoder_block.11} parent=51 // pred_check_branch
              %581 = sbr.rel target = $region67
            $region66: #{encoder_block.11} parent=51 // pred_region
              _
            $region67: #{encoder_block.11} parent=51 // pred_fallthru
              _
          $region52: #{encoder_block.11} parent=47 // pred_fallthru
            _
          %582 = vnop
        $region48: #{encoder_block.11} parent=31 // pred_fallthru
          _
      $region32: #{encoder_block.11} parent=5 // pred_fallthru
        _
      %p583 = scmp.le.s32.totalorder 2, %s12
      // Predicated region
      $region68: #{encoder_block.11} parent=5 // pred_check
        %p584 = pneg %p583
      $region69: #{encoder_block.11} parent=5 // pred_check_branch
        %586 = sbr.rel (%p584) target = $region71
      $region70: #{encoder_block.11} parent=5 // pred_region
        %s587 = ssub.s32 %s12, 2
        // Predicated region
        $region72: #{encoder_block.11} parent=70 // pred_check
          %p588 = pneg %p144
        $region73: #{encoder_block.11} parent=70 // pred_check_branch
          %590 = sbr.rel (%p588) target = $region75
        $region74: #{encoder_block.11} parent=70 // pred_region
          %s591 = sand.u32 %s129, 1
          %s592 = sand.u32 %s129, 1
          %s593 = smul.addr %s592, 64
          %s594 = scalar_lea.vmem [#allocation5], %s593
        $region75: #{encoder_block.11} parent=70 // pred_fallthru
          _
      $region71: #{encoder_block.11} parent=5 // pred_fallthru
        _
    $region6: #{encoder_block.11} parent=1 // loop_footer
      %s16 = sadd.s32 1, %s12
    $region7: #{encoder_block.11} parent=1 // loop_footer_branch
      %11 = sbr.rel target = $region3
    $region8: #{encoder_block.11} parent=1 // loop_exit
      _
    %595 = vsyncpa [#allocation4], 1
    %s596 = scalar_lea.sflag [#allocation4], 1
    %597 = vsyncpa %s596, 1

// kernel: encoder_block.12
$region0: #{encoder_block.12}
  #allocation0 [shape = 'u32[]', space=smem, size = 0x4, offset = 0x4, fixed_abs, tag = 'smem constant byte address 0x4 - core index']
  #allocation1 [shape = 'u32[144,128]{1,0:T(1,128)}', space=vmem, size = 0x12000, scoped, tag = 'internal scratch']
  #allocation2 [shape = 'f32[16,32]{1,0:T(8,128)}', space=vmem, size = 0x2000, scoped, tag = 'scratch operand']
  %s0 = inlined_call_operand.vmem [shape: f32[16,2048], index: 0, kind: input, shape index: {}]
  %s1 = inlined_call_operand.vmem [shape: f32[2048,32], index: 1, kind: input, shape index: {}]
  %s2 = inlined_call_operand.vmem [shape: f32[1,32], index: 2, kind: input, shape index: {}]
  %s3 = inlined_call_operand.vmem [shape: f32[16,32], index: 3, kind: output, shape index: {}]
  %s4 = sld [smem:[#allocation0]]
  $region76: #{encoder_block.12} parent=0
    _
  %s6 = ssub.s32 1, %s4
  %s7 = scalar_select 0, %s6, %s4
  $region1: #{encoder_block.12} parent=0
    #allocation3 [shape = 'u8[65536]{0}', space=vmem, size = 0x10000, scoped, tag = 'input window, operand 0']
    loop: start=0, step=1, limit=6
    $region2: #{encoder_block.12} parent=1 // loop_pre_header
      _
    $region3: #{encoder_block.12} parent=1 // loop_header
      %s9 = sphi 0, %s13
      %p10 = scmp.ge.s32.totalorder %s9, 6
      %s16 = sphi 0, %s35
      %s17 = sphi 0, %s31
      %s18 = sphi 0, %s27
      %s19 = sphi 0, %s16
      %s20 = sphi 0, %s17
      %s21 = sphi 0, %s18
      %s22 = sphi 0, %s19
      %s23 = sphi 0, %s20
      %s24 = sphi 0, %s21
      %s40 = sphi 0, %s42
      %s43 = sphi 0, %s40
      %s44 = sphi 0, %s43
      %s60 = sphi 0, %s44
      %s68 = sphi 0, %s70
      %s71 = sphi 0, %s68
      %s72 = sphi 0, %s71
      %s88 = sphi 0, %s72
      %s94 = sphi 0, %s96
      %s97 = sphi 0, %s94
      %s98 = sphi 0, %s97
      %s114 = sphi 0, %s98
      %s122 = sphi 0, %s124
      %s125 = sphi 0, %s122
      %s126 = sphi 0, %s125
      %s142 = sphi 0, %s126
    $region4: #{encoder_block.12} parent=1 // loop_header_branch
      %12 = sbr.rel (%p10) target = $region8
    $region5: #{encoder_block.12} parent=1 // loop_body
      %s14 = ssub.s32 %s9, 1
      %s15 = ssub.s32 %s9, 2
      %s25 = sadd.s32 1, %s18
      %p26 = scmp.ge.s32.totalorder %s25, 4
      %s27 = scalar_select %p26, 0, %s25
      %s28 = sadd.s32 1, %s17
      %s29 = scalar_select %p26, %s28, %s17
      %p30 = scmp.ge.s32.totalorder %s29, 1
      %s31 = scalar_select %p30, 0, %s29
      %s32 = sadd.s32 1, %s16
      %s33 = scalar_select %p30, %s32, %s16
      %p34 = scmp.ge.s32.totalorder %s33, 1
      %s35 = scalar_select %p34, 0, %s33
      %s36 = ssub.s32 %s16, %s35
      %s37 = ssub.s32 %s18, %s27
      %s38 = sor.u32 %s36, %s37
      %p39 = scmp.eq.s32.totalorder %s38, 0
      %s41 = sadd.s32 %s40, 1
      %s42 = scalar_select %p39, %s40, %s41
      %p45 = pneg %p39
      %p46 = scmp.eq.s32.totalorder %s9, 3
      %p47 = por %p45, %p46
      %p48 = scmp.ne.s32.totalorder %s40, %s43
      %p49 = scmp.eq.s32.totalorder %s9, 0
      %p50 = por %p48, %p49
      %p51 = scmp.ne.s32.totalorder %s40, %s43
      %p52 = scmp.eq.s32.totalorder %s14, 3
      %p53 = por %p51, %p52
      %p54 = scmp.ne.s32.totalorder %s43, %s44
      %p55 = scmp.eq.s32.totalorder %s14, 0
      %p56 = por %p54, %p55
      %p57 = scmp.ne.s32.totalorder %s43, %s44
      %p58 = scmp.eq.s32.totalorder %s15, 3
      %p59 = por %p57, %p58
      %p61 = scmp.ne.s32.totalorder %s44, %s60
      %p62 = scmp.eq.s32.totalorder %s15, 0
      %p63 = por %p61, %p62
      %s64 = ssub.s32 %s18, %s27
      %s65 = ssub.s32 %s17, %s31
      %s66 = sor.u32 %s64, %s65
      %p67 = scmp.eq.s32.totalorder %s66, 0
      %s69 = sadd.s32 %s68, 1
      %s70 = scalar_select %p67, %s68, %s69
      %p73 = pneg %p67
      %p74 = scmp.eq.s32.totalorder %s9, 3
      %p75 = por %p73, %p74
      %p76 = scmp.ne.s32.totalorder %s68, %s71
      %p77 = scmp.eq.s32.totalorder %s9, 0
      %p78 = por %p76, %p77
      %p79 = scmp.ne.s32.totalorder %s68, %s71
      %p80 = scmp.eq.s32.totalorder %s14, 3
      %p81 = por %p79, %p80
      %p82 = scmp.ne.s32.totalorder %s71, %s72
      %p83 = scmp.eq.s32.totalorder %s14, 0
      %p84 = por %p82, %p83
      %p85 = scmp.ne.s32.totalorder %s71, %s72
      %p86 = scmp.eq.s32.totalorder %s15, 3
      %p87 = por %p85, %p86
      %p89 = scmp.ne.s32.totalorder %s72, %s88
      %p90 = scmp.eq.s32.totalorder %s15, 0
      %p91 = por %p89, %p90
      %s92 = ssub.s32 %s17, %s31
      %p93 = scmp.eq.s32.totalorder %s92, 0
      %s95 = sadd.s32 %s94, 1
      %s96 = scalar_select %p93, %s94, %s95
      %p99 = pneg %p93
      %p100 = scmp.eq.s32.totalorder %s9, 3
      %p101 = por %p99, %p100
      %p102 = scmp.ne.s32.totalorder %s94, %s97
      %p103 = scmp.eq.s32.totalorder %s9, 0
      %p104 = por %p102, %p103
      %p105 = scmp.ne.s32.totalorder %s94, %s97
      %p106 = scmp.eq.s32.totalorder %s14, 3
      %p107 = por %p105, %p106
      %p108 = scmp.ne.s32.totalorder %s97, %s98
      %p109 = scmp.eq.s32.totalorder %s14, 0
      %p110 = por %p108, %p109
      %p111 = scmp.ne.s32.totalorder %s97, %s98
      %p112 = scmp.eq.s32.totalorder %s15, 3
      %p113 = por %p111, %p112
      %p115 = scmp.ne.s32.totalorder %s98, %s114
      %p116 = scmp.eq.s32.totalorder %s15, 0
      %p117 = por %p115, %p116
      %s118 = ssub.s32 %s16, %s35
      %s119 = ssub.s32 %s17, %s31
      %s120 = sor.u32 %s118, %s119
      %p121 = scmp.eq.s32.totalorder %s120, 0
      %s123 = sadd.s32 %s122, 1
      %s124 = scalar_select %p121, %s122, %s123
      %p127 = pneg %p121
      %p128 = scmp.eq.s32.totalorder %s9, 3
      %p129 = por %p127, %p128
      %p130 = scmp.ne.s32.totalorder %s122, %s125
      %p131 = scmp.eq.s32.totalorder %s9, 0
      %p132 = por %p130, %p131
      %p133 = scmp.ne.s32.totalorder %s122, %s125
      %p134 = scmp.eq.s32.totalorder %s14, 3
      %p135 = por %p133, %p134
      %p136 = scmp.ne.s32.totalorder %s125, %s126
      %p137 = scmp.eq.s32.totalorder %s14, 0
      %p138 = por %p136, %p137
      %p139 = scmp.ne.s32.totalorder %s125, %s126
      %p140 = scmp.eq.s32.totalorder %s15, 3
      %p141 = por %p139, %p140
      %p143 = scmp.ne.s32.totalorder %s126, %s142
      %p144 = scmp.eq.s32.totalorder %s15, 0
      %p145 = por %p143, %p144
      %p146 = scmp.le.s32.totalorder 1, %s9
      %p147 = scmp.lt.s32.totalorder %s9, 5
      %p148 = pnand %p146, %p147
      %p149 = pneg %p148
      // Predicated region
      $region9: #{encoder_block.12} parent=5 // pred_check
        _
      $region10: #{encoder_block.12} parent=5 // pred_check_branch
        %151 = sbr.rel (%p148) target = $region12
      $region11: #{encoder_block.12} parent=5 // pred_region
        %s152 = ssub.s32 %s9, 1
        // Predicated region
        $region13: #{encoder_block.12} parent=11 // pred_check
          %p153 = pneg %p110
        $region14: #{encoder_block.12} parent=11 // pred_check_branch
          %155 = sbr.rel (%p153) target = $region16
        $region15: #{encoder_block.12} parent=11 // pred_region
          %p156 = scmp.lt.s32.totalorder %s20, 0
          %s157 = scalar_select %p156, %s20, 0
          %s158 = scalar_lea.vmem %s2, %s157
        $region16: #{encoder_block.12} parent=11 // pred_fallthru
          _
      $region12: #{encoder_block.12} parent=5 // pred_fallthru
        _
      %p159 = scmp.lt.s32.totalorder %s9, 4
      // Predicated region
      $region17: #{encoder_block.12} parent=5 // pred_check
        %p160 = pneg %p159
      $region18: #{encoder_block.12} parent=5 // pred_check_branch
        %162 = sbr.rel (%p160) target = $region20
      $region19: #{encoder_block.12} parent=5 // pred_region
        // Predicated region
        $region21: #{encoder_block.12} parent=19 // pred_check
          %p163 = pneg %p50
        $region22: #{encoder_block.12} parent=19 // pred_check_branch
          %165 = sbr.rel (%p163) target = $region24
        $region23: #{encoder_block.12} parent=19 // pred_region
          %s166 = sand.u32 %s40, 1
          %s167 = sand.u32 %s40, 1
          %s168 = smul.addr %s167, 64
          %s169 = scalar_lea.vmem [#allocation3], %s168
          %s170 = smul.u32 2, %s16
          %s171 = smul.u32 4, %s18
          %s172 = smul.addr %s170, 16
          %s173 = sadd.s32 %s171, %s172
          %s174 = smul.addr %s173, 8
          %s175 = scalar_lea.vmem %s0, %s174
          // Predicated region
          $region25: #{encoder_block.12} parent=23 // pred_check
            _
          $region26: #{encoder_block.12} parent=23 // pred_check_branch
            %177 = sbr.rel (0) target = $region28
          $region27: #{encoder_block.12} parent=23 // pred_region
            // Predicated region
            $region29: #{encoder_block.12} parent=27 // pred_check
              _
            $region30: #{encoder_block.12} parent=27 // pred_check_branch
              %179 = sbr.rel (0) target = $region32
            $region31: #{encoder_block.12} parent=27 // pred_region
              loop: start=0, step=1, limit=1
              $region33: #{encoder_block.12} parent=31 // loop_pre_header
                _
              $region34: #{encoder_block.12} parent=31 // loop_header
                %s181 = sphi 0, %s185
                %p182 = scmp.ge.s32.totalorder %s181, 1
                %s186 = sphi %s175, %s175
                %s187 = sphi %s169, %s169
              $region35: #{encoder_block.12} parent=31 // loop_header_branch
                %184 = sbr.rel (%p182) target = $region39
              $region36: #{encoder_block.12} parent=31 // loop_body
                %v188 = vld [vmem:[%s186] sm:$0xff]
                %189 = vst [vmem:[%s187] sm:$0xff] %v188
                %v190 = vld [vmem:[%s186 + $0x8] sm:$0xff]
                %191 = vst [vmem:[%s187 + $0x8] sm:$0xff] %v190
                %v192 = vld [vmem:[%s186 + $0x10] sm:$0xff]
                %193 = vst [vmem:[%s187 + $0x10] sm:$0xff] %v192
                %v194 = vld [vmem:[%s186 + $0x18] sm:$0xff]
                %195 = vst [vmem:[%s187 + $0x18] sm:$0xff] %v194
                %v196 = vld [vmem:[%s186 + $0x80] sm:$0xff]
                %197 = vst [vmem:[%s187 + $0x20] sm:$0xff] %v196
                %v198 = vld [vmem:[%s186 + $0x88] sm:$0xff]
                %199 = vst [vmem:[%s187 + $0x28] sm:$0xff] %v198
                %v200 = vld [vmem:[%s186 + $0x90] sm:$0xff]
                %201 = vst [vmem:[%s187 + $0x30] sm:$0xff] %v200
                %v202 = vld [vmem:[%s186 + $0x98] sm:$0xff]
                %203 = vst [vmem:[%s187 + $0x38] sm:$0xff] %v202
              $region37: #{encoder_block.12} parent=31 // loop_footer
                %s185 = sadd.s32 1, %s181
              $region38: #{encoder_block.12} parent=31 // loop_footer_branch
                %180 = sbr.rel target = $region34
              $region39: #{encoder_block.12} parent=31 // loop_exit
                _
            $region32: #{encoder_block.12} parent=27 // pred_fallthru
              _
            // Predicated region
            $region40: #{encoder_block.12} parent=27 // pred_check
              _
            $region41: #{encoder_block.12} parent=27 // pred_check_branch
              %205 = sbr.rel target = $region43
            $region42: #{encoder_block.12} parent=27 // pred_region
              _
            $region43: #{encoder_block.12} parent=27 // pred_fallthru
              _
          $region28: #{encoder_block.12} parent=23 // pred_fallthru
            _
          %206 = vnop
        $region24: #{encoder_block.12} parent=19 // pred_fallthru
          _
        // Predicated region
        $region44: #{encoder_block.12} parent=19 // pred_check
          %p207 = pneg %p78
        $region45: #{encoder_block.12} parent=19 // pred_check_branch
          %209 = sbr.rel (%p207) target = $region47
        $region46: #{encoder_block.12} parent=19 // pred_region
          %s210 = smul.u32 64, %s18
          %p211 = scmp.lt.s32.totalorder %s210, 255
          %s212 = scalar_select %p211, %s210, 255
          %p213 = scmp.lt.s32.totalorder %s17, 0
          %s214 = scalar_select %p213, %s17, 0
          %s215 = sadd.s32 %s214, %s212
          %s216 = smul.addr %s215, 8
          %s217 = scalar_lea.vmem %s1, %s216
          %s218 = smul.u32 64, %s18
        $region47: #{encoder_block.12} parent=19 // pred_fallthru
          _
      $region20: #{encoder_block.12} parent=5 // pred_fallthru
        _
      %p219 = scmp.le.s32.totalorder 1, %s9
      %p220 = scmp.lt.s32.totalorder %s9, 5
      %p221 = pnand %p219, %p220
      %p222 = pneg %p221
      // Predicated region
      $region48: #{encoder_block.12} parent=5 // pred_check
        _
      $region49: #{encoder_block.12} parent=5 // pred_check_branch
        %224 = sbr.rel (%p221) target = $region51
      $region50: #{encoder_block.12} parent=5 // pred_region
        %s225 = ssub.s32 %s9, 1
        %s226 = sand.u32 %s43, 1
        %s227 = sand.u32 %s43, 1
        %s228 = smul.addr %s227, 64
        %s229 = scalar_lea.vmem [#allocation3], %s228
        // Predicated region
        $region52: #{encoder_block.12} parent=50 // pred_check
          %p230 = pneg %p56
        $region53: #{encoder_block.12} parent=50 // pred_check_branch
          %232 = sbr.rel (%p230) target = $region55
        $region54: #{encoder_block.12} parent=50 // pred_region
          _
        $region55: #{encoder_block.12} parent=50 // pred_fallthru
          _
        %s233 = sand.u32 %s43, 1
        %s234 = sand.u32 %s43, 1
        %s235 = smul.addr %s234, 64
        %s236 = scalar_lea.vmem [#allocation3], %s235
        %p237 = pneg %p56
        %p238 = pneg %p53
        %s239 = smul.u32 64, %s21
        %p240 = scmp.lt.s32.totalorder %s239, 255
        %s241 = scalar_select %p240, %s239, 255
        %p242 = scmp.lt.s32.totalorder %s20, 0
        %s243 = scalar_select %p242, %s20, 0
        %s244 = sadd.s32 %s243, %s241
        %s245 = smul.addr %s244, 8
        %s246 = scalar_lea.vmem %s1, %s245
        %p247 = pneg %p84
        %p248 = pneg %p81
        %p249 = scmp.lt.s32.totalorder %s20, 0
        %s250 = scalar_select %p249, %s20, 0
        %s251 = scalar_lea.vmem %s2, %s250
        %p252 = pneg %p110
        %p253 = pneg %p107
        %p254 = pneg %p138
        %p255 = pneg %p135
        %s256 = smul.u32 2, %s19
        %p257 = scmp.lt.s32.totalorder %s256, 1
        %s258 = scalar_select %p257, %s256, 1
        %p259 = scmp.lt.s32.totalorder %s20, 0
        %s260 = scalar_select %p259, %s20, 0
        %s261 = sadd.s32 %s260, %s258
        %s262 = smul.addr %s261, 8
        %s263 = scalar_lea.vmem %s3, %s262
        %s264 = smul.u32 2, %s19
        %s265 = smul.u32 4, %s21
        %s266 = smul.u32 64, %s21
        %p267 = scmp.lt.s32.totalorder %s266, 255
        %s268 = scalar_select %p267, %s266, 255
        %p269 = scmp.lt.s32.totalorder %s20, 0
        %s270 = scalar_select %p269, %s20, 0
        %s271 = sadd.s32 %s270, %s268
        %s272 = smul.addr %s271, 8
        %s273 = scalar_lea.vmem %s1, %s272
        %s274 = smul.u32 64, %s21
        %p275 = scmp.lt.s32.totalorder %s20, 0
        %s276 = scalar_select %p275, %s20, 0
        %s277 = scalar_lea.vmem %s2, %s276
        %s278 = smul.u32 2, %s19
        %p279 = scmp.lt.s32.totalorder %s278, 1
        %s280 = scalar_select %p279, %s278, 1
        %p281 = scmp.lt.s32.totalorder %s20, 0
        %s282 = scalar_select %p281, %s20, 0
        %s283 = sadd.s32 %s282, %s280
        %s284 = smul.addr %s283, 8
        %s285 = scalar_lea.vmem %s3, %s284
        %s286 = smul.u32 2, %s19
        %p287 = scmp.eq.s32.totalorder %s21, 0
        // Predicated region
        $region56: #{encoder_block.12} parent=50 // pred_check
          %p288 = pneg %p287
        $region57: #{encoder_block.12} parent=50 // pred_check_branch
          %290 = sbr.rel (%p288) target = $region59
        $region58: #{encoder_block.12} parent=50 // pred_region
          %vm291 = vcmask 261120
          %292 = vst.msk [vmem:[#allocation2] sm:$0xff] %vm291, 0.0
          %293 = vst.msk [vmem:[#allocation2 + $0x8] sm:$0xff] %vm291, 0.0
        $region59: #{encoder_block.12} parent=50 // pred_fallthru
          _
        %v294 = vld [vmem:[#allocation2] sm:$0xff]
        %v295 = vld [vmem:[#allocation2 + $0x8] sm:$0xff]
        %v296 = vld [vmem:[%s229] sm:$0xff]
        %v297 = vld [vmem:[%s229 + $0x8] sm:$0xff]
        %v298 = vld [vmem:[%s229 + $0x10] sm:$0xff]
        %v299 = vld [vmem:[%s229 + $0x18] sm:$0xff]
        %v300 = vld [vmem:[%s229 + $0x20] sm:$0xff]
        %v301 = vld [vmem:[%s229 + $0x28] sm:$0xff]
        %v302 = vld [vmem:[%s229 + $0x30] sm:$0xff]
        %v303 = vld [vmem:[%s229 + $0x38] sm:$0xff]
        %v304 = vld [vmem:[%s273] sm:$0xff]
        %v305 = vld [vmem:[%s273 + $0x8] sm:$0xff]
        %v306 = vld [vmem:[%s273 + $0x10] sm:$0xff]
        %v307 = vld [vmem:[%s273 + $0x18] sm:$0xff]
        %v308 = vld [vmem:[%s273 + $0x20] sm:$0xff]
        %v309 = vld [vmem:[%s273 + $0x28] sm:$0xff]
        %v310 = vld [vmem:[%s273 + $0x30] sm:$0xff]
        %v311 = vld [vmem:[%s273 + $0x38] sm:$0xff]
        %v312 = vld [vmem:[%s273 + $0x40] sm:$0xff]
        %v313 = vld [vmem:[%s273 + $0x48] sm:$0xff]
        %v314 = vld [vmem:[%s273 + $0x50] sm:$0xff]
        %v315 = vld [vmem:[%s273 + $0x58] sm:$0xff]
        %v316 = vld [vmem:[%s273 + $0x60] sm:$0xff]
        %v317 = vld [vmem:[%s273 + $0x68] sm:$0xff]
        %v318 = vld [vmem:[%s273 + $0x70] sm:$0xff]
        %v319 = vld [vmem:[%s273 + $0x78] sm:$0xff]
        %v320 = vld [vmem:[%s273 + $0x80] sm:$0xff]
        %v321 = vld [vmem:[%s273 + $0x88] sm:$0xff]
        %v322 = vld [vmem:[%s273 + $0x90] sm:$0xff]
        %v323 = vld [vmem:[%s273 + $0x98] sm:$0xff]
        %v324 = vld [vmem:[%s273 + $0xa0] sm:$0xff]
        %v325 = vld [vmem:[%s273 + $0xa8] sm:$0xff]
        %v326 = vld [vmem:[%s273 + $0xb0] sm:$0xff]
        %v327 = vld [vmem:[%s273 + $0xb8] sm:$0xff]
        %v328 = vld [vmem:[%s273 + $0xc0] sm:$0xff]
        %v329 = vld [vmem:[%s273 + $0xc8] sm:$0xff]
        %v330 = vld [vmem:[%s273 + $0xd0] sm:$0xff]
        %v331 = vld [vmem:[%s273 + $0xd8] sm:$0xff]
        %v332 = vld [vmem:[%s273 + $0xe0] sm:$0xff]
        %v333 = vld [vmem:[%s273 + $0xe8] sm:$0xff]
        %v334 = vld [vmem:[%s273 + $0xf0] sm:$0xff]
        %v335 = vld [vmem:[%s273 + $0xf8] sm:$0xff]
        %v336 = vld [vmem:[%s273 + $0x100] sm:$0xff]
        %v337 = vld [vmem:[%s273 + $0x108] sm:$0xff]
        %v338 = vld [vmem:[%s273 + $0x110] sm:$0xff]
        %v339 = vld [vmem:[%s273 + $0x118] sm:$0xff]
        %v340 = vld [vmem:[%s273 + $0x120] sm:$0xff]
        %v341 = vld [vmem:[%s273 + $0x128] sm:$0xff]
        %v342 = vld [vmem:[%s273 + $0x130] sm:$0xff]
        %v343 = vld [vmem:[%s273 + $0x138] sm:$0xff]
        %v344 = vld [vmem:[%s273 + $0x140] sm:$0xff]
        %v345 = vld [vmem:[%s273 + $0x148] sm:$0xff]
        %v346 = vld [vmem:[%s273 + $0x150] sm:$0xff]
        %v347 = vld [vmem:[%s273 + $0x158] sm:$0xff]
        %v348 = vld [vmem:[%s273 + $0x160] sm:$0xff]
        %v349 = vld [vmem:[%s273 + $0x168] sm:$0xff]
        %v350 = vld [vmem:[%s273 + $0x170] sm:$0xff]
        %v351 = vld [vmem:[%s273 + $0x178] sm:$0xff]
        %v352 = vld [vmem:[%s273 + $0x180] sm:$0xff]
        %v353 = vld [vmem:[%s273 + $0x188] sm:$0xff]
        %v354 = vld [vmem:[%s273 + $0x190] sm:$0xff]
        %v355 = vld [vmem:[%s273 + $0x198] sm:$0xff]
        %v356 = vld [vmem:[%s273 + $0x1a0] sm:$0xff]
        %v357 = vld [vmem:[%s273 + $0x1a8] sm:$0xff]
        %v358 = vld [vmem:[%s273 + $0x1b0] sm:$0xff]
        %v359 = vld [vmem:[%s273 + $0x1b8] sm:$0xff]
        %v360 = vld [vmem:[%s273 + $0x1c0] sm:$0xff]
        %v361 = vld [vmem:[%s273 + $0x1c8] sm:$0xff]
        %v362 = vld [vmem:[%s273 + $0x1d0] sm:$0xff]
        %v363 = vld [vmem:[%s273 + $0x1d8] sm:$0xff]
        %v364 = vld [vmem:[%s273 + $0x1e0] sm:$0xff]
        %v365 = vld [vmem:[%s273 + $0x1e8] sm:$0xff]
        %v366 = vld [vmem:[%s273 + $0x1f0] sm:$0xff]
        %v367 = vld [vmem:[%s273 + $0x1f8] sm:$0xff]
        %368 = vmatprep.subr.mxu0 0.0
        %369 = vmatpush1.msra.mxu0 %v304
        %370 = vmatprep.subr.mxu0 0.0
        %371 = vmatpush1.msra.mxu0 %v305
        %372 = vmatprep.subr.mxu0 0.0
        %373 = vmatpush1.msra.mxu0 %v306
        %374 = vmatprep.subr.mxu0 0.0
        %375 = vmatpush1.msra.mxu0 %v307
        %376 = vmatprep.subr.mxu0 0.0
        %377 = vmatpush1.msra.mxu0 %v308
        %378 = vmatprep.subr.mxu0 0.0
        %379 = vmatpush1.msra.mxu0 %v309
        %380 = vmatprep.subr.mxu0 0.0
        %381 = vmatpush1.msra.mxu0 %v310
        %382 = vmatprep.subr.mxu0 0.0
        %383 = vmatpush1.msra.mxu0 %v311
        %384 = vmatprep.subr.mxu0 0.0
        %385 = vmatpush1.msra.mxu0 %v312
        %386 = vmatprep.subr.mxu0 0.0
        %387 = vmatpush1.msra.mxu0 %v313
        %388 = vmatprep.subr.mxu0 0.0
        %389 = vmatpush1.msra.mxu0 %v314
        %390 = vmatprep.subr.mxu0 0.0
        %391 = vmatpush1.msra.mxu0 %v315
        %392 = vmatprep.subr.mxu0 0.0
        %393 = vmatpush1.msra.mxu0 %v316
        %394 = vmatprep.subr.mxu0 0.0
        %395 = vmatpush1.msra.mxu0 %v317
        %396 = vmatprep.subr.mxu0 0.0
        %397 = vmatpush1.msra.mxu0 %v318
        %398 = vmatprep.subr.mxu0 0.0
        %399 = vmatpush1.msra.mxu0 %v319
        %400 = vmatprep.subr.mxu0 0.0
        %401 = vmatpush1.msra.mxu0 %v320
        %402 = vmatprep.subr.mxu0 0.0
        %403 = vmatpush1.msra.mxu0 %v321
        %404 = vmatprep.subr.mxu0 0.0
        %405 = vmatpush1.msra.mxu0 %v322
        %406 = vmatprep.subr.mxu0 0.0
        %407 = vmatpush1.msra.mxu0 %v323
        %408 = vmatprep.subr.mxu0 0.0
        %409 = vmatpush1.msra.mxu0 %v324
        %410 = vmatprep.subr.mxu0 0.0
        %411 = vmatpush1.msra.mxu0 %v325
        %412 = vmatprep.subr.mxu0 0.0
        %413 = vmatpush1.msra.mxu0 %v326
        %414 = vmatprep.subr.mxu0 0.0
        %415 = vmatpush1.msra.mxu0 %v327
        %416 = vmatprep.subr.mxu0 0.0
        %417 = vmatpush1.msra.mxu0 %v328
        %418 = vmatprep.subr.mxu0 0.0
        %419 = vmatpush1.msra.mxu0 %v329
        %420 = vmatprep.subr.mxu0 0.0
        %421 = vmatpush1.msra.mxu0 %v330
        %422 = vmatprep.subr.mxu0 0.0
        %423 = vmatpush1.msra.mxu0 %v331
        %424 = vmatprep.subr.mxu0 0.0
        %425 = vmatpush1.msra.mxu0 %v332
        %426 = vmatprep.subr.mxu0 0.0
        %427 = vmatpush1.msra.mxu0 %v333
        %428 = vmatprep.subr.mxu0 0.0
        %429 = vmatpush1.msra.mxu0 %v334
        %430 = vmatprep.subr.mxu0 0.0
        %431 = vmatpush1.msra.mxu0 %v335
        %432 = vmatprep.mubr.f32.mxu0 %v297
        %433 = vmatmul.mubr.f32.gmra.mrb[0].mxu0 %v296
        %v434 = vpop.f32.mrb[0].mxu0
        %v435 = vadd.f32 0.0, %v434
        %v436 = vpop.f32.mrb[0].mxu0
        %437 = vmatprep.mubr.f32.mxu0 %v301
        %438 = vmatmul.mubr.f32.gmra.mrb[0].mxu0 %v300
        %v439 = vpop.f32.mrb[0].mxu0
        %v440 = vadd.f32 0.0, %v439
        %v441 = vpop.f32.mrb[0].mxu0
        %442 = vdwg.mxu0
        %443 = vmatprep.subr.mxu0 0.0
        %444 = vmatpush1.msra.mxu0 %v336
        %445 = vmatprep.subr.mxu0 0.0
        %446 = vmatpush1.msra.mxu0 %v337
        %447 = vmatprep.subr.mxu0 0.0
        %448 = vmatpush1.msra.mxu0 %v338
        %449 = vmatprep.subr.mxu0 0.0
        %450 = vmatpush1.msra.mxu0 %v339
        %451 = vmatprep.subr.mxu0 0.0
        %452 = vmatpush1.msra.mxu0 %v340
        %453 = vmatprep.subr.mxu0 0.0
        %454 = vmatpush1.msra.mxu0 %v341
        %455 = vmatprep.subr.mxu0 0.0
        %456 = vmatpush1.msra.mxu0 %v342
        %457 = vmatprep.subr.mxu0 0.0
        %458 = vmatpush1.msra.mxu0 %v343
        %459 = vmatprep.subr.mxu0 0.0
        %460 = vmatpush1.msra.mxu0 %v344
        %461 = vmatprep.subr.mxu0 0.0
        %462 = vmatpush1.msra.mxu0 %v345
        %463 = vmatprep.subr.mxu0 0.0
        %464 = vmatpush1.msra.mxu0 %v346
        %465 = vmatprep.subr.mxu0 0.0
        %466 = vmatpush1.msra.mxu0 %v347
        %467 = vmatprep.subr.mxu0 0.0
        %468 = vmatpush1.msra.mxu0 %v348
        %469 = vmatprep.subr.mxu0 0.0
        %470 = vmatpush1.msra.mxu0 %v349
        %471 = vmatprep.subr.mxu0 0.0
        %472 = vmatpush1.msra.mxu0 %v350
        %473 = vmatprep.subr.mxu0 0.0
        %474 = vmatpush1.msra.mxu0 %v351
        %475 = vmatprep.subr.mxu0 0.0
        %476 = vmatpush1.msra.mxu0 %v352
        %477 = vmatprep.subr.mxu0 0.0
        %478 = vmatpush1.msra.mxu0 %v353
        %479 = vmatprep.subr.mxu0 0.0
        %480 = vmatpush1.msra.mxu0 %v354
        %481 = vmatprep.subr.mxu0 0.0
        %482 = vmatpush1.msra.mxu0 %v355
        %483 = vmatprep.subr.mxu0 0.0
        %484 = vmatpush1.msra.mxu0 %v356
        %485 = vmatprep.subr.mxu0 0.0
        %486 = vmatpush1.msra.mxu0 %v357
        %487 = vmatprep.subr.mxu0 0.0
        %488 = vmatpush1.msra.mxu0 %v358
        %489 = vmatprep.subr.mxu0 0.0
        %490 = vmatpush1.msra.mxu0 %v359
        %491 = vmatprep.subr.mxu0 0.0
        %492 = vmatpush1.msra.mxu0 %v360
        %493 = vmatprep.subr.mxu0 0.0
        %494 = vmatpush1.msra.mxu0 %v361
        %495 = vmatprep.subr.mxu0 0.0
        %496 = vmatpush1.msra.mxu0 %v362
        %497 = vmatprep.subr.mxu0 0.0
        %498 = vmatpush1.msra.mxu0 %v363
        %499 = vmatprep.subr.mxu0 0.0
        %500 = vmatpush1.msra.mxu0 %v364
        %501 = vmatprep.subr.mxu0 0.0
        %502 = vmatpush1.msra.mxu0 %v365
        %503 = vmatprep.subr.mxu0 0.0
        %504 = vmatpush1.msra.mxu0 %v366
        %505 = vmatprep.subr.mxu0 0.0
        %506 = vmatpush1.msra.mxu0 %v367
        %507 = vmatprep.mubr.f32.mxu0 %v299
        %508 = vmatmul.mubr.f32.gmra.mrb[0].mxu0 %v298
        %v509 = vpop.f32.mrb[0].mxu0
        %v510 = vadd.f32 %v435, %v509
        %v511 = vpop.f32.mrb[0].mxu0
        %512 = vmatprep.mubr.f32.mxu0 %v303
        %513 = vmatmul.mubr.f32.gmra.mrb[0].mxu0 %v302
        %v514 = vpop.f32.mrb[0].mxu0
        %v515 = vadd.f32 %v440, %v514
        %v516 = vpop.f32.mrb[0].mxu0
        %517 = vdwg.mxu0
        %v518 = vadd.f32 %v294, %v510
        %v519 = vadd.f32 %v295, %v515
        %vm520 = vcmask 261120
        %521 = vst.msk [vmem:[#allocation2] sm:$0xff] %vm520, %v518
        %522 = vst.msk [vmem:[#allocation2 + $0x8] sm:$0xff] %vm520, %v519
        %p523 = scmp.eq.s32.totalorder %s21, 3
        // Predicated region
        $region60: #{encoder_block.12} parent=50 // pred_check
          %p524 = pneg %p523
        $region61: #{encoder_block.12} parent=50 // pred_check_branch
          %526 = sbr.rel (%p524) target = $region63
        $region62: #{encoder_block.12} parent=50 // pred_region
          %v527 = vld [vmem:[#allocation2] sm:$0xff]
          %v528 = vld [vmem:[#allocation2 + $0x8] sm:$0xff]
          %v529 = vld [vmem:[%s277] sm:$0x1]
          %v531 = vlaneseq
          %v532 = vshrl.u32 %v531, 7
          %v533 = vsub.s32 0, %v532
          %v534 = vrot.slane %v529, %v533
          %v536 = vadd.f32 %v527, %v534
          %v537 = vadd.f32 %v528, %v534
          %538 = vst.msk [vmem:[%s285] sm:$0xff] %vm520, %v536
          %539 = vst.msk [vmem:[%s285 + $0x8] sm:$0xff] %vm520, %v537
        $region63: #{encoder_block.12} parent=50 // pred_fallthru
          _
        %s540 = smul.u32 2, %s19
        %p541 = scmp.lt.s32.totalorder %s540, 1
        %s542 = scalar_select %p541, %s540, 1
        %p543 = scmp.lt.s32.totalorder %s20, 0
        %s544 = scalar_select %p543, %s20, 0
        %s545 = sadd.s32 %s544, %s542
        %s546 = smul.addr %s545, 8
        %s547 = scalar_lea.vmem %s3, %s546
        // Predicated region
        $region64: #{encoder_block.12} parent=50 // pred_check
          %p548 = pneg %p135
        $region65: #{encoder_block.12} parent=50 // pred_check_branch
          %550 = sbr.rel (%p548) target = $region67
        $region66: #{encoder_block.12} parent=50 // pred_region
          %s551 = smul.u32 2, %s19
        $region67: #{encoder_block.12} parent=50 // pred_fallthru
          _
        // Predicated region
        $region68: #{encoder_block.12} parent=50 // pred_check
          %p552 = pneg %p135
        $region69: #{encoder_block.12} parent=50 // pred_check_branch
          %554 = sbr.rel (%p552) target = $region71
        $region70: #{encoder_block.12} parent=50 // pred_region
          %s555 = smul.u32 2, %s19
          %p556 = scmp.lt.s32.totalorder %s555, 1
          %s557 = scalar_select %p556, %s555, 1
          %p558 = scmp.lt.s32.totalorder %s20, 0
          %s559 = scalar_select %p558, %s20, 0
          %s560 = sadd.s32 %s559, %s557
          %s561 = smul.addr %s560, 8
          %s562 = scalar_lea.vmem %s3, %s561
        $region71: #{encoder_block.12} parent=50 // pred_fallthru
          _
      $region51: #{encoder_block.12} parent=5 // pred_fallthru
        _
      %p563 = scmp.le.s32.totalorder 2, %s9
      // Predicated region
      $region72: #{encoder_block.12} parent=5 // pred_check
        %p564 = pneg %p563
      $region73: #{encoder_block.12} parent=5 // pred_check_branch
        %566 = sbr.rel (%p564) target = $region75
      $region74: #{encoder_block.12} parent=5 // pred_region
        %s567 = ssub.s32 %s9, 2
      $region75: #{encoder_block.12} parent=5 // pred_fallthru
        _
    $region6: #{encoder_block.12} parent=1 // loop_footer
      %s13 = sadd.s32 1, %s9
    $region7: #{encoder_block.12} parent=1 // loop_footer_branch
      %8 = sbr.rel target = $region3
    $region8: #{encoder_block.12} parent=1 // loop_exit
      _

</llo_original>
